<compile_context>
chip_gen: v7x
topology: tpu7x:2x2x1
jax: 0.10.0
libtpu: 0.0.40
codegen_flags: <defaults>
</compile_context>

<pallas_src>
import math

import numpy as np
import jax
import jax.numpy as jnp
from jax import lax
from jax.experimental import pallas as pl

# ------------------------- small config (matches the PyTorch example) -------------------------
BATCH = 2
IN_RES = 16          # input_resolution
PATCH = 8            # patch_size
WIDTH = 32           # d_model
LAYERS = 2
HEADS = 4
OUTPUT_DIM = 16
HEAD_DIM = WIDTH // HEADS
GRID = IN_RES // PATCH
N_PATCH = GRID * GRID                 # 4
SEQ = N_PATCH + 1                     # 5 (cls token + patches)
BSEQ = BATCH * SEQ                    # 10 token rows (cls-first layout)
STACK = HEADS * BSEQ                  # 40 head-stacked token rows
HW = HEADS * WIDTH                    # 128 lanes used by the block-diagonal expansion
LN_EPS = 1e-5
SCALE = 1.0 / math.sqrt(HEAD_DIM)
NEG_INF = -1e30


# ------------------------- kernel helpers -------------------------
def _layernorm(x, g, b):
    # PyTorch LayerNorm (biased variance, eps=1e-5), fp32. x: (..., D), g/b: (1, D)
    mu = jnp.mean(x, axis=-1, keepdims=True)
    var = jnp.mean((x - mu) * (x - mu), axis=-1, keepdims=True)
    return (x - mu) * lax.rsqrt(var + LN_EPS) * g + b


# ------------------------- fused Pallas kernel -------------------------
def vit_fused_kernel(patches_ref, wpatch_ref, clspos_ref,
                     rep_ref, rep_t_ref, tile_ref, tile_t_ref,
                     hmask_ref, bias_ref,
                     lnpre_g_ref, lnpre_b_ref,
                     ln1g_ref, ln1b_ref, wqkv_ref, bqkv_ref, wo_ref, bo_ref,
                     ln2g_ref, ln2b_ref, wfc_ref, bfc_ref, wpj_ref, bpj_ref,
                     lnpost_g_ref, lnpost_b_ref, proj_ref,
                     o_ref):
    f32 = jnp.float32

    # ---- patch embedding (conv1 with kernel==stride==patch is one matmul) ----
    # patches: (BSEQ, 3*P*P) with zero rows in the cls slots (conv1 bias=False);
    # clspos already folds class_embedding + positional_embedding.
    x = jnp.dot(patches_ref[...], wpatch_ref[...],
                preferred_element_type=f32) + clspos_ref[...]
    x = _layernorm(x, lnpre_g_ref[...], lnpre_b_ref[...])      # ln_pre

    rep, rep_t = rep_ref[...], rep_t_ref[...]
    tile, tile_t = tile_ref[...], tile_t_ref[...]
    hmask = hmask_ref[...]
    bias = bias_ref[...]                                        # (STACK, STACK)

    # ---- residual attention blocks (static unroll over layers) ----
    for layer in range(LAYERS):
        # ---------------- attention branch ----------------
        h = _layernorm(x, ln1g_ref[layer], ln1b_ref[layer])
        # head-stacked block-diagonal expansion kron(I_HEADS, h): two constant
        # matmuls + constant mask -> (STACK, HW).  All MXU/VPU work, no XLU
        # transposes / lane-splitting reshapes.
        hblk = jnp.dot(jnp.dot(rep, h, preferred_element_type=f32), tile,
                       preferred_element_type=f32) * hmask
        # one matmul produces q/k/v for every (head, image, token) row
        qkv = jnp.dot(hblk, wqkv_ref[layer],
                      preferred_element_type=f32) + bqkv_ref[layer]
        q = qkv[:, :HEAD_DIM]
        k = qkv[:, HEAD_DIM:2 * HEAD_DIM]
        v = qkv[:, 2 * HEAD_DIM:]
        # ONE score matmul for all heads/images; dot_general contracts dim 1 of
        # both operands so no K transpose is materialized.
        s = lax.dot_general(q, k, (((1,), (1,)), ((), ())),
                            preferred_element_type=f32)
        s = s * SCALE + bias            # bias keeps (head, image) blocks separate
        s = s - jnp.max(s, axis=-1, keepdims=True)
        p = jnp.exp(s)
        # approx reciprocal -> idle EUP slot; use approx=False for strict parity
        p = p * pl.reciprocal(jnp.sum(p, axis=-1, keepdims=True), approx=True)
        ctx = jnp.dot(p, v, preferred_element_type=f32)          # (STACK, HEAD_DIM)
        # per-head out-projection + fold over heads, again constant matmuls + mask
        ctxw = jnp.dot(ctx, wo_ref[layer],
                       preferred_element_type=f32) * hmask       # (STACK, HW)
        attn = jnp.dot(jnp.dot(rep_t, ctxw, preferred_element_type=f32), tile_t,
                       preferred_element_type=f32) + bo_ref[layer]
        x = x + attn                                             # residual

        # ---------------- MLP branch ----------------
        h2 = _layernorm(x, ln2g_ref[layer], ln2b_ref[layer])
        u = jnp.dot(h2, wfc_ref[layer],
                    preferred_element_type=f32) + bfc_ref[layer]
        # QuickGELU  x*sigmoid(1.702x) == x*0.5*(1+tanh(0.851x)): single EUP op
        u = u * (0.5 * (1.0 + jnp.tanh(0.851 * u)))
        x = x + jnp.dot(u, wpj_ref[layer],
                        preferred_element_type=f32) + bpj_ref[layer]

    # ---- ln_post + output projection on the contiguous cls rows only ----
    y = _layernorm(x[:BATCH, :], lnpost_g_ref[...], lnpost_b_ref[...])
    o_ref[...] = jnp.dot(y, proj_ref[...], preferred_element_type=f32)


# ------------------------- constant plumbing matrices -------------------------
def _constants():
    # replicate tokens once per head (sublane stacking) / fold heads back
    rep = np.zeros((STACK, BSEQ), np.float32)
    for h in range(HEADS):
        rep[h * BSEQ:(h + 1) * BSEQ, :] = np.eye(BSEQ, dtype=np.float32)
    # tile the WIDTH lanes once per head / fold the per-head lane blocks back
    tile = np.tile(np.eye(WIDTH, dtype=np.float32), (1, HEADS))     # (WIDTH, HW)
    # 0/1 mask selecting lane block h for sublane block h  (kron(I_H, .) structure)
    hmask = np.zeros((STACK, HW), np.float32)
    for h in range(HEADS):
        hmask[h * BSEQ:(h + 1) * BSEQ, h * WIDTH:(h + 1) * WIDTH] = 1.0
    # additive attention bias: 0 iff same head AND same image (cls-first layout)
    batch_id = np.concatenate([np.arange(BATCH),
                               np.repeat(np.arange(BATCH), N_PATCH)])
    same_img = batch_id[:, None] == batch_id[None, :]
    blk = np.where(same_img, 0.0, NEG_INF).astype(np.float32)
    bias = np.full((STACK, STACK), NEG_INF, np.float32)
    for h in range(HEADS):
        bias[h * BSEQ:(h + 1) * BSEQ, h * BSEQ:(h + 1) * BSEQ] = blk
    return dict(rep=jnp.asarray(rep), rep_t=jnp.asarray(rep.T.copy()),
                tile=jnp.asarray(tile), tile_t=jnp.asarray(tile.T.copy()),
                hmask=jnp.asarray(hmask), bias=jnp.asarray(bias))


# ------------------------- parameter init -------------------------
def init_params(key):
    scale = WIDTH ** (-0.5)
    ks = jax.random.split(key, 12)

    def nrm(k, shape, std=0.02):
        return std * jax.random.normal(k, shape, jnp.float32)

    # ----- parameters in their PyTorch layout -----
    conv_w = nrm(ks[0], (WIDTH, 3, PATCH, PATCH))
    class_embedding = scale * jax.random.normal(ks[1], (WIDTH,), jnp.float32)
    positional_embedding = scale * jax.random.normal(ks[2], (SEQ, WIDTH), jnp.float32)
    proj = scale * jax.random.normal(ks[3], (WIDTH, OUTPUT_DIM), jnp.float32)
    in_proj_w = nrm(ks[4], (LAYERS, 3 * WIDTH, WIDTH))     # MultiheadAttention.in_proj_weight
    in_proj_b = nrm(ks[5], (LAYERS, 3 * WIDTH))
    out_proj_w = nrm(ks[6], (LAYERS, WIDTH, WIDTH))
    out_proj_b = nrm(ks[7], (LAYERS, WIDTH))
    fc_w = nrm(ks[8], (LAYERS, 4 * WIDTH, WIDTH))          # mlp.c_fc
    fc_b = nrm(ks[9], (LAYERS, 4 * WIDTH))
    pj_w = nrm(ks[10], (LAYERS, WIDTH, 4 * WIDTH))         # mlp.c_proj
    pj_b = nrm(ks[11], (LAYERS, WIDTH))

    # ----- kernel (head-stacked) layout, built once at init time -----
    # w_qkv_stk[l, h*W + k, c*HD + d] = in_proj_w[l, c*W + h*HD + d, k]
    w3 = in_proj_w.reshape(LAYERS, 3, HEADS, HEAD_DIM, WIDTH)
    w_qkv_stk = jnp.transpose(w3, (0, 2, 4, 1, 3)).reshape(LAYERS, HW, 3 * HEAD_DIM)
    b3 = in_proj_b.reshape(LAYERS, 3, HEADS, HEAD_DIM)
    b_row = jnp.transpose(b3, (0, 2, 1, 3)).reshape(LAYERS, HEADS, 3 * HEAD_DIM)
    b_qkv_stk = jnp.repeat(b_row, BSEQ, axis=1)            # (L, STACK, 3*HD)
    # w_o_wide[l, d, h*W + w] = out_proj_w[l, w, h*HD + d]
    o3 = out_proj_w.reshape(LAYERS, WIDTH, HEADS, HEAD_DIM)
    w_o_wide = jnp.transpose(o3, (0, 3, 2, 1)).reshape(LAYERS, HEAD_DIM, HW)

    return {
        "conv_w": conv_w,
        "class_embedding": class_embedding,
        "positional_embedding": positional_embedding,
        "proj": proj,
        "ln_pre_g": jnp.ones((1, WIDTH), jnp.float32),
        "ln_pre_b": jnp.zeros((1, WIDTH), jnp.float32),
        "ln_post_g": jnp.ones((1, WIDTH), jnp.float32),
        "ln_post_b": jnp.zeros((1, WIDTH), jnp.float32),
        "ln1_g": jnp.ones((LAYERS, 1, WIDTH), jnp.float32),
        "ln1_b": jnp.zeros((LAYERS, 1, WIDTH), jnp.float32),
        "ln2_g": jnp.ones((LAYERS, 1, WIDTH), jnp.float32),
        "ln2_b": jnp.zeros((LAYERS, 1, WIDTH), jnp.float32),
        "w_qkv_stk": w_qkv_stk,
        "b_qkv_stk": b_qkv_stk,
        "w_o_wide": w_o_wide,
        "b_o": out_proj_b.reshape(LAYERS, 1, WIDTH),
        "w_fc": jnp.transpose(fc_w, (0, 2, 1)),
        "b_fc": fc_b.reshape(LAYERS, 1, 4 * WIDTH),
        "w_pj": jnp.transpose(pj_w, (0, 2, 1)),
        "b_pj": pj_b.reshape(LAYERS, 1, WIDTH),
    }


# ------------------------- forward pass -------------------------
def visual_transformer_forward(x, params):
    B = x.shape[0]
    assert B == BATCH

    # ---- wrapper-side layout plumbing (cls-first token order) ----
    xb = x.reshape(B, 3, GRID, PATCH, GRID, PATCH)
    xb = jnp.transpose(xb, (0, 2, 4, 1, 3, 5))               # (B, gh, gw, C, ph, pw)
    patch_rows = xb.reshape(B * N_PATCH, 3 * PATCH * PATCH)
    patches = jnp.concatenate(
        [jnp.zeros((B, 3 * PATCH * PATCH), jnp.float32), patch_rows], axis=0)

    w_patch = params["conv_w"].reshape(WIDTH, 3 * PATCH * PATCH).T

    cls_row = params["class_embedding"] + params["positional_embedding"][0]
    cls_pos = jnp.concatenate(
        [jnp.broadcast_to(cls_row[None, :], (B, WIDTH)),
         jnp.tile(params["positional_embedding"][1:], (B, 1))], axis=0)

    c = _constants()

    # TODO(synk): at production sizes add a parallel row-tile grid (>=128 rows),
    # per-image attention tiles, layer-streamed weight BlockSpecs (v7x 64 MiB
    # VMEM) and bf16 matmul operands; at BSEQ=10 the single gridless call with
    # all weights resident is already latency-bound.
    return pl.pallas_call(
        vit_fused_kernel,
        out_shape=jax.ShapeDtypeStruct((B, OUTPUT_DIM), jnp.float32),
    )(patches, w_patch, cls_pos,
      c["rep"], c["rep_t"], c["tile"], c["tile_t"], c["hmask"], c["bias"],
      params["ln_pre_g"], params["ln_pre_b"],
      params["ln1_g"], params["ln1_b"], params["w_qkv_stk"], params["b_qkv_stk"],
      params["w_o_wide"], params["b_o"],
      params["ln2_g"], params["ln2_b"], params["w_fc"], params["b_fc"],
      params["w_pj"], params["b_pj"],
      params["ln_post_g"], params["ln_post_b"], params["proj"])


# ------------------------- main -------------------------
if __name__ == "__main__":
    key = jax.random.PRNGKey(0)
    k_param, k_input = jax.random.split(key)
    params = init_params(k_param)

    x = jax.random.normal(k_input, (BATCH, 3, IN_RES, IN_RES), jnp.float32)  # NCHW

    fwd = jax.jit(visual_transformer_forward)
    y = jax.block_until_ready(fwd(x, params))
    assert y.shape == (BATCH, OUTPUT_DIM), y.shape
    assert bool(jnp.all(jnp.isfinite(y)))
    print("KERNEL_OK")
</pallas_src>

<mosaic_0001>
module attributes {stable_mosaic.version = 11 : i64} {
  func.func @vit_fused_kernel(%arg0: memref<10x192xf32, #tpu.memory_space<vmem>>, %arg1: memref<192x32xf32, #tpu.memory_space<vmem>>, %arg2: memref<10x32xf32, #tpu.memory_space<vmem>>, %arg3: memref<40x10xf32, #tpu.memory_space<vmem>>, %arg4: memref<10x40xf32, #tpu.memory_space<vmem>>, %arg5: memref<32x128xf32, #tpu.memory_space<vmem>>, %arg6: memref<128x32xf32, #tpu.memory_space<vmem>>, %arg7: memref<40x128xf32, #tpu.memory_space<vmem>>, %arg8: memref<40x40xf32, #tpu.memory_space<vmem>>, %arg9: memref<1x32xf32, #tpu.memory_space<vmem>>, %arg10: memref<1x32xf32, #tpu.memory_space<vmem>>, %arg11: memref<2x1x32xf32, #tpu.memory_space<vmem>>, %arg12: memref<2x1x32xf32, #tpu.memory_space<vmem>>, %arg13: memref<2x128x24xf32, #tpu.memory_space<vmem>>, %arg14: memref<2x40x24xf32, #tpu.memory_space<vmem>>, %arg15: memref<2x8x128xf32, #tpu.memory_space<vmem>>, %arg16: memref<2x1x32xf32, #tpu.memory_space<vmem>>, %arg17: memref<2x1x32xf32, #tpu.memory_space<vmem>>, %arg18: memref<2x1x32xf32, #tpu.memory_space<vmem>>, %arg19: memref<2x32x128xf32, #tpu.memory_space<vmem>>, %arg20: memref<2x1x128xf32, #tpu.memory_space<vmem>>, %arg21: memref<2x128x32xf32, #tpu.memory_space<vmem>>, %arg22: memref<2x1x32xf32, #tpu.memory_space<vmem>>, %arg23: memref<1x32xf32, #tpu.memory_space<vmem>>, %arg24: memref<1x32xf32, #tpu.memory_space<vmem>>, %arg25: memref<32x16xf32, #tpu.memory_space<vmem>>, %arg26: memref<2x16xf32, #tpu.memory_space<vmem>>) attributes {dimension_semantics = [], scalar_prefetch = 0 : i64, scratch_operands = 0 : i64, tpu.core_type = #tpu.core_type<tc>} {
    %c0 = arith.constant 0 : index
    %c0_0 = arith.constant 0 : index
    %0 = vector.load %arg0[%c0, %c0_0] : memref<10x192xf32, #tpu.memory_space<vmem>>, vector<10x192xf32>
    %c0_1 = arith.constant 0 : index
    %c0_2 = arith.constant 0 : index
    %1 = vector.load %arg1[%c0_1, %c0_2] : memref<192x32xf32, #tpu.memory_space<vmem>>, vector<192x32xf32>
    %cst = arith.constant dense<0.000000e+00> : vector<10x32xf32>
    %2 = tpu.matmul %0, %1, %cst {dimension_numbers = #tpu.dot_dimension_numbers<[1], [0], [0], [1], [0, 0, 1, 1], [], []>} : vector<10x192xf32>, vector<192x32xf32>, vector<10x32xf32> -> vector<10x32xf32>
    %c0_3 = arith.constant 0 : index
    %c0_4 = arith.constant 0 : index
    %3 = vector.load %arg2[%c0_3, %c0_4] : memref<10x32xf32, #tpu.memory_space<vmem>>, vector<10x32xf32>
    %4 = arith.addf %2, %3 : vector<10x32xf32>
    %c0_5 = arith.constant 0 : index
    %c0_6 = arith.constant 0 : index
    %5 = vector.load %arg9[%c0_5, %c0_6] : memref<1x32xf32, #tpu.memory_space<vmem>>, vector<1x32xf32>
    %c0_7 = arith.constant 0 : index
    %c0_8 = arith.constant 0 : index
    %6 = vector.load %arg10[%c0_7, %c0_8] : memref<1x32xf32, #tpu.memory_space<vmem>>, vector<1x32xf32>
    %cst_9 = arith.constant dense<0.000000e+00> : vector<10xf32>
    %7 = vector.multi_reduction <add>, %4, %cst_9 [1] : vector<10x32xf32> to vector<10xf32>
    %8 = vector.shape_cast %7 : vector<10xf32> to vector<10x1xf32>
    %cst_10 = arith.constant 3.200000e+01 : f32
    %9 = vector.broadcast %cst_10 : f32 to vector<10x1xf32>
    %10 = arith.divf %8, %9 : vector<10x1xf32>
    %11 = vector.broadcast %10 : vector<10x1xf32> to vector<10x32xf32>
    %12 = arith.subf %4, %11 : vector<10x32xf32>
    %13 = vector.broadcast %10 : vector<10x1xf32> to vector<10x32xf32>
    %14 = arith.subf %4, %13 : vector<10x32xf32>
    %15 = arith.mulf %12, %14 : vector<10x32xf32>
    %cst_11 = arith.constant dense<0.000000e+00> : vector<10xf32>
    %16 = vector.multi_reduction <add>, %15, %cst_11 [1] : vector<10x32xf32> to vector<10xf32>
    %17 = vector.shape_cast %16 : vector<10xf32> to vector<10x1xf32>
    %cst_12 = arith.constant 3.200000e+01 : f32
    %18 = vector.broadcast %cst_12 : f32 to vector<10x1xf32>
    %19 = arith.divf %17, %18 : vector<10x1xf32>
    %20 = vector.broadcast %10 : vector<10x1xf32> to vector<10x32xf32>
    %21 = arith.subf %4, %20 : vector<10x32xf32>
    %cst_13 = arith.constant 9.99999974E-6 : f32
    %22 = vector.broadcast %cst_13 : f32 to vector<10x1xf32>
    %23 = arith.addf %19, %22 : vector<10x1xf32>
    %24 = math.rsqrt %23 : vector<10x1xf32>
    %25 = vector.broadcast %24 : vector<10x1xf32> to vector<10x32xf32>
    %26 = arith.mulf %21, %25 : vector<10x32xf32>
    %27 = vector.broadcast %5 : vector<1x32xf32> to vector<10x32xf32>
    %28 = arith.mulf %26, %27 : vector<10x32xf32>
    %29 = vector.broadcast %6 : vector<1x32xf32> to vector<10x32xf32>
    %30 = arith.addf %28, %29 : vector<10x32xf32>
    %c0_14 = arith.constant 0 : index
    %c0_15 = arith.constant 0 : index
    %31 = vector.load %arg3[%c0_14, %c0_15] : memref<40x10xf32, #tpu.memory_space<vmem>>, vector<40x10xf32>
    %c0_16 = arith.constant 0 : index
    %c0_17 = arith.constant 0 : index
    %32 = vector.load %arg4[%c0_16, %c0_17] : memref<10x40xf32, #tpu.memory_space<vmem>>, vector<10x40xf32>
    %c0_18 = arith.constant 0 : index
    %c0_19 = arith.constant 0 : index
    %33 = vector.load %arg5[%c0_18, %c0_19] : memref<32x128xf32, #tpu.memory_space<vmem>>, vector<32x128xf32>
    %c0_20 = arith.constant 0 : index
    %c0_21 = arith.constant 0 : index
    %34 = vector.load %arg6[%c0_20, %c0_21] : memref<128x32xf32, #tpu.memory_space<vmem>>, vector<128x32xf32>
    %c0_22 = arith.constant 0 : index
    %c0_23 = arith.constant 0 : index
    %35 = vector.load %arg7[%c0_22, %c0_23] : memref<40x128xf32, #tpu.memory_space<vmem>>, vector<40x128xf32>
    %c0_24 = arith.constant 0 : index
    %c0_25 = arith.constant 0 : index
    %36 = vector.load %arg8[%c0_24, %c0_25] : memref<40x40xf32, #tpu.memory_space<vmem>>, vector<40x40xf32>
    %c0_26 = arith.constant 0 : index
    %c0_27 = arith.constant 0 : index
    %c0_28 = arith.constant 0 : index
    %37 = vector.load %arg11[%c0_26, %c0_27, %c0_28] : memref<2x1x32xf32, #tpu.memory_space<vmem>>, vector<1x1x32xf32>
    %38 = vector.shape_cast %37 : vector<1x1x32xf32> to vector<1x32xf32>
    %c0_29 = arith.constant 0 : index
    %c0_30 = arith.constant 0 : index
    %c0_31 = arith.constant 0 : index
    %39 = vector.load %arg12[%c0_29, %c0_30, %c0_31] : memref<2x1x32xf32, #tpu.memory_space<vmem>>, vector<1x1x32xf32>
    %40 = vector.shape_cast %39 : vector<1x1x32xf32> to vector<1x32xf32>
    %cst_32 = arith.constant dense<0.000000e+00> : vector<10xf32>
    %41 = vector.multi_reduction <add>, %30, %cst_32 [1] : vector<10x32xf32> to vector<10xf32>
    %42 = vector.shape_cast %41 : vector<10xf32> to vector<10x1xf32>
    %cst_33 = arith.constant 3.200000e+01 : f32
    %43 = vector.broadcast %cst_33 : f32 to vector<10x1xf32>
    %44 = arith.divf %42, %43 : vector<10x1xf32>
    %45 = vector.broadcast %44 : vector<10x1xf32> to vector<10x32xf32>
    %46 = arith.subf %30, %45 : vector<10x32xf32>
    %47 = vector.broadcast %44 : vector<10x1xf32> to vector<10x32xf32>
    %48 = arith.subf %30, %47 : vector<10x32xf32>
    %49 = arith.mulf %46, %48 : vector<10x32xf32>
    %cst_34 = arith.constant dense<0.000000e+00> : vector<10xf32>
    %50 = vector.multi_reduction <add>, %49, %cst_34 [1] : vector<10x32xf32> to vector<10xf32>
    %51 = vector.shape_cast %50 : vector<10xf32> to vector<10x1xf32>
    %cst_35 = arith.constant 3.200000e+01 : f32
    %52 = vector.broadcast %cst_35 : f32 to vector<10x1xf32>
    %53 = arith.divf %51, %52 : vector<10x1xf32>
    %54 = vector.broadcast %44 : vector<10x1xf32> to vector<10x32xf32>
    %55 = arith.subf %30, %54 : vector<10x32xf32>
    %cst_36 = arith.constant 9.99999974E-6 : f32
    %56 = vector.broadcast %cst_36 : f32 to vector<10x1xf32>
    %57 = arith.addf %53, %56 : vector<10x1xf32>
    %58 = math.rsqrt %57 : vector<10x1xf32>
    %59 = vector.broadcast %58 : vector<10x1xf32> to vector<10x32xf32>
    %60 = arith.mulf %55, %59 : vector<10x32xf32>
    %61 = vector.broadcast %38 : vector<1x32xf32> to vector<10x32xf32>
    %62 = arith.mulf %60, %61 : vector<10x32xf32>
    %63 = vector.broadcast %40 : vector<1x32xf32> to vector<10x32xf32>
    %64 = arith.addf %62, %63 : vector<10x32xf32>
    %cst_37 = arith.constant dense<0.000000e+00> : vector<40x32xf32>
    %65 = tpu.matmul %31, %64, %cst_37 {dimension_numbers = #tpu.dot_dimension_numbers<[1], [0], [0], [1], [0, 0, 1, 1], [], []>} : vector<40x10xf32>, vector<10x32xf32>, vector<40x32xf32> -> vector<40x32xf32>
    %cst_38 = arith.constant dense<0.000000e+00> : vector<40x128xf32>
    %66 = tpu.matmul %65, %33, %cst_38 {dimension_numbers = #tpu.dot_dimension_numbers<[1], [0], [0], [1], [0, 0, 1, 1], [], []>} : vector<40x32xf32>, vector<32x128xf32>, vector<40x128xf32> -> vector<40x128xf32>
    %67 = arith.mulf %66, %35 : vector<40x128xf32>
    %c0_39 = arith.constant 0 : index
    %c0_40 = arith.constant 0 : index
    %c0_41 = arith.constant 0 : index
    %68 = vector.load %arg13[%c0_39, %c0_40, %c0_41] : memref<2x128x24xf32, #tpu.memory_space<vmem>>, vector<1x128x24xf32>
    %69 = vector.shape_cast %68 : vector<1x128x24xf32> to vector<128x24xf32>
    %cst_42 = arith.constant dense<0.000000e+00> : vector<40x24xf32>
    %70 = tpu.matmul %67, %69, %cst_42 {dimension_numbers = #tpu.dot_dimension_numbers<[1], [0], [0], [1], [0, 0, 1, 1], [], []>} : vector<40x128xf32>, vector<128x24xf32>, vector<40x24xf32> -> vector<40x24xf32>
    %c0_43 = arith.constant 0 : index
    %c0_44 = arith.constant 0 : index
    %c0_45 = arith.constant 0 : index
    %71 = vector.load %arg14[%c0_43, %c0_44, %c0_45] : memref<2x40x24xf32, #tpu.memory_space<vmem>>, vector<1x40x24xf32>
    %72 = vector.shape_cast %71 : vector<1x40x24xf32> to vector<40x24xf32>
    %73 = arith.addf %70, %72 : vector<40x24xf32>
    %74 = vector.extract_strided_slice %73 {offsets = [0, 0], sizes = [40, 8], strides = [1, 1]} : vector<40x24xf32> to vector<40x8xf32>
    %75 = vector.extract_strided_slice %73 {offsets = [0, 8], sizes = [40, 8], strides = [1, 1]} : vector<40x24xf32> to vector<40x8xf32>
    %76 = vector.extract_strided_slice %73 {offsets = [0, 16], sizes = [40, 8], strides = [1, 1]} : vector<40x24xf32> to vector<40x8xf32>
    %cst_46 = arith.constant dense<0.000000e+00> : vector<40x40xf32>
    %77 = tpu.matmul %74, %75, %cst_46 {dimension_numbers = #tpu.dot_dimension_numbers<[1], [1], [0], [0], [0, 0, 1, 0], [], []>} : vector<40x8xf32>, vector<40x8xf32>, vector<40x40xf32> -> vector<40x40xf32>
    %cst_47 = arith.constant 0.353553385 : f32
    %78 = vector.broadcast %cst_47 : f32 to vector<40x40xf32>
    %79 = arith.mulf %77, %78 : vector<40x40xf32>
    %80 = arith.addf %79, %36 : vector<40x40xf32>
    %cst_48 = arith.constant dense<0xFF800000> : vector<40xf32>
    %81 = vector.multi_reduction <maximumf>, %80, %cst_48 [1] : vector<40x40xf32> to vector<40xf32>
    %82 = vector.shape_cast %81 : vector<40xf32> to vector<40x1xf32>
    %83 = vector.broadcast %82 : vector<40x1xf32> to vector<40x40xf32>
    %84 = arith.subf %80, %83 : vector<40x40xf32>
    %85 = math.exp %84 : vector<40x40xf32>
    %cst_49 = arith.constant dense<0.000000e+00> : vector<40xf32>
    %86 = vector.multi_reduction <add>, %85, %cst_49 [1] : vector<40x40xf32> to vector<40xf32>
    %87 = vector.shape_cast %86 : vector<40xf32> to vector<40x1xf32>
    %88 = tpu.reciprocal %87 {approx = true} : vector<40x1xf32> -> vector<40x1xf32>
    %89 = vector.broadcast %88 : vector<40x1xf32> to vector<40x40xf32>
    %90 = arith.mulf %85, %89 : vector<40x40xf32>
    %cst_50 = arith.constant dense<0.000000e+00> : vector<40x8xf32>
    %91 = tpu.matmul %90, %76, %cst_50 {dimension_numbers = #tpu.dot_dimension_numbers<[1], [0], [0], [1], [0, 0, 1, 1], [], []>} : vector<40x40xf32>, vector<40x8xf32>, vector<40x8xf32> -> vector<40x8xf32>
    %c0_51 = arith.constant 0 : index
    %c0_52 = arith.constant 0 : index
    %c0_53 = arith.constant 0 : index
    %92 = vector.load %arg15[%c0_51, %c0_52, %c0_53] : memref<2x8x128xf32, #tpu.memory_space<vmem>>, vector<1x8x128xf32>
    %93 = vector.shape_cast %92 : vector<1x8x128xf32> to vector<8x128xf32>
    %cst_54 = arith.constant dense<0.000000e+00> : vector<40x128xf32>
    %94 = tpu.matmul %91, %93, %cst_54 {dimension_numbers = #tpu.dot_dimension_numbers<[1], [0], [0], [1], [0, 0, 1, 1], [], []>} : vector<40x8xf32>, vector<8x128xf32>, vector<40x128xf32> -> vector<40x128xf32>
    %95 = arith.mulf %94, %35 : vector<40x128xf32>
    %cst_55 = arith.constant dense<0.000000e+00> : vector<10x128xf32>
    %96 = tpu.matmul %32, %95, %cst_55 {dimension_numbers = #tpu.dot_dimension_numbers<[1], [0], [0], [1], [0, 0, 1, 1], [], []>} : vector<10x40xf32>, vector<40x128xf32>, vector<10x128xf32> -> vector<10x128xf32>
    %cst_56 = arith.constant dense<0.000000e+00> : vector<10x32xf32>
    %97 = tpu.matmul %96, %34, %cst_56 {dimension_numbers = #tpu.dot_dimension_numbers<[1], [0], [0], [1], [0, 0, 1, 1], [], []>} : vector<10x128xf32>, vector<128x32xf32>, vector<10x32xf32> -> vector<10x32xf32>
    %c0_57 = arith.constant 0 : index
    %c0_58 = arith.constant 0 : index
    %c0_59 = arith.constant 0 : index
    %98 = vector.load %arg16[%c0_57, %c0_58, %c0_59] : memref<2x1x32xf32, #tpu.memory_space<vmem>>, vector<1x1x32xf32>
    %99 = vector.shape_cast %98 : vector<1x1x32xf32> to vector<1x32xf32>
    %100 = vector.broadcast %99 : vector<1x32xf32> to vector<10x32xf32>
    %101 = arith.addf %97, %100 : vector<10x32xf32>
    %102 = arith.addf %30, %101 : vector<10x32xf32>
    %c0_60 = arith.constant 0 : index
    %c0_61 = arith.constant 0 : index
    %c0_62 = arith.constant 0 : index
    %103 = vector.load %arg17[%c0_60, %c0_61, %c0_62] : memref<2x1x32xf32, #tpu.memory_space<vmem>>, vector<1x1x32xf32>
    %104 = vector.shape_cast %103 : vector<1x1x32xf32> to vector<1x32xf32>
    %c0_63 = arith.constant 0 : index
    %c0_64 = arith.constant 0 : index
    %c0_65 = arith.constant 0 : index
    %105 = vector.load %arg18[%c0_63, %c0_64, %c0_65] : memref<2x1x32xf32, #tpu.memory_space<vmem>>, vector<1x1x32xf32>
    %106 = vector.shape_cast %105 : vector<1x1x32xf32> to vector<1x32xf32>
    %cst_66 = arith.constant dense<0.000000e+00> : vector<10xf32>
    %107 = vector.multi_reduction <add>, %102, %cst_66 [1] : vector<10x32xf32> to vector<10xf32>
    %108 = vector.shape_cast %107 : vector<10xf32> to vector<10x1xf32>
    %cst_67 = arith.constant 3.200000e+01 : f32
    %109 = vector.broadcast %cst_67 : f32 to vector<10x1xf32>
    %110 = arith.divf %108, %109 : vector<10x1xf32>
    %111 = vector.broadcast %110 : vector<10x1xf32> to vector<10x32xf32>
    %112 = arith.subf %102, %111 : vector<10x32xf32>
    %113 = vector.broadcast %110 : vector<10x1xf32> to vector<10x32xf32>
    %114 = arith.subf %102, %113 : vector<10x32xf32>
    %115 = arith.mulf %112, %114 : vector<10x32xf32>
    %cst_68 = arith.constant dense<0.000000e+00> : vector<10xf32>
    %116 = vector.multi_reduction <add>, %115, %cst_68 [1] : vector<10x32xf32> to vector<10xf32>
    %117 = vector.shape_cast %116 : vector<10xf32> to vector<10x1xf32>
    %cst_69 = arith.constant 3.200000e+01 : f32
    %118 = vector.broadcast %cst_69 : f32 to vector<10x1xf32>
    %119 = arith.divf %117, %118 : vector<10x1xf32>
    %120 = vector.broadcast %110 : vector<10x1xf32> to vector<10x32xf32>
    %121 = arith.subf %102, %120 : vector<10x32xf32>
    %cst_70 = arith.constant 9.99999974E-6 : f32
    %122 = vector.broadcast %cst_70 : f32 to vector<10x1xf32>
    %123 = arith.addf %119, %122 : vector<10x1xf32>
    %124 = math.rsqrt %123 : vector<10x1xf32>
    %125 = vector.broadcast %124 : vector<10x1xf32> to vector<10x32xf32>
    %126 = arith.mulf %121, %125 : vector<10x32xf32>
    %127 = vector.broadcast %104 : vector<1x32xf32> to vector<10x32xf32>
    %128 = arith.mulf %126, %127 : vector<10x32xf32>
    %129 = vector.broadcast %106 : vector<1x32xf32> to vector<10x32xf32>
    %130 = arith.addf %128, %129 : vector<10x32xf32>
    %c0_71 = arith.constant 0 : index
    %c0_72 = arith.constant 0 : index
    %c0_73 = arith.constant 0 : index
    %131 = vector.load %arg19[%c0_71, %c0_72, %c0_73] : memref<2x32x128xf32, #tpu.memory_space<vmem>>, vector<1x32x128xf32>
    %132 = vector.shape_cast %131 : vector<1x32x128xf32> to vector<32x128xf32>
    %cst_74 = arith.constant dense<0.000000e+00> : vector<10x128xf32>
    %133 = tpu.matmul %130, %132, %cst_74 {dimension_numbers = #tpu.dot_dimension_numbers<[1], [0], [0], [1], [0, 0, 1, 1], [], []>} : vector<10x32xf32>, vector<32x128xf32>, vector<10x128xf32> -> vector<10x128xf32>
    %c0_75 = arith.constant 0 : index
    %c0_76 = arith.constant 0 : index
    %c0_77 = arith.constant 0 : index
    %134 = vector.load %arg20[%c0_75, %c0_76, %c0_77] : memref<2x1x128xf32, #tpu.memory_space<vmem>>, vector<1x1x128xf32>
    %135 = vector.shape_cast %134 : vector<1x1x128xf32> to vector<1x128xf32>
    %136 = vector.broadcast %135 : vector<1x128xf32> to vector<10x128xf32>
    %137 = arith.addf %133, %136 : vector<10x128xf32>
    %cst_78 = arith.constant 8.510000e-01 : f32
    %138 = vector.broadcast %cst_78 : f32 to vector<10x128xf32>
    %139 = arith.mulf %138, %137 : vector<10x128xf32>
    %140 = math.tanh %139 : vector<10x128xf32>
    %cst_79 = arith.constant 1.000000e+00 : f32
    %141 = vector.broadcast %cst_79 : f32 to vector<10x128xf32>
    %142 = arith.addf %141, %140 : vector<10x128xf32>
    %cst_80 = arith.constant 5.000000e-01 : f32
    %143 = vector.broadcast %cst_80 : f32 to vector<10x128xf32>
    %144 = arith.mulf %143, %142 : vector<10x128xf32>
    %145 = arith.mulf %137, %144 : vector<10x128xf32>
    %c0_81 = arith.constant 0 : index
    %c0_82 = arith.constant 0 : index
    %c0_83 = arith.constant 0 : index
    %146 = vector.load %arg21[%c0_81, %c0_82, %c0_83] : memref<2x128x32xf32, #tpu.memory_space<vmem>>, vector<1x128x32xf32>
    %147 = vector.shape_cast %146 : vector<1x128x32xf32> to vector<128x32xf32>
    %cst_84 = arith.constant dense<0.000000e+00> : vector<10x32xf32>
    %148 = tpu.matmul %145, %147, %cst_84 {dimension_numbers = #tpu.dot_dimension_numbers<[1], [0], [0], [1], [0, 0, 1, 1], [], []>} : vector<10x128xf32>, vector<128x32xf32>, vector<10x32xf32> -> vector<10x32xf32>
    %149 = arith.addf %102, %148 : vector<10x32xf32>
    %c0_85 = arith.constant 0 : index
    %c0_86 = arith.constant 0 : index
    %c0_87 = arith.constant 0 : index
    %150 = vector.load %arg22[%c0_85, %c0_86, %c0_87] : memref<2x1x32xf32, #tpu.memory_space<vmem>>, vector<1x1x32xf32>
    %151 = vector.shape_cast %150 : vector<1x1x32xf32> to vector<1x32xf32>
    %152 = vector.broadcast %151 : vector<1x32xf32> to vector<10x32xf32>
    %153 = arith.addf %149, %152 : vector<10x32xf32>
    %c1 = arith.constant 1 : index
    %c0_88 = arith.constant 0 : index
    %c0_89 = arith.constant 0 : index
    %154 = vector.load %arg11[%c1, %c0_88, %c0_89] : memref<2x1x32xf32, #tpu.memory_space<vmem>>, vector<1x1x32xf32>
    %155 = vector.shape_cast %154 : vector<1x1x32xf32> to vector<1x32xf32>
    %c1_90 = arith.constant 1 : index
    %c0_91 = arith.constant 0 : index
    %c0_92 = arith.constant 0 : index
    %156 = vector.load %arg12[%c1_90, %c0_91, %c0_92] : memref<2x1x32xf32, #tpu.memory_space<vmem>>, vector<1x1x32xf32>
    %157 = vector.shape_cast %156 : vector<1x1x32xf32> to vector<1x32xf32>
    %cst_93 = arith.constant dense<0.000000e+00> : vector<10xf32>
    %158 = vector.multi_reduction <add>, %153, %cst_93 [1] : vector<10x32xf32> to vector<10xf32>
    %159 = vector.shape_cast %158 : vector<10xf32> to vector<10x1xf32>
    %cst_94 = arith.constant 3.200000e+01 : f32
    %160 = vector.broadcast %cst_94 : f32 to vector<10x1xf32>
    %161 = arith.divf %159, %160 : vector<10x1xf32>
    %162 = vector.broadcast %161 : vector<10x1xf32> to vector<10x32xf32>
    %163 = arith.subf %153, %162 : vector<10x32xf32>
    %164 = vector.broadcast %161 : vector<10x1xf32> to vector<10x32xf32>
    %165 = arith.subf %153, %164 : vector<10x32xf32>
    %166 = arith.mulf %163, %165 : vector<10x32xf32>
    %cst_95 = arith.constant dense<0.000000e+00> : vector<10xf32>
    %167 = vector.multi_reduction <add>, %166, %cst_95 [1] : vector<10x32xf32> to vector<10xf32>
    %168 = vector.shape_cast %167 : vector<10xf32> to vector<10x1xf32>
    %cst_96 = arith.constant 3.200000e+01 : f32
    %169 = vector.broadcast %cst_96 : f32 to vector<10x1xf32>
    %170 = arith.divf %168, %169 : vector<10x1xf32>
    %171 = vector.broadcast %161 : vector<10x1xf32> to vector<10x32xf32>
    %172 = arith.subf %153, %171 : vector<10x32xf32>
    %cst_97 = arith.constant 9.99999974E-6 : f32
    %173 = vector.broadcast %cst_97 : f32 to vector<10x1xf32>
    %174 = arith.addf %170, %173 : vector<10x1xf32>
    %175 = math.rsqrt %174 : vector<10x1xf32>
    %176 = vector.broadcast %175 : vector<10x1xf32> to vector<10x32xf32>
    %177 = arith.mulf %172, %176 : vector<10x32xf32>
    %178 = vector.broadcast %155 : vector<1x32xf32> to vector<10x32xf32>
    %179 = arith.mulf %177, %178 : vector<10x32xf32>
    %180 = vector.broadcast %157 : vector<1x32xf32> to vector<10x32xf32>
    %181 = arith.addf %179, %180 : vector<10x32xf32>
    %cst_98 = arith.constant dense<0.000000e+00> : vector<40x32xf32>
    %182 = tpu.matmul %31, %181, %cst_98 {dimension_numbers = #tpu.dot_dimension_numbers<[1], [0], [0], [1], [0, 0, 1, 1], [], []>} : vector<40x10xf32>, vector<10x32xf32>, vector<40x32xf32> -> vector<40x32xf32>
    %cst_99 = arith.constant dense<0.000000e+00> : vector<40x128xf32>
    %183 = tpu.matmul %182, %33, %cst_99 {dimension_numbers = #tpu.dot_dimension_numbers<[1], [0], [0], [1], [0, 0, 1, 1], [], []>} : vector<40x32xf32>, vector<32x128xf32>, vector<40x128xf32> -> vector<40x128xf32>
    %184 = arith.mulf %183, %35 : vector<40x128xf32>
    %c1_100 = arith.constant 1 : index
    %c0_101 = arith.constant 0 : index
    %c0_102 = arith.constant 0 : index
    %185 = vector.load %arg13[%c1_100, %c0_101, %c0_102] : memref<2x128x24xf32, #tpu.memory_space<vmem>>, vector<1x128x24xf32>
    %186 = vector.shape_cast %185 : vector<1x128x24xf32> to vector<128x24xf32>
    %cst_103 = arith.constant dense<0.000000e+00> : vector<40x24xf32>
    %187 = tpu.matmul %184, %186, %cst_103 {dimension_numbers = #tpu.dot_dimension_numbers<[1], [0], [0], [1], [0, 0, 1, 1], [], []>} : vector<40x128xf32>, vector<128x24xf32>, vector<40x24xf32> -> vector<40x24xf32>
    %c1_104 = arith.constant 1 : index
    %c0_105 = arith.constant 0 : index
    %c0_106 = arith.constant 0 : index
    %188 = vector.load %arg14[%c1_104, %c0_105, %c0_106] : memref<2x40x24xf32, #tpu.memory_space<vmem>>, vector<1x40x24xf32>
    %189 = vector.shape_cast %188 : vector<1x40x24xf32> to vector<40x24xf32>
    %190 = arith.addf %187, %189 : vector<40x24xf32>
    %191 = vector.extract_strided_slice %190 {offsets = [0, 0], sizes = [40, 8], strides = [1, 1]} : vector<40x24xf32> to vector<40x8xf32>
    %192 = vector.extract_strided_slice %190 {offsets = [0, 8], sizes = [40, 8], strides = [1, 1]} : vector<40x24xf32> to vector<40x8xf32>
    %193 = vector.extract_strided_slice %190 {offsets = [0, 16], sizes = [40, 8], strides = [1, 1]} : vector<40x24xf32> to vector<40x8xf32>
    %cst_107 = arith.constant dense<0.000000e+00> : vector<40x40xf32>
    %194 = tpu.matmul %191, %192, %cst_107 {dimension_numbers = #tpu.dot_dimension_numbers<[1], [1], [0], [0], [0, 0, 1, 0], [], []>} : vector<40x8xf32>, vector<40x8xf32>, vector<40x40xf32> -> vector<40x40xf32>
    %cst_108 = arith.constant 0.353553385 : f32
    %195 = vector.broadcast %cst_108 : f32 to vector<40x40xf32>
    %196 = arith.mulf %194, %195 : vector<40x40xf32>
    %197 = arith.addf %196, %36 : vector<40x40xf32>
    %cst_109 = arith.constant dense<0xFF800000> : vector<40xf32>
    %198 = vector.multi_reduction <maximumf>, %197, %cst_109 [1] : vector<40x40xf32> to vector<40xf32>
    %199 = vector.shape_cast %198 : vector<40xf32> to vector<40x1xf32>
    %200 = vector.broadcast %199 : vector<40x1xf32> to vector<40x40xf32>
    %201 = arith.subf %197, %200 : vector<40x40xf32>
    %202 = math.exp %201 : vector<40x40xf32>
    %cst_110 = arith.constant dense<0.000000e+00> : vector<40xf32>
    %203 = vector.multi_reduction <add>, %202, %cst_110 [1] : vector<40x40xf32> to vector<40xf32>
    %204 = vector.shape_cast %203 : vector<40xf32> to vector<40x1xf32>
    %205 = tpu.reciprocal %204 {approx = true} : vector<40x1xf32> -> vector<40x1xf32>
    %206 = vector.broadcast %205 : vector<40x1xf32> to vector<40x40xf32>
    %207 = arith.mulf %202, %206 : vector<40x40xf32>
    %cst_111 = arith.constant dense<0.000000e+00> : vector<40x8xf32>
    %208 = tpu.matmul %207, %193, %cst_111 {dimension_numbers = #tpu.dot_dimension_numbers<[1], [0], [0], [1], [0, 0, 1, 1], [], []>} : vector<40x40xf32>, vector<40x8xf32>, vector<40x8xf32> -> vector<40x8xf32>
    %c1_112 = arith.constant 1 : index
    %c0_113 = arith.constant 0 : index
    %c0_114 = arith.constant 0 : index
    %209 = vector.load %arg15[%c1_112, %c0_113, %c0_114] : memref<2x8x128xf32, #tpu.memory_space<vmem>>, vector<1x8x128xf32>
    %210 = vector.shape_cast %209 : vector<1x8x128xf32> to vector<8x128xf32>
    %cst_115 = arith.constant dense<0.000000e+00> : vector<40x128xf32>
    %211 = tpu.matmul %208, %210, %cst_115 {dimension_numbers = #tpu.dot_dimension_numbers<[1], [0], [0], [1], [0, 0, 1, 1], [], []>} : vector<40x8xf32>, vector<8x128xf32>, vector<40x128xf32> -> vector<40x128xf32>
    %212 = arith.mulf %211, %35 : vector<40x128xf32>
    %cst_116 = arith.constant dense<0.000000e+00> : vector<10x128xf32>
    %213 = tpu.matmul %32, %212, %cst_116 {dimension_numbers = #tpu.dot_dimension_numbers<[1], [0], [0], [1], [0, 0, 1, 1], [], []>} : vector<10x40xf32>, vector<40x128xf32>, vector<10x128xf32> -> vector<10x128xf32>
    %cst_117 = arith.constant dense<0.000000e+00> : vector<10x32xf32>
    %214 = tpu.matmul %213, %34, %cst_117 {dimension_numbers = #tpu.dot_dimension_numbers<[1], [0], [0], [1], [0, 0, 1, 1], [], []>} : vector<10x128xf32>, vector<128x32xf32>, vector<10x32xf32> -> vector<10x32xf32>
    %c1_118 = arith.constant 1 : index
    %c0_119 = arith.constant 0 : index
    %c0_120 = arith.constant 0 : index
    %215 = vector.load %arg16[%c1_118, %c0_119, %c0_120] : memref<2x1x32xf32, #tpu.memory_space<vmem>>, vector<1x1x32xf32>
    %216 = vector.shape_cast %215 : vector<1x1x32xf32> to vector<1x32xf32>
    %217 = vector.broadcast %216 : vector<1x32xf32> to vector<10x32xf32>
    %218 = arith.addf %214, %217 : vector<10x32xf32>
    %219 = arith.addf %153, %218 : vector<10x32xf32>
    %c1_121 = arith.constant 1 : index
    %c0_122 = arith.constant 0 : index
    %c0_123 = arith.constant 0 : index
    %220 = vector.load %arg17[%c1_121, %c0_122, %c0_123] : memref<2x1x32xf32, #tpu.memory_space<vmem>>, vector<1x1x32xf32>
    %221 = vector.shape_cast %220 : vector<1x1x32xf32> to vector<1x32xf32>
    %c1_124 = arith.constant 1 : index
    %c0_125 = arith.constant 0 : index
    %c0_126 = arith.constant 0 : index
    %222 = vector.load %arg18[%c1_124, %c0_125, %c0_126] : memref<2x1x32xf32, #tpu.memory_space<vmem>>, vector<1x1x32xf32>
    %223 = vector.shape_cast %222 : vector<1x1x32xf32> to vector<1x32xf32>
    %cst_127 = arith.constant dense<0.000000e+00> : vector<10xf32>
    %224 = vector.multi_reduction <add>, %219, %cst_127 [1] : vector<10x32xf32> to vector<10xf32>
    %225 = vector.shape_cast %224 : vector<10xf32> to vector<10x1xf32>
    %cst_128 = arith.constant 3.200000e+01 : f32
    %226 = vector.broadcast %cst_128 : f32 to vector<10x1xf32>
    %227 = arith.divf %225, %226 : vector<10x1xf32>
    %228 = vector.broadcast %227 : vector<10x1xf32> to vector<10x32xf32>
    %229 = arith.subf %219, %228 : vector<10x32xf32>
    %230 = vector.broadcast %227 : vector<10x1xf32> to vector<10x32xf32>
    %231 = arith.subf %219, %230 : vector<10x32xf32>
    %232 = arith.mulf %229, %231 : vector<10x32xf32>
    %cst_129 = arith.constant dense<0.000000e+00> : vector<10xf32>
    %233 = vector.multi_reduction <add>, %232, %cst_129 [1] : vector<10x32xf32> to vector<10xf32>
    %234 = vector.shape_cast %233 : vector<10xf32> to vector<10x1xf32>
    %cst_130 = arith.constant 3.200000e+01 : f32
    %235 = vector.broadcast %cst_130 : f32 to vector<10x1xf32>
    %236 = arith.divf %234, %235 : vector<10x1xf32>
    %237 = vector.broadcast %227 : vector<10x1xf32> to vector<10x32xf32>
    %238 = arith.subf %219, %237 : vector<10x32xf32>
    %cst_131 = arith.constant 9.99999974E-6 : f32
    %239 = vector.broadcast %cst_131 : f32 to vector<10x1xf32>
    %240 = arith.addf %236, %239 : vector<10x1xf32>
    %241 = math.rsqrt %240 : vector<10x1xf32>
    %242 = vector.broadcast %241 : vector<10x1xf32> to vector<10x32xf32>
    %243 = arith.mulf %238, %242 : vector<10x32xf32>
    %244 = vector.broadcast %221 : vector<1x32xf32> to vector<10x32xf32>
    %245 = arith.mulf %243, %244 : vector<10x32xf32>
    %246 = vector.broadcast %223 : vector<1x32xf32> to vector<10x32xf32>
    %247 = arith.addf %245, %246 : vector<10x32xf32>
    %c1_132 = arith.constant 1 : index
    %c0_133 = arith.constant 0 : index
    %c0_134 = arith.constant 0 : index
    %248 = vector.load %arg19[%c1_132, %c0_133, %c0_134] : memref<2x32x128xf32, #tpu.memory_space<vmem>>, vector<1x32x128xf32>
    %249 = vector.shape_cast %248 : vector<1x32x128xf32> to vector<32x128xf32>
    %cst_135 = arith.constant dense<0.000000e+00> : vector<10x128xf32>
    %250 = tpu.matmul %247, %249, %cst_135 {dimension_numbers = #tpu.dot_dimension_numbers<[1], [0], [0], [1], [0, 0, 1, 1], [], []>} : vector<10x32xf32>, vector<32x128xf32>, vector<10x128xf32> -> vector<10x128xf32>
    %c1_136 = arith.constant 1 : index
    %c0_137 = arith.constant 0 : index
    %c0_138 = arith.constant 0 : index
    %251 = vector.load %arg20[%c1_136, %c0_137, %c0_138] : memref<2x1x128xf32, #tpu.memory_space<vmem>>, vector<1x1x128xf32>
    %252 = vector.shape_cast %251 : vector<1x1x128xf32> to vector<1x128xf32>
    %253 = vector.broadcast %252 : vector<1x128xf32> to vector<10x128xf32>
    %254 = arith.addf %250, %253 : vector<10x128xf32>
    %cst_139 = arith.constant 8.510000e-01 : f32
    %255 = vector.broadcast %cst_139 : f32 to vector<10x128xf32>
    %256 = arith.mulf %255, %254 : vector<10x128xf32>
    %257 = math.tanh %256 : vector<10x128xf32>
    %cst_140 = arith.constant 1.000000e+00 : f32
    %258 = vector.broadcast %cst_140 : f32 to vector<10x128xf32>
    %259 = arith.addf %258, %257 : vector<10x128xf32>
    %cst_141 = arith.constant 5.000000e-01 : f32
    %260 = vector.broadcast %cst_141 : f32 to vector<10x128xf32>
    %261 = arith.mulf %260, %259 : vector<10x128xf32>
    %262 = arith.mulf %254, %261 : vector<10x128xf32>
    %c1_142 = arith.constant 1 : index
    %c0_143 = arith.constant 0 : index
    %c0_144 = arith.constant 0 : index
    %263 = vector.load %arg21[%c1_142, %c0_143, %c0_144] : memref<2x128x32xf32, #tpu.memory_space<vmem>>, vector<1x128x32xf32>
    %264 = vector.shape_cast %263 : vector<1x128x32xf32> to vector<128x32xf32>
    %cst_145 = arith.constant dense<0.000000e+00> : vector<10x32xf32>
    %265 = tpu.matmul %262, %264, %cst_145 {dimension_numbers = #tpu.dot_dimension_numbers<[1], [0], [0], [1], [0, 0, 1, 1], [], []>} : vector<10x128xf32>, vector<128x32xf32>, vector<10x32xf32> -> vector<10x32xf32>
    %266 = arith.addf %219, %265 : vector<10x32xf32>
    %c1_146 = arith.constant 1 : index
    %c0_147 = arith.constant 0 : index
    %c0_148 = arith.constant 0 : index
    %267 = vector.load %arg22[%c1_146, %c0_147, %c0_148] : memref<2x1x32xf32, #tpu.memory_space<vmem>>, vector<1x1x32xf32>
    %268 = vector.shape_cast %267 : vector<1x1x32xf32> to vector<1x32xf32>
    %269 = vector.broadcast %268 : vector<1x32xf32> to vector<10x32xf32>
    %270 = arith.addf %266, %269 : vector<10x32xf32>
    %271 = vector.extract_strided_slice %270 {offsets = [0, 0], sizes = [2, 32], strides = [1, 1]} : vector<10x32xf32> to vector<2x32xf32>
    %c0_149 = arith.constant 0 : index
    %c0_150 = arith.constant 0 : index
    %272 = vector.load %arg23[%c0_149, %c0_150] : memref<1x32xf32, #tpu.memory_space<vmem>>, vector<1x32xf32>
    %c0_151 = arith.constant 0 : index
    %c0_152 = arith.constant 0 : index
    %273 = vector.load %arg24[%c0_151, %c0_152] : memref<1x32xf32, #tpu.memory_space<vmem>>, vector<1x32xf32>
    %cst_153 = arith.constant dense<0.000000e+00> : vector<2xf32>
    %274 = vector.multi_reduction <add>, %271, %cst_153 [1] : vector<2x32xf32> to vector<2xf32>
    %275 = vector.shape_cast %274 : vector<2xf32> to vector<2x1xf32>
    %cst_154 = arith.constant 3.200000e+01 : f32
    %276 = vector.broadcast %cst_154 : f32 to vector<2x1xf32>
    %277 = arith.divf %275, %276 : vector<2x1xf32>
    %278 = vector.broadcast %277 : vector<2x1xf32> to vector<2x32xf32>
    %279 = arith.subf %271, %278 : vector<2x32xf32>
    %280 = vector.broadcast %277 : vector<2x1xf32> to vector<2x32xf32>
    %281 = arith.subf %271, %280 : vector<2x32xf32>
    %282 = arith.mulf %279, %281 : vector<2x32xf32>
    %cst_155 = arith.constant dense<0.000000e+00> : vector<2xf32>
    %283 = vector.multi_reduction <add>, %282, %cst_155 [1] : vector<2x32xf32> to vector<2xf32>
    %284 = vector.shape_cast %283 : vector<2xf32> to vector<2x1xf32>
    %cst_156 = arith.constant 3.200000e+01 : f32
    %285 = vector.broadcast %cst_156 : f32 to vector<2x1xf32>
    %286 = arith.divf %284, %285 : vector<2x1xf32>
    %287 = vector.broadcast %277 : vector<2x1xf32> to vector<2x32xf32>
    %288 = arith.subf %271, %287 : vector<2x32xf32>
    %cst_157 = arith.constant 9.99999974E-6 : f32
    %289 = vector.broadcast %cst_157 : f32 to vector<2x1xf32>
    %290 = arith.addf %286, %289 : vector<2x1xf32>
    %291 = math.rsqrt %290 : vector<2x1xf32>
    %292 = vector.broadcast %291 : vector<2x1xf32> to vector<2x32xf32>
    %293 = arith.mulf %288, %292 : vector<2x32xf32>
    %294 = vector.broadcast %272 : vector<1x32xf32> to vector<2x32xf32>
    %295 = arith.mulf %293, %294 : vector<2x32xf32>
    %296 = vector.broadcast %273 : vector<1x32xf32> to vector<2x32xf32>
    %297 = arith.addf %295, %296 : vector<2x32xf32>
    %c0_158 = arith.constant 0 : index
    %c0_159 = arith.constant 0 : index
    %298 = vector.load %arg25[%c0_158, %c0_159] : memref<32x16xf32, #tpu.memory_space<vmem>>, vector<32x16xf32>
    %cst_160 = arith.constant dense<0.000000e+00> : vector<2x16xf32>
    %299 = tpu.matmul %297, %298, %cst_160 {dimension_numbers = #tpu.dot_dimension_numbers<[1], [0], [0], [1], [0, 0, 1, 1], [], []>} : vector<2x32xf32>, vector<32x16xf32>, vector<2x16xf32> -> vector<2x16xf32>
    %c0_161 = arith.constant 0 : index
    %c0_162 = arith.constant 0 : index
    %300 = vector.load %arg26[%c0_161, %c0_162] : memref<2x16xf32, #tpu.memory_space<vmem>>, vector<2x16xf32>
    tpu.vector_store %arg26[%c0_161, %c0_162], %299 {strides = array<i32>} : memref<2x16xf32, #tpu.memory_space<vmem>>, vector<2x16xf32>,
    return
  }
}

</mosaic_0001>

<llo_original>
// kernel: visual_transformer_forward.1
$region0: #{visual_transformer_forward.1}
  #allocation0 [shape = 'u32[]', space=smem, size = 0x4, offset = 0x4, fixed_abs, tag = 'smem constant byte address 0x4 - core index']
  #allocation1 [shape = 'u32[144,128]{1,0:T(1,128)}', space=vmem, size = 0x12000, scoped, tag = 'internal scratch']
  %s0 = inlined_call_operand.vmem [shape: f32[10,192], index: 0, kind: input, shape index: {}]
  %s1 = inlined_call_operand.vmem [shape: f32[192,32], index: 1, kind: input, shape index: {}]
  %s2 = inlined_call_operand.vmem [shape: f32[10,32], index: 2, kind: input, shape index: {}]
  %s3 = inlined_call_operand.vmem [shape: f32[40,10], index: 3, kind: input, shape index: {}]
  %s4 = inlined_call_operand.vmem [shape: f32[10,40], index: 4, kind: input, shape index: {}]
  %s5 = inlined_call_operand.vmem [shape: f32[32,128], index: 5, kind: input, shape index: {}]
  %s6 = inlined_call_operand.vmem [shape: f32[128,32], index: 6, kind: input, shape index: {}]
  %s7 = inlined_call_operand.vmem [shape: f32[40,128], index: 7, kind: input, shape index: {}]
  %s8 = inlined_call_operand.vmem [shape: f32[40,40], index: 8, kind: input, shape index: {}]
  %s9 = inlined_call_operand.vmem [shape: f32[1,32], index: 9, kind: input, shape index: {}]
  %s10 = inlined_call_operand.vmem [shape: f32[1,32], index: 10, kind: input, shape index: {}]
  %s11 = inlined_call_operand.vmem [shape: f32[2,1,32], index: 11, kind: input, shape index: {}]
  %s12 = inlined_call_operand.vmem [shape: f32[2,1,32], index: 12, kind: input, shape index: {}]
  %s13 = inlined_call_operand.vmem [shape: f32[2,128,24], index: 13, kind: input, shape index: {}]
  %s14 = inlined_call_operand.vmem [shape: f32[2,40,24], index: 14, kind: input, shape index: {}]
  %s15 = inlined_call_operand.vmem [shape: f32[2,8,128], index: 15, kind: input, shape index: {}]
  %s16 = inlined_call_operand.vmem [shape: f32[2,1,32], index: 16, kind: input, shape index: {}]
  %s17 = inlined_call_operand.vmem [shape: f32[2,1,32], index: 17, kind: input, shape index: {}]
  %s18 = inlined_call_operand.vmem [shape: f32[2,1,32], index: 18, kind: input, shape index: {}]
  %s19 = inlined_call_operand.vmem [shape: f32[2,32,128], index: 19, kind: input, shape index: {}]
  %s20 = inlined_call_operand.vmem [shape: f32[2,1,128], index: 20, kind: input, shape index: {}]
  %s21 = inlined_call_operand.vmem [shape: f32[2,128,32], index: 21, kind: input, shape index: {}]
  %s22 = inlined_call_operand.vmem [shape: f32[2,1,32], index: 22, kind: input, shape index: {}]
  %s23 = inlined_call_operand.vmem [shape: f32[1,32], index: 23, kind: input, shape index: {}]
  %s24 = inlined_call_operand.vmem [shape: f32[1,32], index: 24, kind: input, shape index: {}]
  %s25 = inlined_call_operand.vmem [shape: f32[32,16], index: 25, kind: input, shape index: {}]
  %s26 = inlined_call_operand.hbm [shape: f32[2,16], index: 26, kind: output, shape index: {}]
  %s27 = sld [smem:[#allocation0]]
  $region114: #{visual_transformer_forward.1} parent=0
    _
  %s29 = ssub.s32 1, %s27
  %s30 = scalar_select 0, %s29, %s27
  $region1: #{visual_transformer_forward.1} parent=0
    #allocation2 [shape = 'u8[1024]{0}', space=vmem, size = 0x400, scoped, tag = 'output window, operand 0, single buffered']
    #allocation3 [shape = 's32[1]{0}', space=sflag, size = 0x4, scoped, tag = 'scoped memory for visual_transformer_forward.1']
    %31 = vsyncpa [#allocation3], 0
    // Predicated region
    $region2: #{visual_transformer_forward.1} parent=1 // pred_check
      _
    $region3: #{visual_transformer_forward.1} parent=1 // pred_check_branch
      %33 = sbr.rel (0) target = $region5
    $region4: #{visual_transformer_forward.1} parent=1 // pred_region
      _
    $region5: #{visual_transformer_forward.1} parent=1 // pred_fallthru
      _
    // Predicated region
    $region6: #{visual_transformer_forward.1} parent=1 // pred_check
      _
    $region7: #{visual_transformer_forward.1} parent=1 // pred_check_branch
      %35 = sbr.rel (0) target = $region9
    $region8: #{visual_transformer_forward.1} parent=1 // pred_region
      _
    $region9: #{visual_transformer_forward.1} parent=1 // pred_fallthru
      _
    // Predicated region
    $region10: #{visual_transformer_forward.1} parent=1 // pred_check
      _
    $region11: #{visual_transformer_forward.1} parent=1 // pred_check_branch
      %37 = sbr.rel (0) target = $region13
    $region12: #{visual_transformer_forward.1} parent=1 // pred_region
      _
    $region13: #{visual_transformer_forward.1} parent=1 // pred_fallthru
      _
    // Predicated region
    $region14: #{visual_transformer_forward.1} parent=1 // pred_check
      _
    $region15: #{visual_transformer_forward.1} parent=1 // pred_check_branch
      %39 = sbr.rel (0) target = $region17
    $region16: #{visual_transformer_forward.1} parent=1 // pred_region
      _
    $region17: #{visual_transformer_forward.1} parent=1 // pred_fallthru
      _
    // Predicated region
    $region18: #{visual_transformer_forward.1} parent=1 // pred_check
      _
    $region19: #{visual_transformer_forward.1} parent=1 // pred_check_branch
      %41 = sbr.rel (0) target = $region21
    $region20: #{visual_transformer_forward.1} parent=1 // pred_region
      _
    $region21: #{visual_transformer_forward.1} parent=1 // pred_fallthru
      _
    // Predicated region
    $region22: #{visual_transformer_forward.1} parent=1 // pred_check
      _
    $region23: #{visual_transformer_forward.1} parent=1 // pred_check_branch
      %43 = sbr.rel (0) target = $region25
    $region24: #{visual_transformer_forward.1} parent=1 // pred_region
      _
    $region25: #{visual_transformer_forward.1} parent=1 // pred_fallthru
      _
    // Predicated region
    $region26: #{visual_transformer_forward.1} parent=1 // pred_check
      _
    $region27: #{visual_transformer_forward.1} parent=1 // pred_check_branch
      %45 = sbr.rel (0) target = $region29
    $region28: #{visual_transformer_forward.1} parent=1 // pred_region
      _
    $region29: #{visual_transformer_forward.1} parent=1 // pred_fallthru
      _
    // Predicated region
    $region30: #{visual_transformer_forward.1} parent=1 // pred_check
      _
    $region31: #{visual_transformer_forward.1} parent=1 // pred_check_branch
      %47 = sbr.rel (0) target = $region33
    $region32: #{visual_transformer_forward.1} parent=1 // pred_region
      _
    $region33: #{visual_transformer_forward.1} parent=1 // pred_fallthru
      _
    // Predicated region
    $region34: #{visual_transformer_forward.1} parent=1 // pred_check
      _
    $region35: #{visual_transformer_forward.1} parent=1 // pred_check_branch
      %49 = sbr.rel (0) target = $region37
    $region36: #{visual_transformer_forward.1} parent=1 // pred_region
      _
    $region37: #{visual_transformer_forward.1} parent=1 // pred_fallthru
      _
    // Predicated region
    $region38: #{visual_transformer_forward.1} parent=1 // pred_check
      _
    $region39: #{visual_transformer_forward.1} parent=1 // pred_check_branch
      %51 = sbr.rel (0) target = $region41
    $region40: #{visual_transformer_forward.1} parent=1 // pred_region
      _
    $region41: #{visual_transformer_forward.1} parent=1 // pred_fallthru
      _
    // Predicated region
    $region42: #{visual_transformer_forward.1} parent=1 // pred_check
      _
    $region43: #{visual_transformer_forward.1} parent=1 // pred_check_branch
      %53 = sbr.rel (0) target = $region45
    $region44: #{visual_transformer_forward.1} parent=1 // pred_region
      _
    $region45: #{visual_transformer_forward.1} parent=1 // pred_fallthru
      _
    // Predicated region
    $region46: #{visual_transformer_forward.1} parent=1 // pred_check
      _
    $region47: #{visual_transformer_forward.1} parent=1 // pred_check_branch
      %55 = sbr.rel (0) target = $region49
    $region48: #{visual_transformer_forward.1} parent=1 // pred_region
      _
    $region49: #{visual_transformer_forward.1} parent=1 // pred_fallthru
      _
    // Predicated region
    $region50: #{visual_transformer_forward.1} parent=1 // pred_check
      _
    $region51: #{visual_transformer_forward.1} parent=1 // pred_check_branch
      %57 = sbr.rel (0) target = $region53
    $region52: #{visual_transformer_forward.1} parent=1 // pred_region
      _
    $region53: #{visual_transformer_forward.1} parent=1 // pred_fallthru
      _
    // Predicated region
    $region54: #{visual_transformer_forward.1} parent=1 // pred_check
      _
    $region55: #{visual_transformer_forward.1} parent=1 // pred_check_branch
      %59 = sbr.rel (0) target = $region57
    $region56: #{visual_transformer_forward.1} parent=1 // pred_region
      _
    $region57: #{visual_transformer_forward.1} parent=1 // pred_fallthru
      _
    // Predicated region
    $region58: #{visual_transformer_forward.1} parent=1 // pred_check
      _
    $region59: #{visual_transformer_forward.1} parent=1 // pred_check_branch
      %61 = sbr.rel (0) target = $region61
    $region60: #{visual_transformer_forward.1} parent=1 // pred_region
      _
    $region61: #{visual_transformer_forward.1} parent=1 // pred_fallthru
      _
    // Predicated region
    $region62: #{visual_transformer_forward.1} parent=1 // pred_check
      _
    $region63: #{visual_transformer_forward.1} parent=1 // pred_check_branch
      %63 = sbr.rel (0) target = $region65
    $region64: #{visual_transformer_forward.1} parent=1 // pred_region
      _
    $region65: #{visual_transformer_forward.1} parent=1 // pred_fallthru
      _
    // Predicated region
    $region66: #{visual_transformer_forward.1} parent=1 // pred_check
      _
    $region67: #{visual_transformer_forward.1} parent=1 // pred_check_branch
      %65 = sbr.rel (0) target = $region69
    $region68: #{visual_transformer_forward.1} parent=1 // pred_region
      _
    $region69: #{visual_transformer_forward.1} parent=1 // pred_fallthru
      _
    // Predicated region
    $region70: #{visual_transformer_forward.1} parent=1 // pred_check
      _
    $region71: #{visual_transformer_forward.1} parent=1 // pred_check_branch
      %67 = sbr.rel (0) target = $region73
    $region72: #{visual_transformer_forward.1} parent=1 // pred_region
      _
    $region73: #{visual_transformer_forward.1} parent=1 // pred_fallthru
      _
    // Predicated region
    $region74: #{visual_transformer_forward.1} parent=1 // pred_check
      _
    $region75: #{visual_transformer_forward.1} parent=1 // pred_check_branch
      %69 = sbr.rel (0) target = $region77
    $region76: #{visual_transformer_forward.1} parent=1 // pred_region
      _
    $region77: #{visual_transformer_forward.1} parent=1 // pred_fallthru
      _
    // Predicated region
    $region78: #{visual_transformer_forward.1} parent=1 // pred_check
      _
    $region79: #{visual_transformer_forward.1} parent=1 // pred_check_branch
      %71 = sbr.rel (0) target = $region81
    $region80: #{visual_transformer_forward.1} parent=1 // pred_region
      _
    $region81: #{visual_transformer_forward.1} parent=1 // pred_fallthru
      _
    // Predicated region
    $region82: #{visual_transformer_forward.1} parent=1 // pred_check
      _
    $region83: #{visual_transformer_forward.1} parent=1 // pred_check_branch
      %73 = sbr.rel (0) target = $region85
    $region84: #{visual_transformer_forward.1} parent=1 // pred_region
      _
    $region85: #{visual_transformer_forward.1} parent=1 // pred_fallthru
      _
    // Predicated region
    $region86: #{visual_transformer_forward.1} parent=1 // pred_check
      _
    $region87: #{visual_transformer_forward.1} parent=1 // pred_check_branch
      %75 = sbr.rel (0) target = $region89
    $region88: #{visual_transformer_forward.1} parent=1 // pred_region
      _
    $region89: #{visual_transformer_forward.1} parent=1 // pred_fallthru
      _
    // Predicated region
    $region90: #{visual_transformer_forward.1} parent=1 // pred_check
      _
    $region91: #{visual_transformer_forward.1} parent=1 // pred_check_branch
      %77 = sbr.rel (0) target = $region93
    $region92: #{visual_transformer_forward.1} parent=1 // pred_region
      _
    $region93: #{visual_transformer_forward.1} parent=1 // pred_fallthru
      _
    // Predicated region
    $region94: #{visual_transformer_forward.1} parent=1 // pred_check
      _
    $region95: #{visual_transformer_forward.1} parent=1 // pred_check_branch
      %79 = sbr.rel (0) target = $region97
    $region96: #{visual_transformer_forward.1} parent=1 // pred_region
      _
    $region97: #{visual_transformer_forward.1} parent=1 // pred_fallthru
      _
    // Predicated region
    $region98: #{visual_transformer_forward.1} parent=1 // pred_check
      _
    $region99: #{visual_transformer_forward.1} parent=1 // pred_check_branch
      %81 = sbr.rel (0) target = $region101
    $region100: #{visual_transformer_forward.1} parent=1 // pred_region
      _
    $region101: #{visual_transformer_forward.1} parent=1 // pred_fallthru
      _
    // Predicated region
    $region102: #{visual_transformer_forward.1} parent=1 // pred_check
      _
    $region103: #{visual_transformer_forward.1} parent=1 // pred_check_branch
      %83 = sbr.rel (0) target = $region105
    $region104: #{visual_transformer_forward.1} parent=1 // pred_region
      _
    $region105: #{visual_transformer_forward.1} parent=1 // pred_fallthru
      _
    %v84 = vld [vmem:[%s0] sm:$0xff]
    %v85 = vld [vmem:[%s0 + $0x8] sm:$0xff]
    %v86 = vld [vmem:[%s0 + $0x10] sm:$0x3]
    %v87 = vld [vmem:[%s0 + $0x18] sm:$0x3]
    %v88 = vld [vmem:[%s1] sm:$0xff]
    %v89 = vld [vmem:[%s1 + $0x8] sm:$0xff]
    %v90 = vld [vmem:[%s1 + $0x10] sm:$0xff]
    %v91 = vld [vmem:[%s1 + $0x18] sm:$0xff]
    %v92 = vld [vmem:[%s1 + $0x20] sm:$0xff]
    %v93 = vld [vmem:[%s1 + $0x28] sm:$0xff]
    %v94 = vld [vmem:[%s1 + $0x30] sm:$0xff]
    %v95 = vld [vmem:[%s1 + $0x38] sm:$0xff]
    %v96 = vld [vmem:[%s1 + $0x40] sm:$0xff]
    %v97 = vld [vmem:[%s1 + $0x48] sm:$0xff]
    %v98 = vld [vmem:[%s1 + $0x50] sm:$0xff]
    %v99 = vld [vmem:[%s1 + $0x58] sm:$0xff]
    %v100 = vld [vmem:[%s1 + $0x60] sm:$0xff]
    %v101 = vld [vmem:[%s1 + $0x68] sm:$0xff]
    %v102 = vld [vmem:[%s1 + $0x70] sm:$0xff]
    %v103 = vld [vmem:[%s1 + $0x78] sm:$0xff]
    %v104 = vld [vmem:[%s1 + $0x80] sm:$0xff]
    %v105 = vld [vmem:[%s1 + $0x88] sm:$0xff]
    %v106 = vld [vmem:[%s1 + $0x90] sm:$0xff]
    %v107 = vld [vmem:[%s1 + $0x98] sm:$0xff]
    %v108 = vld [vmem:[%s1 + $0xa0] sm:$0xff]
    %v109 = vld [vmem:[%s1 + $0xa8] sm:$0xff]
    %v110 = vld [vmem:[%s1 + $0xb0] sm:$0xff]
    %v111 = vld [vmem:[%s1 + $0xb8] sm:$0xff]
    %v112 = vld [vmem:[%s2] sm:$0xff]
    %v113 = vld [vmem:[%s2 + $0x8] sm:$0x3]
    %vm114 = vcmask 523264
    %v116 = vsel %vm114, %v85, 0
    %v119 = vsel %vm114, %v87, 0
    %121 = vmatprep.subr.mxu0 0.0
    %122 = vmatpush1.msra.mxu0 %v88
    %123 = vmatprep.subr.mxu0 0.0
    %124 = vmatpush1.msra.mxu0 %v89
    %125 = vmatprep.subr.mxu0 0.0
    %126 = vmatpush1.msra.mxu0 %v90
    %127 = vmatprep.subr.mxu0 0.0
    %128 = vmatpush1.msra.mxu0 %v91
    %129 = vmatprep.subr.mxu0 0.0
    %130 = vmatpush1.msra.mxu0 %v92
    %131 = vmatprep.subr.mxu0 0.0
    %132 = vmatpush1.msra.mxu0 %v93
    %133 = vmatprep.subr.mxu0 0.0
    %134 = vmatpush1.msra.mxu0 %v94
    %135 = vmatprep.subr.mxu0 0.0
    %136 = vmatpush1.msra.mxu0 %v95
    %137 = vmatprep.subr.mxu0 0.0
    %138 = vmatpush1.msra.mxu0 %v96
    %139 = vmatprep.subr.mxu0 0.0
    %140 = vmatpush1.msra.mxu0 %v97
    %141 = vmatprep.subr.mxu0 0.0
    %142 = vmatpush1.msra.mxu0 %v98
    %143 = vmatprep.subr.mxu0 0.0
    %144 = vmatpush1.msra.mxu0 %v99
    %145 = vmatprep.subr.mxu0 0.0
    %146 = vmatpush1.msra.mxu0 %v100
    %147 = vmatprep.subr.mxu0 0.0
    %148 = vmatpush1.msra.mxu0 %v101
    %149 = vmatprep.subr.mxu0 0.0
    %150 = vmatpush1.msra.mxu0 %v102
    %151 = vmatprep.subr.mxu0 0.0
    %152 = vmatpush1.msra.mxu0 %v103
    %153 = vmatprep.subr.mxu0 0.0
    %154 = vmatpush1.msra.mxu0 %v104
    %155 = vmatprep.subr.mxu0 0.0
    %156 = vmatpush1.msra.mxu0 %v105
    %157 = vmatprep.subr.mxu0 0.0
    %158 = vmatpush1.msra.mxu0 %v106
    %159 = vmatprep.subr.mxu0 0.0
    %160 = vmatpush1.msra.mxu0 %v107
    %161 = vmatprep.subr.mxu0 0.0
    %162 = vmatpush1.msra.mxu0 %v108
    %163 = vmatprep.subr.mxu0 0.0
    %164 = vmatpush1.msra.mxu0 %v109
    %165 = vmatprep.subr.mxu0 0.0
    %166 = vmatpush1.msra.mxu0 %v110
    %167 = vmatprep.subr.mxu0 0.0
    %168 = vmatpush1.msra.mxu0 %v111
    %169 = vmatprep.subr.mxu0 0.0
    %170 = vmatpush1.msra.mxu0 0.0
    %171 = vmatprep.subr.mxu0 0.0
    %172 = vmatpush1.msra.mxu0 0.0
    %173 = vmatprep.subr.mxu0 0.0
    %174 = vmatpush1.msra.mxu0 0.0
    %175 = vmatprep.subr.mxu0 0.0
    %176 = vmatpush1.msra.mxu0 0.0
    %177 = vmatprep.subr.mxu0 0.0
    %178 = vmatpush1.msra.mxu0 0.0
    %179 = vmatprep.subr.mxu0 0.0
    %180 = vmatpush1.msra.mxu0 0.0
    %181 = vmatprep.subr.mxu0 0.0
    %182 = vmatpush1.msra.mxu0 0.0
    %183 = vmatprep.subr.mxu0 0.0
    %184 = vmatpush1.msra.mxu0 0.0
    %185 = vmatprep.mubr.f32.mxu0 %v116
    %186 = vmatmul.mubr.f32.gmra.mrb[0].mxu0 %v84
    %v187 = vpop.f32.mrb[0].mxu0
    %v188 = vadd.f32 %v112, %v187
    %v189 = vpop.f32.mrb[0].mxu0
    %190 = vmatprep.mubr.f32.mxu0 %v119
    %191 = vmatmul.mubr.f32.gmra.mrb[0].mxu0 %v86
    %v192 = vpop.f32.mrb[0].mxu0
    %v193 = vadd.f32 %v113, %v192
    %v194 = vpop.f32.mrb[0].mxu0
    %195 = vdwg.mxu0
    %v196 = vld [vmem:[%s9] sm:$0x1]
    %v197 = vld [vmem:[%s10] sm:$0x1]
    %vm198 = vcmask 261120
    %v199 = vsel %vm198, %v188, 0.0
    %200 = vadd.xlane.f32.xlu0 %v199
    %v201 = vpop.xlane.xlu0 %200
    %vm202 = vcmask 254976
    %v203 = vsel %vm202, %v193, 0.0
    %204 = vadd.xlane.f32.xlu0 %v203
    %v205 = vpop.xlane.xlu0 %204
    %v206 = vrcp.pop 32.0
    %v207 = vmul.f32 %v201, %v206
    %v208 = vmul.f32 %v205, %v206
    %v209 = vsub.f32 %v188, %v207
    %v210 = vsub.f32 %v193, %v208
    %v211 = vmul.f32 %v209, %v209
    %v212 = vmul.f32 %v210, %v210
    %v213 = vsel %vm198, %v211, 0.0
    %214 = vadd.xlane.f32.xlu0 %v213
    %v215 = vpop.xlane.xlu0 %214
    %v216 = vsel %vm202, %v212, 0.0
    %217 = vadd.xlane.f32.xlu0 %v216
    %v218 = vpop.xlane.xlu0 %217
    %v219 = vmul.f32 %v215, %v206
    %v220 = vmul.f32 %v218, %v206
    %v221 = vadd.f32 %v219, 1e-05
    %v222 = vadd.f32 %v220, 1e-05
    %v223 = vrsqrt.pop %v221
    %v224 = vrsqrt.pop %v222
    %v225 = vmul.f32 %v209, %v223
    %v226 = vmul.f32 %v210, %v224
    %v228 = vlaneseq
    %v229 = vshrl.u32 %v228, 7
    %v230 = vsub.s32 0, %v229
    %v231 = vrot.slane %v196, %v230
    %v233 = vmul.f32 %v225, %v231
    %v234 = vmul.f32 %v226, %v231
    %v236 = vlaneseq
    %v237 = vshrl.u32 %v236, 7
    %v238 = vsub.s32 0, %v237
    %v239 = vrot.slane %v197, %v238
    %v241 = vadd.f32 %v233, %v239
    %v242 = vadd.f32 %v234, %v239
    %v243 = vld [vmem:[%s3] sm:$0xff]
    %v244 = vld [vmem:[%s3 + $0x8] sm:$0xff]
    %v245 = vld [vmem:[%s3 + $0x10] sm:$0xff]
    %v246 = vld [vmem:[%s3 + $0x18] sm:$0xff]
    %v247 = vld [vmem:[%s3 + $0x20] sm:$0xff]
    %v248 = vld [vmem:[%s4] sm:$0xff]
    %v249 = vld [vmem:[%s4 + $0x8] sm:$0x3]
    %v250 = vld [vmem:[%s5] sm:$0xff]
    %v251 = vld [vmem:[%s5 + $0x8] sm:$0xff]
    %v252 = vld [vmem:[%s5 + $0x10] sm:$0xff]
    %v253 = vld [vmem:[%s5 + $0x18] sm:$0xff]
    %v254 = vld [vmem:[%s6] sm:$0xff]
    %v255 = vld [vmem:[%s6 + $0x8] sm:$0xff]
    %v256 = vld [vmem:[%s6 + $0x10] sm:$0xff]
    %v257 = vld [vmem:[%s6 + $0x18] sm:$0xff]
    %v258 = vld [vmem:[%s6 + $0x20] sm:$0xff]
    %v259 = vld [vmem:[%s6 + $0x28] sm:$0xff]
    %v260 = vld [vmem:[%s6 + $0x30] sm:$0xff]
    %v261 = vld [vmem:[%s6 + $0x38] sm:$0xff]
    %v262 = vld [vmem:[%s6 + $0x40] sm:$0xff]
    %v263 = vld [vmem:[%s6 + $0x48] sm:$0xff]
    %v264 = vld [vmem:[%s6 + $0x50] sm:$0xff]
    %v265 = vld [vmem:[%s6 + $0x58] sm:$0xff]
    %v266 = vld [vmem:[%s6 + $0x60] sm:$0xff]
    %v267 = vld [vmem:[%s6 + $0x68] sm:$0xff]
    %v268 = vld [vmem:[%s6 + $0x70] sm:$0xff]
    %v269 = vld [vmem:[%s6 + $0x78] sm:$0xff]
    %v270 = vld [vmem:[%s7] sm:$0xff]
    %v271 = vld [vmem:[%s7 + $0x8] sm:$0xff]
    %v272 = vld [vmem:[%s7 + $0x10] sm:$0xff]
    %v273 = vld [vmem:[%s7 + $0x18] sm:$0xff]
    %v274 = vld [vmem:[%s7 + $0x20] sm:$0xff]
    %v275 = vld [vmem:[%s8] sm:$0xff]
    %v276 = vld [vmem:[%s8 + $0x8] sm:$0xff]
    %v277 = vld [vmem:[%s8 + $0x10] sm:$0xff]
    %v278 = vld [vmem:[%s8 + $0x18] sm:$0xff]
    %v279 = vld [vmem:[%s8 + $0x20] sm:$0xff]
    %v280 = vld [vmem:[%s11] sm:$0x1]
    %v281 = vld [vmem:[%s12] sm:$0x1]
    %v282 = vsel %vm198, %v241, 0.0
    %283 = vadd.xlane.f32.xlu0 %v282
    %v284 = vpop.xlane.xlu0 %283
    %v285 = vsel %vm202, %v242, 0.0
    %286 = vadd.xlane.f32.xlu0 %v285
    %v287 = vpop.xlane.xlu0 %286
    %v288 = vmul.f32 %v284, %v206
    %v289 = vmul.f32 %v287, %v206
    %v290 = vsub.f32 %v241, %v288
    %v291 = vsub.f32 %v242, %v289
    %v292 = vmul.f32 %v290, %v290
    %v293 = vmul.f32 %v291, %v291
    %v294 = vsel %vm198, %v292, 0.0
    %295 = vadd.xlane.f32.xlu0 %v294
    %v296 = vpop.xlane.xlu0 %295
    %v297 = vsel %vm202, %v293, 0.0
    %298 = vadd.xlane.f32.xlu0 %v297
    %v299 = vpop.xlane.xlu0 %298
    %v300 = vmul.f32 %v296, %v206
    %v301 = vmul.f32 %v299, %v206
    %v302 = vadd.f32 %v300, 1e-05
    %v303 = vadd.f32 %v301, 1e-05
    %v304 = vrsqrt.pop %v302
    %v305 = vrsqrt.pop %v303
    %v306 = vmul.f32 %v290, %v304
    %v307 = vmul.f32 %v291, %v305
    %v309 = vlaneseq
    %v310 = vshrl.u32 %v309, 7
    %v311 = vsub.s32 0, %v310
    %v312 = vrot.slane %v280, %v311
    %v314 = vmul.f32 %v306, %v312
    %v315 = vmul.f32 %v307, %v312
    %v317 = vlaneseq
    %v318 = vshrl.u32 %v317, 7
    %v319 = vsub.s32 0, %v318
    %v320 = vrot.slane %v281, %v319
    %v322 = vadd.f32 %v314, %v320
    %v323 = vadd.f32 %v315, %v320
    %vm324 = vcmask 80896
    %v326 = vsel %vm324, %v243, 0
    %v329 = vsel %vm324, %v244, 0
    %v332 = vsel %vm324, %v245, 0
    %v335 = vsel %vm324, %v246, 0
    %v338 = vsel %vm324, %v247, 0
    %vm340 = vcmask 1041408
    %v342 = vsel %vm340, %v323, 0
    %344 = vmatprep.subr.mxu0 0.0
    %345 = vmatpush1.msra.mxu0 %v322
    %346 = vmatprep.subr.mxu0 0.0
    %347 = vmatpush1.msra.mxu0 %v342
    %348 = vmatprep.subr.mxu0 0.0
    %349 = vmatpush1.msra.mxu0 0.0
    %350 = vmatprep.subr.mxu0 0.0
    %351 = vmatpush1.msra.mxu0 0.0
    %352 = vmatprep.subr.mxu0 0.0
    %353 = vmatpush1.msra.mxu0 0.0
    %354 = vmatprep.subr.mxu0 0.0
    %355 = vmatpush1.msra.mxu0 0.0
    %356 = vmatprep.subr.mxu0 0.0
    %357 = vmatpush1.msra.mxu0 0.0
    %358 = vmatprep.subr.mxu0 0.0
    %359 = vmatpush1.msra.mxu0 0.0
    %360 = vmatprep.subr.mxu0 0.0
    %361 = vmatpush1.msra.mxu0 0.0
    %362 = vmatprep.subr.mxu0 0.0
    %363 = vmatpush1.msra.mxu0 0.0
    %364 = vmatprep.subr.mxu0 0.0
    %365 = vmatpush1.msra.mxu0 0.0
    %366 = vmatprep.subr.mxu0 0.0
    %367 = vmatpush1.msra.mxu0 0.0
    %368 = vmatprep.subr.mxu0 0.0
    %369 = vmatpush1.msra.mxu0 0.0
    %370 = vmatprep.subr.mxu0 0.0
    %371 = vmatpush1.msra.mxu0 0.0
    %372 = vmatprep.subr.mxu0 0.0
    %373 = vmatpush1.msra.mxu0 0.0
    %374 = vmatprep.subr.mxu0 0.0
    %375 = vmatpush1.msra.mxu0 0.0
    %376 = vmatprep.subr.mxu0 0.0
    %377 = vmatpush1.msra.mxu0 0.0
    %378 = vmatprep.subr.mxu0 0.0
    %379 = vmatpush1.msra.mxu0 0.0
    %380 = vmatprep.subr.mxu0 0.0
    %381 = vmatpush1.msra.mxu0 0.0
    %382 = vmatprep.subr.mxu0 0.0
    %383 = vmatpush1.msra.mxu0 0.0
    %384 = vmatprep.subr.mxu0 0.0
    %385 = vmatpush1.msra.mxu0 0.0
    %386 = vmatprep.subr.mxu0 0.0
    %387 = vmatpush1.msra.mxu0 0.0
    %388 = vmatprep.subr.mxu0 0.0
    %389 = vmatpush1.msra.mxu0 0.0
    %390 = vmatprep.subr.mxu0 0.0
    %391 = vmatpush1.msra.mxu0 0.0
    %392 = vmatprep.subr.mxu0 0.0
    %393 = vmatpush1.msra.mxu0 0.0
    %394 = vmatprep.subr.mxu0 0.0
    %395 = vmatpush1.msra.mxu0 0.0
    %396 = vmatprep.subr.mxu0 0.0
    %397 = vmatpush1.msra.mxu0 0.0
    %398 = vmatprep.subr.mxu0 0.0
    %399 = vmatpush1.msra.mxu0 0.0
    %400 = vmatprep.subr.mxu0 0.0
    %401 = vmatpush1.msra.mxu0 0.0
    %402 = vmatprep.subr.mxu0 0.0
    %403 = vmatpush1.msra.mxu0 0.0
    %404 = vmatprep.subr.mxu0 0.0
    %405 = vmatpush1.msra.mxu0 0.0
    %406 = vmatprep.subr.mxu0 0.0
    %407 = vmatpush1.msra.mxu0 0.0
    %408 = vmatprep.mubr.f32.mxu0 0.0
    %409 = vmatmul.mubr.f32.gmra.mrb[0].mxu0 %v326
    %v410 = vpop.f32.mrb[0].mxu0
    %v411 = vadd.f32 0.0, %v410
    %v412 = vpop.f32.mrb[0].mxu0
    %413 = vmatprep.mubr.f32.mxu0 0.0
    %414 = vmatmul.mubr.f32.gmra.mrb[0].mxu0 %v329
    %v415 = vpop.f32.mrb[0].mxu0
    %v416 = vadd.f32 0.0, %v415
    %v417 = vpop.f32.mrb[0].mxu0
    %418 = vmatprep.mubr.f32.mxu0 0.0
    %419 = vmatmul.mubr.f32.gmra.mrb[0].mxu0 %v332
    %v420 = vpop.f32.mrb[0].mxu0
    %v421 = vadd.f32 0.0, %v420
    %v422 = vpop.f32.mrb[0].mxu0
    %423 = vmatprep.mubr.f32.mxu0 0.0
    %424 = vmatmul.mubr.f32.gmra.mrb[0].mxu0 %v335
    %v425 = vpop.f32.mrb[0].mxu0
    %v426 = vadd.f32 0.0, %v425
    %v427 = vpop.f32.mrb[0].mxu0
    %428 = vmatprep.mubr.f32.mxu0 0.0
    %429 = vmatmul.mubr.f32.gmra.mrb[0].mxu0 %v338
    %v430 = vpop.f32.mrb[0].mxu0
    %v431 = vadd.f32 0.0, %v430
    %v432 = vpop.f32.mrb[0].mxu0
    %433 = vdwg.mxu0
    %v435 = vsel %vm198, %v411, 0
    %v438 = vsel %vm198, %v416, 0
    %v441 = vsel %vm198, %v421, 0
    %v444 = vsel %vm198, %v426, 0
    %v447 = vsel %vm198, %v431, 0
    %449 = vmatprep.subr.mxu0 0.0
    %450 = vmatpush1.msra.mxu0 %v250
    %451 = vmatprep.subr.mxu0 0.0
    %452 = vmatpush1.msra.mxu0 %v251
    %453 = vmatprep.subr.mxu0 0.0
    %454 = vmatpush1.msra.mxu0 %v252
    %455 = vmatprep.subr.mxu0 0.0
    %456 = vmatpush1.msra.mxu0 %v253
    %457 = vmatprep.subr.mxu0 0.0
    %458 = vmatpush1.msra.mxu0 0.0
    %459 = vmatprep.subr.mxu0 0.0
    %460 = vmatpush1.msra.mxu0 0.0
    %461 = vmatprep.subr.mxu0 0.0
    %462 = vmatpush1.msra.mxu0 0.0
    %463 = vmatprep.subr.mxu0 0.0
    %464 = vmatpush1.msra.mxu0 0.0
    %465 = vmatprep.subr.mxu0 0.0
    %466 = vmatpush1.msra.mxu0 0.0
    %467 = vmatprep.subr.mxu0 0.0
    %468 = vmatpush1.msra.mxu0 0.0
    %469 = vmatprep.subr.mxu0 0.0
    %470 = vmatpush1.msra.mxu0 0.0
    %471 = vmatprep.subr.mxu0 0.0
    %472 = vmatpush1.msra.mxu0 0.0
    %473 = vmatprep.subr.mxu0 0.0
    %474 = vmatpush1.msra.mxu0 0.0
    %475 = vmatprep.subr.mxu0 0.0
    %476 = vmatpush1.msra.mxu0 0.0
    %477 = vmatprep.subr.mxu0 0.0
    %478 = vmatpush1.msra.mxu0 0.0
    %479 = vmatprep.subr.mxu0 0.0
    %480 = vmatpush1.msra.mxu0 0.0
    %481 = vmatprep.subr.mxu0 0.0
    %482 = vmatpush1.msra.mxu0 0.0
    %483 = vmatprep.subr.mxu0 0.0
    %484 = vmatpush1.msra.mxu0 0.0
    %485 = vmatprep.subr.mxu0 0.0
    %486 = vmatpush1.msra.mxu0 0.0
    %487 = vmatprep.subr.mxu0 0.0
    %488 = vmatpush1.msra.mxu0 0.0
    %489 = vmatprep.subr.mxu0 0.0
    %490 = vmatpush1.msra.mxu0 0.0
    %491 = vmatprep.subr.mxu0 0.0
    %492 = vmatpush1.msra.mxu0 0.0
    %493 = vmatprep.subr.mxu0 0.0
    %494 = vmatpush1.msra.mxu0 0.0
    %495 = vmatprep.subr.mxu0 0.0
    %496 = vmatpush1.msra.mxu0 0.0
    %497 = vmatprep.subr.mxu0 0.0
    %498 = vmatpush1.msra.mxu0 0.0
    %499 = vmatprep.subr.mxu0 0.0
    %500 = vmatpush1.msra.mxu0 0.0
    %501 = vmatprep.subr.mxu0 0.0
    %502 = vmatpush1.msra.mxu0 0.0
    %503 = vmatprep.subr.mxu0 0.0
    %504 = vmatpush1.msra.mxu0 0.0
    %505 = vmatprep.subr.mxu0 0.0
    %506 = vmatpush1.msra.mxu0 0.0
    %507 = vmatprep.subr.mxu0 0.0
    %508 = vmatpush1.msra.mxu0 0.0
    %509 = vmatprep.subr.mxu0 0.0
    %510 = vmatpush1.msra.mxu0 0.0
    %511 = vmatprep.subr.mxu0 0.0
    %512 = vmatpush1.msra.mxu0 0.0
    %513 = vmatprep.mubr.f32.mxu0 0.0
    %514 = vmatmul.mubr.f32.gmra.mrb[0].mxu0 %v435
    %v515 = vpop.f32.mrb[0].mxu0
    %v516 = vadd.f32 0.0, %v515
    %v517 = vpop.f32.mrb[0].mxu0
    %518 = vmatprep.mubr.f32.mxu0 0.0
    %519 = vmatmul.mubr.f32.gmra.mrb[0].mxu0 %v438
    %v520 = vpop.f32.mrb[0].mxu0
    %v521 = vadd.f32 0.0, %v520
    %v522 = vpop.f32.mrb[0].mxu0
    %523 = vmatprep.mubr.f32.mxu0 0.0
    %524 = vmatmul.mubr.f32.gmra.mrb[0].mxu0 %v441
    %v525 = vpop.f32.mrb[0].mxu0
    %v526 = vadd.f32 0.0, %v525
    %v527 = vpop.f32.mrb[0].mxu0
    %528 = vmatprep.mubr.f32.mxu0 0.0
    %529 = vmatmul.mubr.f32.gmra.mrb[0].mxu0 %v444
    %v530 = vpop.f32.mrb[0].mxu0
    %v531 = vadd.f32 0.0, %v530
    %v532 = vpop.f32.mrb[0].mxu0
    %533 = vmatprep.mubr.f32.mxu0 0.0
    %534 = vmatmul.mubr.f32.gmra.mrb[0].mxu0 %v447
    %v535 = vpop.f32.mrb[0].mxu0
    %v536 = vadd.f32 0.0, %v535
    %v537 = vpop.f32.mrb[0].mxu0
    %538 = vdwg.mxu0
    %v539 = vmul.f32 %v516, %v270
    %v540 = vmul.f32 %v521, %v271
    %v541 = vmul.f32 %v526, %v272
    %v542 = vmul.f32 %v531, %v273
    %v543 = vmul.f32 %v536, %v274
    %v544 = vld [vmem:[%s13] sm:$0xff]
    %v545 = vld [vmem:[%s13 + $0x8] sm:$0xff]
    %v546 = vld [vmem:[%s13 + $0x10] sm:$0xff]
    %v547 = vld [vmem:[%s13 + $0x18] sm:$0xff]
    %v548 = vld [vmem:[%s13 + $0x20] sm:$0xff]
    %v549 = vld [vmem:[%s13 + $0x28] sm:$0xff]
    %v550 = vld [vmem:[%s13 + $0x30] sm:$0xff]
    %v551 = vld [vmem:[%s13 + $0x38] sm:$0xff]
    %v552 = vld [vmem:[%s13 + $0x40] sm:$0xff]
    %v553 = vld [vmem:[%s13 + $0x48] sm:$0xff]
    %v554 = vld [vmem:[%s13 + $0x50] sm:$0xff]
    %v555 = vld [vmem:[%s13 + $0x58] sm:$0xff]
    %v556 = vld [vmem:[%s13 + $0x60] sm:$0xff]
    %v557 = vld [vmem:[%s13 + $0x68] sm:$0xff]
    %v558 = vld [vmem:[%s13 + $0x70] sm:$0xff]
    %v559 = vld [vmem:[%s13 + $0x78] sm:$0xff]
    %v560 = vld [vmem:[%s14] sm:$0xff]
    %v561 = vld [vmem:[%s14 + $0x8] sm:$0xff]
    %v562 = vld [vmem:[%s14 + $0x10] sm:$0xff]
    %v563 = vld [vmem:[%s14 + $0x18] sm:$0xff]
    %v564 = vld [vmem:[%s14 + $0x20] sm:$0xff]
    %565 = vmatprep.subr.mxu0 0.0
    %566 = vmatpush1.msra.mxu0 %v544
    %567 = vmatprep.subr.mxu0 0.0
    %568 = vmatpush1.msra.mxu0 %v545
    %569 = vmatprep.subr.mxu0 0.0
    %570 = vmatpush1.msra.mxu0 %v546
    %571 = vmatprep.subr.mxu0 0.0
    %572 = vmatpush1.msra.mxu0 %v547
    %573 = vmatprep.subr.mxu0 0.0
    %574 = vmatpush1.msra.mxu0 %v548
    %575 = vmatprep.subr.mxu0 0.0
    %576 = vmatpush1.msra.mxu0 %v549
    %577 = vmatprep.subr.mxu0 0.0
    %578 = vmatpush1.msra.mxu0 %v550
    %579 = vmatprep.subr.mxu0 0.0
    %580 = vmatpush1.msra.mxu0 %v551
    %581 = vmatprep.subr.mxu0 0.0
    %582 = vmatpush1.msra.mxu0 %v552
    %583 = vmatprep.subr.mxu0 0.0
    %584 = vmatpush1.msra.mxu0 %v553
    %585 = vmatprep.subr.mxu0 0.0
    %586 = vmatpush1.msra.mxu0 %v554
    %587 = vmatprep.subr.mxu0 0.0
    %588 = vmatpush1.msra.mxu0 %v555
    %589 = vmatprep.subr.mxu0 0.0
    %590 = vmatpush1.msra.mxu0 %v556
    %591 = vmatprep.subr.mxu0 0.0
    %592 = vmatpush1.msra.mxu0 %v557
    %593 = vmatprep.subr.mxu0 0.0
    %594 = vmatpush1.msra.mxu0 %v558
    %595 = vmatprep.subr.mxu0 0.0
    %596 = vmatpush1.msra.mxu0 %v559
    %597 = vmatprep.subr.mxu0 0.0
    %598 = vmatpush1.msra.mxu0 0.0
    %599 = vmatprep.subr.mxu0 0.0
    %600 = vmatpush1.msra.mxu0 0.0
    %601 = vmatprep.subr.mxu0 0.0
    %602 = vmatpush1.msra.mxu0 0.0
    %603 = vmatprep.subr.mxu0 0.0
    %604 = vmatpush1.msra.mxu0 0.0
    %605 = vmatprep.subr.mxu0 0.0
    %606 = vmatpush1.msra.mxu0 0.0
    %607 = vmatprep.subr.mxu0 0.0
    %608 = vmatpush1.msra.mxu0 0.0
    %609 = vmatprep.subr.mxu0 0.0
    %610 = vmatpush1.msra.mxu0 0.0
    %611 = vmatprep.subr.mxu0 0.0
    %612 = vmatpush1.msra.mxu0 0.0
    %613 = vmatprep.subr.mxu0 0.0
    %614 = vmatpush1.msra.mxu0 0.0
    %615 = vmatprep.subr.mxu0 0.0
    %616 = vmatpush1.msra.mxu0 0.0
    %617 = vmatprep.subr.mxu0 0.0
    %618 = vmatpush1.msra.mxu0 0.0
    %619 = vmatprep.subr.mxu0 0.0
    %620 = vmatpush1.msra.mxu0 0.0
    %621 = vmatprep.subr.mxu0 0.0
    %622 = vmatpush1.msra.mxu0 0.0
    %623 = vmatprep.subr.mxu0 0.0
    %624 = vmatpush1.msra.mxu0 0.0
    %625 = vmatprep.subr.mxu0 0.0
    %626 = vmatpush1.msra.mxu0 0.0
    %627 = vmatprep.subr.mxu0 0.0
    %628 = vmatpush1.msra.mxu0 0.0
    %629 = vmatprep.mubr.f32.mxu0 0.0
    %630 = vmatmul.mubr.f32.gmra.mrb[0].mxu0 %v539
    %v631 = vpop.f32.mrb[0].mxu0
    %v632 = vadd.f32 %v560, %v631
    %v633 = vpop.f32.mrb[0].mxu0
    %634 = vmatprep.mubr.f32.mxu0 0.0
    %635 = vmatmul.mubr.f32.gmra.mrb[0].mxu0 %v540
    %v636 = vpop.f32.mrb[0].mxu0
    %v637 = vadd.f32 %v561, %v636
    %v638 = vpop.f32.mrb[0].mxu0
    %639 = vmatprep.mubr.f32.mxu0 0.0
    %640 = vmatmul.mubr.f32.gmra.mrb[0].mxu0 %v541
    %v641 = vpop.f32.mrb[0].mxu0
    %v642 = vadd.f32 %v562, %v641
    %v643 = vpop.f32.mrb[0].mxu0
    %644 = vmatprep.mubr.f32.mxu0 0.0
    %645 = vmatmul.mubr.f32.gmra.mrb[0].mxu0 %v542
    %v646 = vpop.f32.mrb[0].mxu0
    %v647 = vadd.f32 %v563, %v646
    %v648 = vpop.f32.mrb[0].mxu0
    %649 = vmatprep.mubr.f32.mxu0 0.0
    %650 = vmatmul.mubr.f32.gmra.mrb[0].mxu0 %v543
    %v651 = vpop.f32.mrb[0].mxu0
    %v652 = vadd.f32 %v564, %v651
    %v653 = vpop.f32.mrb[0].mxu0
    %654 = vdwg.mxu0
    %660 = vrot.lane.b32.xlu0 %v632, 120
    %v661 = vpop.permute.xlu0 %660
    %662 = vrot.lane.b32.xlu0 %v637, 120
    %v663 = vpop.permute.xlu0 %662
    %664 = vrot.lane.b32.xlu0 %v642, 120
    %v665 = vpop.permute.xlu0 %664
    %666 = vrot.lane.b32.xlu0 %v647, 120
    %v667 = vpop.permute.xlu0 %666
    %668 = vrot.lane.b32.xlu0 %v652, 120
    %v669 = vpop.permute.xlu0 %668
    %vm670 = vcmask 64512
    %v671 = vsel %vm670, %v632, 0
    %v673 = vsel %vm670, %v637, 0
    %v675 = vsel %vm670, %v642, 0
    %v677 = vsel %vm670, %v647, 0
    %v679 = vsel %vm670, %v652, 0
    %v681 = vsel %vm670, %v661, 0
    %v683 = vsel %vm670, %v663, 0
    %v685 = vsel %vm670, %v665, 0
    %v687 = vsel %vm670, %v667, 0
    %v689 = vsel %vm670, %v669, 0
    %691 = vmatprep.subr.mxu0 0.0
    %692 = vmatpush1.xpose.msra.mxu0 %v681
    %693 = vmatprep.subr.mxu0 0.0
    %694 = vmatpush1.xpose.msra.mxu0 %v683
    %695 = vmatprep.subr.mxu0 0.0
    %696 = vmatpush1.xpose.msra.mxu0 %v685
    %697 = vmatprep.subr.mxu0 0.0
    %698 = vmatpush1.xpose.msra.mxu0 %v687
    %699 = vmatprep.subr.mxu0 0.0
    %700 = vmatpush1.xpose.msra.mxu0 %v689
    %701 = vmatprep.subr.mxu0 0.0
    %702 = vmatpush1.xpose.msra.mxu0 0.0
    %703 = vmatprep.subr.mxu0 0.0
    %704 = vmatpush1.xpose.msra.mxu0 0.0
    %705 = vmatprep.subr.mxu0 0.0
    %706 = vmatpush1.xpose.msra.mxu0 0.0
    %707 = vmatprep.subr.mxu0 0.0
    %708 = vmatpush1.xpose.msra.mxu0 0.0
    %709 = vmatprep.subr.mxu0 0.0
    %710 = vmatpush1.xpose.msra.mxu0 0.0
    %711 = vmatprep.subr.mxu0 0.0
    %712 = vmatpush1.xpose.msra.mxu0 0.0
    %713 = vmatprep.subr.mxu0 0.0
    %714 = vmatpush1.xpose.msra.mxu0 0.0
    %715 = vmatprep.subr.mxu0 0.0
    %716 = vmatpush1.xpose.msra.mxu0 0.0
    %717 = vmatprep.subr.mxu0 0.0
    %718 = vmatpush1.xpose.msra.mxu0 0.0
    %719 = vmatprep.subr.mxu0 0.0
    %720 = vmatpush1.xpose.msra.mxu0 0.0
    %721 = vmatprep.subr.mxu0 0.0
    %722 = vmatpush1.xpose.msra.mxu0 0.0
    %723 = vmatprep.subr.mxu0 0.0
    %724 = vmatpush1.xpose.msra.mxu0 0.0
    %725 = vmatprep.subr.mxu0 0.0
    %726 = vmatpush1.xpose.msra.mxu0 0.0
    %727 = vmatprep.subr.mxu0 0.0
    %728 = vmatpush1.xpose.msra.mxu0 0.0
    %729 = vmatprep.subr.mxu0 0.0
    %730 = vmatpush1.xpose.msra.mxu0 0.0
    %731 = vmatprep.subr.mxu0 0.0
    %732 = vmatpush1.xpose.msra.mxu0 0.0
    %733 = vmatprep.subr.mxu0 0.0
    %734 = vmatpush1.xpose.msra.mxu0 0.0
    %735 = vmatprep.subr.mxu0 0.0
    %736 = vmatpush1.xpose.msra.mxu0 0.0
    %737 = vmatprep.subr.mxu0 0.0
    %738 = vmatpush1.xpose.msra.mxu0 0.0
    %739 = vmatprep.subr.mxu0 0.0
    %740 = vmatpush1.xpose.msra.mxu0 0.0
    %741 = vmatprep.subr.mxu0 0.0
    %742 = vmatpush1.xpose.msra.mxu0 0.0
    %743 = vmatprep.subr.mxu0 0.0
    %744 = vmatpush1.xpose.msra.mxu0 0.0
    %745 = vmatprep.subr.mxu0 0.0
    %746 = vmatpush1.xpose.msra.mxu0 0.0
    %747 = vmatprep.subr.mxu0 0.0
    %748 = vmatpush1.xpose.msra.mxu0 0.0
    %749 = vmatprep.subr.mxu0 0.0
    %750 = vmatpush1.xpose.msra.mxu0 0.0
    %751 = vmatprep.subr.mxu0 0.0
    %752 = vmatpush1.xpose.msra.mxu0 0.0
    %753 = vmatprep.subr.mxu0 0.0
    %754 = vmatpush1.xpose.msra.mxu0 0.0
    %755 = vmatprep.mubr.f32.mxu0 0.0
    %756 = vmatmul.mubr.f32.gmra.mrb[0].mxu0 %v671
    %v757 = vpop.f32.mrb[0].mxu0
    %v758 = vadd.f32 0.0, %v757
    %v759 = vpop.f32.mrb[0].mxu0
    %760 = vmatprep.mubr.f32.mxu0 0.0
    %761 = vmatmul.mubr.f32.gmra.mrb[0].mxu0 %v673
    %v762 = vpop.f32.mrb[0].mxu0
    %v763 = vadd.f32 0.0, %v762
    %v764 = vpop.f32.mrb[0].mxu0
    %765 = vmatprep.mubr.f32.mxu0 0.0
    %766 = vmatmul.mubr.f32.gmra.mrb[0].mxu0 %v675
    %v767 = vpop.f32.mrb[0].mxu0
    %v768 = vadd.f32 0.0, %v767
    %v769 = vpop.f32.mrb[0].mxu0
    %770 = vmatprep.mubr.f32.mxu0 0.0
    %771 = vmatmul.mubr.f32.gmra.mrb[0].mxu0 %v677
    %v772 = vpop.f32.mrb[0].mxu0
    %v773 = vadd.f32 0.0, %v772
    %v774 = vpop.f32.mrb[0].mxu0
    %775 = vmatprep.mubr.f32.mxu0 0.0
    %776 = vmatmul.mubr.f32.gmra.mrb[0].mxu0 %v679
    %v777 = vpop.f32.mrb[0].mxu0
    %v778 = vadd.f32 0.0, %v777
    %v779 = vpop.f32.mrb[0].mxu0
    %780 = vdwg.mxu0
    %v781 = vmul.f32 %v758, 0.35355338
    %v782 = vmul.f32 %v763, 0.35355338
    %v783 = vmul.f32 %v768, 0.35355338
    %v784 = vmul.f32 %v773, 0.35355338
    %v785 = vmul.f32 %v778, 0.35355338
    %v786 = vadd.f32 %v781, %v275
    %v787 = vadd.f32 %v782, %v276
    %v788 = vadd.f32 %v783, %v277
    %v789 = vadd.f32 %v784, %v278
    %v790 = vadd.f32 %v785, %v279
    %vm791 = vcmask 326656
    %v792 = vsel %vm791, %v786, -inf
    %793 = vmax.xlane.f32.xlu0 %v792
    %v794 = vpop.xlane.xlu0 %793
    %v795 = vsel %vm791, %v787, -inf
    %796 = vmax.xlane.f32.xlu0 %v795
    %v797 = vpop.xlane.xlu0 %796
    %v798 = vsel %vm791, %v788, -inf
    %799 = vmax.xlane.f32.xlu0 %v798
    %v800 = vpop.xlane.xlu0 %799
    %v801 = vsel %vm791, %v789, -inf
    %802 = vmax.xlane.f32.xlu0 %v801
    %v803 = vpop.xlane.xlu0 %802
    %v804 = vsel %vm791, %v790, -inf
    %805 = vmax.xlane.f32.xlu0 %v804
    %v806 = vpop.xlane.xlu0 %805
    %v807 = vsub.f32 %v786, %v794
    %v808 = vsub.f32 %v787, %v797
    %v809 = vsub.f32 %v788, %v800
    %v810 = vsub.f32 %v789, %v803
    %v811 = vsub.f32 %v790, %v806
    %v812 = vmul.f32 %v807, 1.442695
    %v813 = vpow.pop %v812
    %v814 = vmul.f32 %v808, 1.442695
    %v815 = vpow.pop %v814
    %v816 = vmul.f32 %v809, 1.442695
    %v817 = vpow.pop %v816
    %v818 = vmul.f32 %v810, 1.442695
    %v819 = vpow.pop %v818
    %v820 = vmul.f32 %v811, 1.442695
    %v821 = vpow.pop %v820
    %v822 = vsel %vm791, %v813, 0.0
    %823 = vadd.xlane.f32.xlu0 %v822
    %v824 = vpop.xlane.xlu0 %823
    %v825 = vsel %vm791, %v815, 0.0
    %826 = vadd.xlane.f32.xlu0 %v825
    %v827 = vpop.xlane.xlu0 %826
    %v828 = vsel %vm791, %v817, 0.0
    %829 = vadd.xlane.f32.xlu0 %v828
    %v830 = vpop.xlane.xlu0 %829
    %v831 = vsel %vm791, %v819, 0.0
    %832 = vadd.xlane.f32.xlu0 %v831
    %v833 = vpop.xlane.xlu0 %832
    %v834 = vsel %vm791, %v821, 0.0
    %835 = vadd.xlane.f32.xlu0 %v834
    %v836 = vpop.xlane.xlu0 %835
    %v837 = vrcp.pop %v824
    %v838 = vrcp.pop %v827
    %v839 = vrcp.pop %v830
    %v840 = vrcp.pop %v833
    %v841 = vrcp.pop %v836
    %v842 = vmul.f32 %v813, %v837
    %v843 = vmul.f32 %v815, %v838
    %v844 = vmul.f32 %v817, %v839
    %v845 = vmul.f32 %v819, %v840
    %v846 = vmul.f32 %v821, %v841
    %847 = vrot.lane.b32.xlu0 %v632, 112
    %v848 = vpop.permute.xlu0 %847
    %849 = vrot.lane.b32.xlu0 %v637, 112
    %v850 = vpop.permute.xlu0 %849
    %851 = vrot.lane.b32.xlu0 %v642, 112
    %v852 = vpop.permute.xlu0 %851
    %853 = vrot.lane.b32.xlu0 %v647, 112
    %v854 = vpop.permute.xlu0 %853
    %855 = vrot.lane.b32.xlu0 %v652, 112
    %v856 = vpop.permute.xlu0 %855
    %v863 = vsel %vm791, %v842, 0
    %v866 = vsel %vm791, %v843, 0
    %v869 = vsel %vm791, %v844, 0
    %v872 = vsel %vm791, %v845, 0
    %v875 = vsel %vm791, %v846, 0
    %877 = vmatprep.subr.mxu0 0.0
    %878 = vmatpush1.msra.mxu0 %v848
    %879 = vmatprep.subr.mxu0 0.0
    %880 = vmatpush1.msra.mxu0 %v850
    %881 = vmatprep.subr.mxu0 0.0
    %882 = vmatpush1.msra.mxu0 %v852
    %883 = vmatprep.subr.mxu0 0.0
    %884 = vmatpush1.msra.mxu0 %v854
    %885 = vmatprep.subr.mxu0 0.0
    %886 = vmatpush1.msra.mxu0 %v856
    %887 = vmatprep.subr.mxu0 0.0
    %888 = vmatpush1.msra.mxu0 0.0
    %889 = vmatprep.subr.mxu0 0.0
    %890 = vmatpush1.msra.mxu0 0.0
    %891 = vmatprep.subr.mxu0 0.0
    %892 = vmatpush1.msra.mxu0 0.0
    %893 = vmatprep.subr.mxu0 0.0
    %894 = vmatpush1.msra.mxu0 0.0
    %895 = vmatprep.subr.mxu0 0.0
    %896 = vmatpush1.msra.mxu0 0.0
    %897 = vmatprep.subr.mxu0 0.0
    %898 = vmatpush1.msra.mxu0 0.0
    %899 = vmatprep.subr.mxu0 0.0
    %900 = vmatpush1.msra.mxu0 0.0
    %901 = vmatprep.subr.mxu0 0.0
    %902 = vmatpush1.msra.mxu0 0.0
    %903 = vmatprep.subr.mxu0 0.0
    %904 = vmatpush1.msra.mxu0 0.0
    %905 = vmatprep.subr.mxu0 0.0
    %906 = vmatpush1.msra.mxu0 0.0
    %907 = vmatprep.subr.mxu0 0.0
    %908 = vmatpush1.msra.mxu0 0.0
    %909 = vmatprep.subr.mxu0 0.0
    %910 = vmatpush1.msra.mxu0 0.0
    %911 = vmatprep.subr.mxu0 0.0
    %912 = vmatpush1.msra.mxu0 0.0
    %913 = vmatprep.subr.mxu0 0.0
    %914 = vmatpush1.msra.mxu0 0.0
    %915 = vmatprep.subr.mxu0 0.0
    %916 = vmatpush1.msra.mxu0 0.0
    %917 = vmatprep.subr.mxu0 0.0
    %918 = vmatpush1.msra.mxu0 0.0
    %919 = vmatprep.subr.mxu0 0.0
    %920 = vmatpush1.msra.mxu0 0.0
    %921 = vmatprep.subr.mxu0 0.0
    %922 = vmatpush1.msra.mxu0 0.0
    %923 = vmatprep.subr.mxu0 0.0
    %924 = vmatpush1.msra.mxu0 0.0
    %925 = vmatprep.subr.mxu0 0.0
    %926 = vmatpush1.msra.mxu0 0.0
    %927 = vmatprep.subr.mxu0 0.0
    %928 = vmatpush1.msra.mxu0 0.0
    %929 = vmatprep.subr.mxu0 0.0
    %930 = vmatpush1.msra.mxu0 0.0
    %931 = vmatprep.subr.mxu0 0.0
    %932 = vmatpush1.msra.mxu0 0.0
    %933 = vmatprep.subr.mxu0 0.0
    %934 = vmatpush1.msra.mxu0 0.0
    %935 = vmatprep.subr.mxu0 0.0
    %936 = vmatpush1.msra.mxu0 0.0
    %937 = vmatprep.subr.mxu0 0.0
    %938 = vmatpush1.msra.mxu0 0.0
    %939 = vmatprep.subr.mxu0 0.0
    %940 = vmatpush1.msra.mxu0 0.0
    %941 = vmatprep.mubr.f32.mxu0 0.0
    %942 = vmatmul.mubr.f32.gmra.mrb[0].mxu0 %v863
    %v943 = vpop.f32.mrb[0].mxu0
    %v944 = vadd.f32 0.0, %v943
    %v945 = vpop.f32.mrb[0].mxu0
    %946 = vmatprep.mubr.f32.mxu0 0.0
    %947 = vmatmul.mubr.f32.gmra.mrb[0].mxu0 %v866
    %v948 = vpop.f32.mrb[0].mxu0
    %v949 = vadd.f32 0.0, %v948
    %v950 = vpop.f32.mrb[0].mxu0
    %951 = vmatprep.mubr.f32.mxu0 0.0
    %952 = vmatmul.mubr.f32.gmra.mrb[0].mxu0 %v869
    %v953 = vpop.f32.mrb[0].mxu0
    %v954 = vadd.f32 0.0, %v953
    %v955 = vpop.f32.mrb[0].mxu0
    %956 = vmatprep.mubr.f32.mxu0 0.0
    %957 = vmatmul.mubr.f32.gmra.mrb[0].mxu0 %v872
    %v958 = vpop.f32.mrb[0].mxu0
    %v959 = vadd.f32 0.0, %v958
    %v960 = vpop.f32.mrb[0].mxu0
    %961 = vmatprep.mubr.f32.mxu0 0.0
    %962 = vmatmul.mubr.f32.gmra.mrb[0].mxu0 %v875
    %v963 = vpop.f32.mrb[0].mxu0
    %v964 = vadd.f32 0.0, %v963
    %v965 = vpop.f32.mrb[0].mxu0
    %966 = vdwg.mxu0
    %v967 = vld [vmem:[%s15] sm:$0xff]
    %v969 = vsel %vm670, %v944, 0
    %v972 = vsel %vm670, %v949, 0
    %v975 = vsel %vm670, %v954, 0
    %v978 = vsel %vm670, %v959, 0
    %v981 = vsel %vm670, %v964, 0
    %983 = vmatprep.subr.mxu0 0.0
    %984 = vmatpush1.msra.mxu0 %v967
    %985 = vmatprep.subr.mxu0 0.0
    %986 = vmatpush1.msra.mxu0 0.0
    %987 = vmatprep.subr.mxu0 0.0
    %988 = vmatpush1.msra.mxu0 0.0
    %989 = vmatprep.subr.mxu0 0.0
    %990 = vmatpush1.msra.mxu0 0.0
    %991 = vmatprep.subr.mxu0 0.0
    %992 = vmatpush1.msra.mxu0 0.0
    %993 = vmatprep.subr.mxu0 0.0
    %994 = vmatpush1.msra.mxu0 0.0
    %995 = vmatprep.subr.mxu0 0.0
    %996 = vmatpush1.msra.mxu0 0.0
    %997 = vmatprep.subr.mxu0 0.0
    %998 = vmatpush1.msra.mxu0 0.0
    %999 = vmatprep.subr.mxu0 0.0
    %1000 = vmatpush1.msra.mxu0 0.0
    %1001 = vmatprep.subr.mxu0 0.0
    %1002 = vmatpush1.msra.mxu0 0.0
    %1003 = vmatprep.subr.mxu0 0.0
    %1004 = vmatpush1.msra.mxu0 0.0
    %1005 = vmatprep.subr.mxu0 0.0
    %1006 = vmatpush1.msra.mxu0 0.0
    %1007 = vmatprep.subr.mxu0 0.0
    %1008 = vmatpush1.msra.mxu0 0.0
    %1009 = vmatprep.subr.mxu0 0.0
    %1010 = vmatpush1.msra.mxu0 0.0
    %1011 = vmatprep.subr.mxu0 0.0
    %1012 = vmatpush1.msra.mxu0 0.0
    %1013 = vmatprep.subr.mxu0 0.0
    %1014 = vmatpush1.msra.mxu0 0.0
    %1015 = vmatprep.subr.mxu0 0.0
    %1016 = vmatpush1.msra.mxu0 0.0
    %1017 = vmatprep.subr.mxu0 0.0
    %1018 = vmatpush1.msra.mxu0 0.0
    %1019 = vmatprep.subr.mxu0 0.0
    %1020 = vmatpush1.msra.mxu0 0.0
    %1021 = vmatprep.subr.mxu0 0.0
    %1022 = vmatpush1.msra.mxu0 0.0
    %1023 = vmatprep.subr.mxu0 0.0
    %1024 = vmatpush1.msra.mxu0 0.0
    %1025 = vmatprep.subr.mxu0 0.0
    %1026 = vmatpush1.msra.mxu0 0.0
    %1027 = vmatprep.subr.mxu0 0.0
    %1028 = vmatpush1.msra.mxu0 0.0
    %1029 = vmatprep.subr.mxu0 0.0
    %1030 = vmatpush1.msra.mxu0 0.0
    %1031 = vmatprep.subr.mxu0 0.0
    %1032 = vmatpush1.msra.mxu0 0.0
    %1033 = vmatprep.subr.mxu0 0.0
    %1034 = vmatpush1.msra.mxu0 0.0
    %1035 = vmatprep.subr.mxu0 0.0
    %1036 = vmatpush1.msra.mxu0 0.0
    %1037 = vmatprep.subr.mxu0 0.0
    %1038 = vmatpush1.msra.mxu0 0.0
    %1039 = vmatprep.subr.mxu0 0.0
    %1040 = vmatpush1.msra.mxu0 0.0
    %1041 = vmatprep.subr.mxu0 0.0
    %1042 = vmatpush1.msra.mxu0 0.0
    %1043 = vmatprep.subr.mxu0 0.0
    %1044 = vmatpush1.msra.mxu0 0.0
    %1045 = vmatprep.subr.mxu0 0.0
    %1046 = vmatpush1.msra.mxu0 0.0
    %1047 = vmatprep.mubr.f32.mxu0 0.0
    %1048 = vmatmul.mubr.f32.gmra.mrb[0].mxu0 %v969
    %v1049 = vpop.f32.mrb[0].mxu0
    %v1050 = vadd.f32 0.0, %v1049
    %v1051 = vpop.f32.mrb[0].mxu0
    %1052 = vmatprep.mubr.f32.mxu0 0.0
    %1053 = vmatmul.mubr.f32.gmra.mrb[0].mxu0 %v972
    %v1054 = vpop.f32.mrb[0].mxu0
    %v1055 = vadd.f32 0.0, %v1054
    %v1056 = vpop.f32.mrb[0].mxu0
    %1057 = vmatprep.mubr.f32.mxu0 0.0
    %1058 = vmatmul.mubr.f32.gmra.mrb[0].mxu0 %v975
    %v1059 = vpop.f32.mrb[0].mxu0
    %v1060 = vadd.f32 0.0, %v1059
    %v1061 = vpop.f32.mrb[0].mxu0
    %1062 = vmatprep.mubr.f32.mxu0 0.0
    %1063 = vmatmul.mubr.f32.gmra.mrb[0].mxu0 %v978
    %v1064 = vpop.f32.mrb[0].mxu0
    %v1065 = vadd.f32 0.0, %v1064
    %v1066 = vpop.f32.mrb[0].mxu0
    %1067 = vmatprep.mubr.f32.mxu0 0.0
    %1068 = vmatmul.mubr.f32.gmra.mrb[0].mxu0 %v981
    %v1069 = vpop.f32.mrb[0].mxu0
    %v1070 = vadd.f32 0.0, %v1069
    %v1071 = vpop.f32.mrb[0].mxu0
    %1072 = vdwg.mxu0
    %v1073 = vmul.f32 %v1050, %v270
    %v1074 = vmul.f32 %v1055, %v271
    %v1075 = vmul.f32 %v1060, %v272
    %v1076 = vmul.f32 %v1065, %v273
    %v1077 = vmul.f32 %v1070, %v274
    %v1079 = vsel %vm791, %v248, 0
    %v1082 = vsel %vm791, %v249, 0
    %1084 = vmatprep.subr.mxu0 0.0
    %1085 = vmatpush1.msra.mxu0 %v1073
    %1086 = vmatprep.subr.mxu0 0.0
    %1087 = vmatpush1.msra.mxu0 %v1074
    %1088 = vmatprep.subr.mxu0 0.0
    %1089 = vmatpush1.msra.mxu0 %v1075
    %1090 = vmatprep.subr.mxu0 0.0
    %1091 = vmatpush1.msra.mxu0 %v1076
    %1092 = vmatprep.subr.mxu0 0.0
    %1093 = vmatpush1.msra.mxu0 %v1077
    %1094 = vmatprep.subr.mxu0 0.0
    %1095 = vmatpush1.msra.mxu0 0.0
    %1096 = vmatprep.subr.mxu0 0.0
    %1097 = vmatpush1.msra.mxu0 0.0
    %1098 = vmatprep.subr.mxu0 0.0
    %1099 = vmatpush1.msra.mxu0 0.0
    %1100 = vmatprep.subr.mxu0 0.0
    %1101 = vmatpush1.msra.mxu0 0.0
    %1102 = vmatprep.subr.mxu0 0.0
    %1103 = vmatpush1.msra.mxu0 0.0
    %1104 = vmatprep.subr.mxu0 0.0
    %1105 = vmatpush1.msra.mxu0 0.0
    %1106 = vmatprep.subr.mxu0 0.0
    %1107 = vmatpush1.msra.mxu0 0.0
    %1108 = vmatprep.subr.mxu0 0.0
    %1109 = vmatpush1.msra.mxu0 0.0
    %1110 = vmatprep.subr.mxu0 0.0
    %1111 = vmatpush1.msra.mxu0 0.0
    %1112 = vmatprep.subr.mxu0 0.0
    %1113 = vmatpush1.msra.mxu0 0.0
    %1114 = vmatprep.subr.mxu0 0.0
    %1115 = vmatpush1.msra.mxu0 0.0
    %1116 = vmatprep.subr.mxu0 0.0
    %1117 = vmatpush1.msra.mxu0 0.0
    %1118 = vmatprep.subr.mxu0 0.0
    %1119 = vmatpush1.msra.mxu0 0.0
    %1120 = vmatprep.subr.mxu0 0.0
    %1121 = vmatpush1.msra.mxu0 0.0
    %1122 = vmatprep.subr.mxu0 0.0
    %1123 = vmatpush1.msra.mxu0 0.0
    %1124 = vmatprep.subr.mxu0 0.0
    %1125 = vmatpush1.msra.mxu0 0.0
    %1126 = vmatprep.subr.mxu0 0.0
    %1127 = vmatpush1.msra.mxu0 0.0
    %1128 = vmatprep.subr.mxu0 0.0
    %1129 = vmatpush1.msra.mxu0 0.0
    %1130 = vmatprep.subr.mxu0 0.0
    %1131 = vmatpush1.msra.mxu0 0.0
    %1132 = vmatprep.subr.mxu0 0.0
    %1133 = vmatpush1.msra.mxu0 0.0
    %1134 = vmatprep.subr.mxu0 0.0
    %1135 = vmatpush1.msra.mxu0 0.0
    %1136 = vmatprep.subr.mxu0 0.0
    %1137 = vmatpush1.msra.mxu0 0.0
    %1138 = vmatprep.subr.mxu0 0.0
    %1139 = vmatpush1.msra.mxu0 0.0
    %1140 = vmatprep.subr.mxu0 0.0
    %1141 = vmatpush1.msra.mxu0 0.0
    %1142 = vmatprep.subr.mxu0 0.0
    %1143 = vmatpush1.msra.mxu0 0.0
    %1144 = vmatprep.subr.mxu0 0.0
    %1145 = vmatpush1.msra.mxu0 0.0
    %1146 = vmatprep.subr.mxu0 0.0
    %1147 = vmatpush1.msra.mxu0 0.0
    %1148 = vmatprep.mubr.f32.mxu0 0.0
    %1149 = vmatmul.mubr.f32.gmra.mrb[0].mxu0 %v1079
    %v1150 = vpop.f32.mrb[0].mxu0
    %v1151 = vadd.f32 0.0, %v1150
    %v1152 = vpop.f32.mrb[0].mxu0
    %1153 = vmatprep.mubr.f32.mxu0 0.0
    %1154 = vmatmul.mubr.f32.gmra.mrb[0].mxu0 %v1082
    %v1155 = vpop.f32.mrb[0].mxu0
    %v1156 = vadd.f32 0.0, %v1155
    %v1157 = vpop.f32.mrb[0].mxu0
    %1158 = vdwg.mxu0
    %v1159 = vld [vmem:[%s16] sm:$0x1]
    %v1161 = vlaneseq
    %v1162 = vshrl.u32 %v1161, 7
    %v1163 = vsub.s32 0, %v1162
    %v1164 = vrot.slane %v1159, %v1163
    %1166 = vmatprep.subr.mxu0 0.0
    %1167 = vmatpush1.msra.mxu0 %v254
    %1168 = vmatprep.subr.mxu0 0.0
    %1169 = vmatpush1.msra.mxu0 %v255
    %1170 = vmatprep.subr.mxu0 0.0
    %1171 = vmatpush1.msra.mxu0 %v256
    %1172 = vmatprep.subr.mxu0 0.0
    %1173 = vmatpush1.msra.mxu0 %v257
    %1174 = vmatprep.subr.mxu0 0.0
    %1175 = vmatpush1.msra.mxu0 %v258
    %1176 = vmatprep.subr.mxu0 0.0
    %1177 = vmatpush1.msra.mxu0 %v259
    %1178 = vmatprep.subr.mxu0 0.0
    %1179 = vmatpush1.msra.mxu0 %v260
    %1180 = vmatprep.subr.mxu0 0.0
    %1181 = vmatpush1.msra.mxu0 %v261
    %1182 = vmatprep.subr.mxu0 0.0
    %1183 = vmatpush1.msra.mxu0 %v262
    %1184 = vmatprep.subr.mxu0 0.0
    %1185 = vmatpush1.msra.mxu0 %v263
    %1186 = vmatprep.subr.mxu0 0.0
    %1187 = vmatpush1.msra.mxu0 %v264
    %1188 = vmatprep.subr.mxu0 0.0
    %1189 = vmatpush1.msra.mxu0 %v265
    %1190 = vmatprep.subr.mxu0 0.0
    %1191 = vmatpush1.msra.mxu0 %v266
    %1192 = vmatprep.subr.mxu0 0.0
    %1193 = vmatpush1.msra.mxu0 %v267
    %1194 = vmatprep.subr.mxu0 0.0
    %1195 = vmatpush1.msra.mxu0 %v268
    %1196 = vmatprep.subr.mxu0 0.0
    %1197 = vmatpush1.msra.mxu0 %v269
    %1198 = vmatprep.subr.mxu0 0.0
    %1199 = vmatpush1.msra.mxu0 0.0
    %1200 = vmatprep.subr.mxu0 0.0
    %1201 = vmatpush1.msra.mxu0 0.0
    %1202 = vmatprep.subr.mxu0 0.0
    %1203 = vmatpush1.msra.mxu0 0.0
    %1204 = vmatprep.subr.mxu0 0.0
    %1205 = vmatpush1.msra.mxu0 0.0
    %1206 = vmatprep.subr.mxu0 0.0
    %1207 = vmatpush1.msra.mxu0 0.0
    %1208 = vmatprep.subr.mxu0 0.0
    %1209 = vmatpush1.msra.mxu0 0.0
    %1210 = vmatprep.subr.mxu0 0.0
    %1211 = vmatpush1.msra.mxu0 0.0
    %1212 = vmatprep.subr.mxu0 0.0
    %1213 = vmatpush1.msra.mxu0 0.0
    %1214 = vmatprep.subr.mxu0 0.0
    %1215 = vmatpush1.msra.mxu0 0.0
    %1216 = vmatprep.subr.mxu0 0.0
    %1217 = vmatpush1.msra.mxu0 0.0
    %1218 = vmatprep.subr.mxu0 0.0
    %1219 = vmatpush1.msra.mxu0 0.0
    %1220 = vmatprep.subr.mxu0 0.0
    %1221 = vmatpush1.msra.mxu0 0.0
    %1222 = vmatprep.subr.mxu0 0.0
    %1223 = vmatpush1.msra.mxu0 0.0
    %1224 = vmatprep.subr.mxu0 0.0
    %1225 = vmatpush1.msra.mxu0 0.0
    %1226 = vmatprep.subr.mxu0 0.0
    %1227 = vmatpush1.msra.mxu0 0.0
    %1228 = vmatprep.subr.mxu0 0.0
    %1229 = vmatpush1.msra.mxu0 0.0
    %1230 = vmatprep.mubr.f32.mxu0 0.0
    %1231 = vmatmul.mubr.f32.gmra.mrb[0].mxu0 %v1151
    %v1232 = vpop.f32.mrb[0].mxu0
    %v1233 = vadd.f32 %v1164, %v1232
    %v1234 = vpop.f32.mrb[0].mxu0
    %1235 = vmatprep.mubr.f32.mxu0 0.0
    %1236 = vmatmul.mubr.f32.gmra.mrb[0].mxu0 %v1156
    %v1237 = vpop.f32.mrb[0].mxu0
    %v1238 = vadd.f32 %v1164, %v1237
    %v1239 = vpop.f32.mrb[0].mxu0
    %1240 = vdwg.mxu0
    %v1241 = vadd.f32 %v241, %v1233
    %v1242 = vadd.f32 %v242, %v1238
    %v1243 = vld [vmem:[%s17] sm:$0x1]
    %v1244 = vld [vmem:[%s18] sm:$0x1]
    %v1245 = vsel %vm198, %v1241, 0.0
    %1246 = vadd.xlane.f32.xlu0 %v1245
    %v1247 = vpop.xlane.xlu0 %1246
    %v1248 = vsel %vm202, %v1242, 0.0
    %1249 = vadd.xlane.f32.xlu0 %v1248
    %v1250 = vpop.xlane.xlu0 %1249
    %v1251 = vmul.f32 %v1247, %v206
    %v1252 = vmul.f32 %v1250, %v206
    %v1253 = vsub.f32 %v1241, %v1251
    %v1254 = vsub.f32 %v1242, %v1252
    %v1255 = vmul.f32 %v1253, %v1253
    %v1256 = vmul.f32 %v1254, %v1254
    %v1257 = vsel %vm198, %v1255, 0.0
    %1258 = vadd.xlane.f32.xlu0 %v1257
    %v1259 = vpop.xlane.xlu0 %1258
    %v1260 = vsel %vm202, %v1256, 0.0
    %1261 = vadd.xlane.f32.xlu0 %v1260
    %v1262 = vpop.xlane.xlu0 %1261
    %v1263 = vmul.f32 %v1259, %v206
    %v1264 = vmul.f32 %v1262, %v206
    %v1265 = vadd.f32 %v1263, 1e-05
    %v1266 = vadd.f32 %v1264, 1e-05
    %v1267 = vrsqrt.pop %v1265
    %v1268 = vrsqrt.pop %v1266
    %v1269 = vmul.f32 %v1253, %v1267
    %v1270 = vmul.f32 %v1254, %v1268
    %v1272 = vlaneseq
    %v1273 = vshrl.u32 %v1272, 7
    %v1274 = vsub.s32 0, %v1273
    %v1275 = vrot.slane %v1243, %v1274
    %v1277 = vmul.f32 %v1269, %v1275
    %v1278 = vmul.f32 %v1270, %v1275
    %v1280 = vlaneseq
    %v1281 = vshrl.u32 %v1280, 7
    %v1282 = vsub.s32 0, %v1281
    %v1283 = vrot.slane %v1244, %v1282
    %v1285 = vadd.f32 %v1277, %v1283
    %v1286 = vadd.f32 %v1278, %v1283
    %v1287 = vld [vmem:[%s19] sm:$0xff]
    %v1288 = vld [vmem:[%s19 + $0x8] sm:$0xff]
    %v1289 = vld [vmem:[%s19 + $0x10] sm:$0xff]
    %v1290 = vld [vmem:[%s19 + $0x18] sm:$0xff]
    %v1291 = vld [vmem:[%s20] sm:$0x1]
    %v1293 = vlaneseq
    %v1294 = vshrl.u32 %v1293, 7
    %v1295 = vsub.s32 0, %v1294
    %v1296 = vrot.slane %v1291, %v1295
    %v1299 = vsel %vm198, %v1285, 0
    %v1302 = vsel %vm198, %v1286, 0
    %1304 = vmatprep.subr.mxu0 0.0
    %1305 = vmatpush1.msra.mxu0 %v1287
    %1306 = vmatprep.subr.mxu0 0.0
    %1307 = vmatpush1.msra.mxu0 %v1288
    %1308 = vmatprep.subr.mxu0 0.0
    %1309 = vmatpush1.msra.mxu0 %v1289
    %1310 = vmatprep.subr.mxu0 0.0
    %1311 = vmatpush1.msra.mxu0 %v1290
    %1312 = vmatprep.subr.mxu0 0.0
    %1313 = vmatpush1.msra.mxu0 0.0
    %1314 = vmatprep.subr.mxu0 0.0
    %1315 = vmatpush1.msra.mxu0 0.0
    %1316 = vmatprep.subr.mxu0 0.0
    %1317 = vmatpush1.msra.mxu0 0.0
    %1318 = vmatprep.subr.mxu0 0.0
    %1319 = vmatpush1.msra.mxu0 0.0
    %1320 = vmatprep.subr.mxu0 0.0
    %1321 = vmatpush1.msra.mxu0 0.0
    %1322 = vmatprep.subr.mxu0 0.0
    %1323 = vmatpush1.msra.mxu0 0.0
    %1324 = vmatprep.subr.mxu0 0.0
    %1325 = vmatpush1.msra.mxu0 0.0
    %1326 = vmatprep.subr.mxu0 0.0
    %1327 = vmatpush1.msra.mxu0 0.0
    %1328 = vmatprep.subr.mxu0 0.0
    %1329 = vmatpush1.msra.mxu0 0.0
    %1330 = vmatprep.subr.mxu0 0.0
    %1331 = vmatpush1.msra.mxu0 0.0
    %1332 = vmatprep.subr.mxu0 0.0
    %1333 = vmatpush1.msra.mxu0 0.0
    %1334 = vmatprep.subr.mxu0 0.0
    %1335 = vmatpush1.msra.mxu0 0.0
    %1336 = vmatprep.subr.mxu0 0.0
    %1337 = vmatpush1.msra.mxu0 0.0
    %1338 = vmatprep.subr.mxu0 0.0
    %1339 = vmatpush1.msra.mxu0 0.0
    %1340 = vmatprep.subr.mxu0 0.0
    %1341 = vmatpush1.msra.mxu0 0.0
    %1342 = vmatprep.subr.mxu0 0.0
    %1343 = vmatpush1.msra.mxu0 0.0
    %1344 = vmatprep.subr.mxu0 0.0
    %1345 = vmatpush1.msra.mxu0 0.0
    %1346 = vmatprep.subr.mxu0 0.0
    %1347 = vmatpush1.msra.mxu0 0.0
    %1348 = vmatprep.subr.mxu0 0.0
    %1349 = vmatpush1.msra.mxu0 0.0
    %1350 = vmatprep.subr.mxu0 0.0
    %1351 = vmatpush1.msra.mxu0 0.0
    %1352 = vmatprep.subr.mxu0 0.0
    %1353 = vmatpush1.msra.mxu0 0.0
    %1354 = vmatprep.subr.mxu0 0.0
    %1355 = vmatpush1.msra.mxu0 0.0
    %1356 = vmatprep.subr.mxu0 0.0
    %1357 = vmatpush1.msra.mxu0 0.0
    %1358 = vmatprep.subr.mxu0 0.0
    %1359 = vmatpush1.msra.mxu0 0.0
    %1360 = vmatprep.subr.mxu0 0.0
    %1361 = vmatpush1.msra.mxu0 0.0
    %1362 = vmatprep.subr.mxu0 0.0
    %1363 = vmatpush1.msra.mxu0 0.0
    %1364 = vmatprep.subr.mxu0 0.0
    %1365 = vmatpush1.msra.mxu0 0.0
    %1366 = vmatprep.subr.mxu0 0.0
    %1367 = vmatpush1.msra.mxu0 0.0
    %1368 = vmatprep.mubr.f32.mxu0 0.0
    %1369 = vmatmul.mubr.f32.gmra.mrb[0].mxu0 %v1299
    %v1370 = vpop.f32.mrb[0].mxu0
    %v1371 = vadd.f32 %v1296, %v1370
    %v1372 = vpop.f32.mrb[0].mxu0
    %1373 = vmatprep.mubr.f32.mxu0 0.0
    %1374 = vmatmul.mubr.f32.gmra.mrb[0].mxu0 %v1302
    %v1375 = vpop.f32.mrb[0].mxu0
    %v1376 = vadd.f32 %v1296, %v1375
    %v1377 = vpop.f32.mrb[0].mxu0
    %1378 = vdwg.mxu0
    %v1379 = vmul.f32 %v1371, 0.851
    %v1380 = vmul.f32 %v1376, 0.851
    %v1381 = vtanh.pop %v1379
    %v1382 = vtanh.pop %v1380
    %v1383 = vadd.f32 %v1381, 1.0
    %v1384 = vadd.f32 %v1382, 1.0
    %v1385 = vmul.f32 %v1383, 0.5
    %v1386 = vmul.f32 %v1384, 0.5
    %v1387 = vmul.f32 %v1371, %v1385
    %v1388 = vmul.f32 %v1376, %v1386
    %v1389 = vld [vmem:[%s21] sm:$0xff]
    %v1390 = vld [vmem:[%s21 + $0x8] sm:$0xff]
    %v1391 = vld [vmem:[%s21 + $0x10] sm:$0xff]
    %v1392 = vld [vmem:[%s21 + $0x18] sm:$0xff]
    %v1393 = vld [vmem:[%s21 + $0x20] sm:$0xff]
    %v1394 = vld [vmem:[%s21 + $0x28] sm:$0xff]
    %v1395 = vld [vmem:[%s21 + $0x30] sm:$0xff]
    %v1396 = vld [vmem:[%s21 + $0x38] sm:$0xff]
    %v1397 = vld [vmem:[%s21 + $0x40] sm:$0xff]
    %v1398 = vld [vmem:[%s21 + $0x48] sm:$0xff]
    %v1399 = vld [vmem:[%s21 + $0x50] sm:$0xff]
    %v1400 = vld [vmem:[%s21 + $0x58] sm:$0xff]
    %v1401 = vld [vmem:[%s21 + $0x60] sm:$0xff]
    %v1402 = vld [vmem:[%s21 + $0x68] sm:$0xff]
    %v1403 = vld [vmem:[%s21 + $0x70] sm:$0xff]
    %v1404 = vld [vmem:[%s21 + $0x78] sm:$0xff]
    %1405 = vmatprep.subr.mxu0 0.0
    %1406 = vmatpush1.msra.mxu0 %v1389
    %1407 = vmatprep.subr.mxu0 0.0
    %1408 = vmatpush1.msra.mxu0 %v1390
    %1409 = vmatprep.subr.mxu0 0.0
    %1410 = vmatpush1.msra.mxu0 %v1391
    %1411 = vmatprep.subr.mxu0 0.0
    %1412 = vmatpush1.msra.mxu0 %v1392
    %1413 = vmatprep.subr.mxu0 0.0
    %1414 = vmatpush1.msra.mxu0 %v1393
    %1415 = vmatprep.subr.mxu0 0.0
    %1416 = vmatpush1.msra.mxu0 %v1394
    %1417 = vmatprep.subr.mxu0 0.0
    %1418 = vmatpush1.msra.mxu0 %v1395
    %1419 = vmatprep.subr.mxu0 0.0
    %1420 = vmatpush1.msra.mxu0 %v1396
    %1421 = vmatprep.subr.mxu0 0.0
    %1422 = vmatpush1.msra.mxu0 %v1397
    %1423 = vmatprep.subr.mxu0 0.0
    %1424 = vmatpush1.msra.mxu0 %v1398
    %1425 = vmatprep.subr.mxu0 0.0
    %1426 = vmatpush1.msra.mxu0 %v1399
    %1427 = vmatprep.subr.mxu0 0.0
    %1428 = vmatpush1.msra.mxu0 %v1400
    %1429 = vmatprep.subr.mxu0 0.0
    %1430 = vmatpush1.msra.mxu0 %v1401
    %1431 = vmatprep.subr.mxu0 0.0
    %1432 = vmatpush1.msra.mxu0 %v1402
    %1433 = vmatprep.subr.mxu0 0.0
    %1434 = vmatpush1.msra.mxu0 %v1403
    %1435 = vmatprep.subr.mxu0 0.0
    %1436 = vmatpush1.msra.mxu0 %v1404
    %1437 = vmatprep.subr.mxu0 0.0
    %1438 = vmatpush1.msra.mxu0 0.0
    %1439 = vmatprep.subr.mxu0 0.0
    %1440 = vmatpush1.msra.mxu0 0.0
    %1441 = vmatprep.subr.mxu0 0.0
    %1442 = vmatpush1.msra.mxu0 0.0
    %1443 = vmatprep.subr.mxu0 0.0
    %1444 = vmatpush1.msra.mxu0 0.0
    %1445 = vmatprep.subr.mxu0 0.0
    %1446 = vmatpush1.msra.mxu0 0.0
    %1447 = vmatprep.subr.mxu0 0.0
    %1448 = vmatpush1.msra.mxu0 0.0
    %1449 = vmatprep.subr.mxu0 0.0
    %1450 = vmatpush1.msra.mxu0 0.0
    %1451 = vmatprep.subr.mxu0 0.0
    %1452 = vmatpush1.msra.mxu0 0.0
    %1453 = vmatprep.subr.mxu0 0.0
    %1454 = vmatpush1.msra.mxu0 0.0
    %1455 = vmatprep.subr.mxu0 0.0
    %1456 = vmatpush1.msra.mxu0 0.0
    %1457 = vmatprep.subr.mxu0 0.0
    %1458 = vmatpush1.msra.mxu0 0.0
    %1459 = vmatprep.subr.mxu0 0.0
    %1460 = vmatpush1.msra.mxu0 0.0
    %1461 = vmatprep.subr.mxu0 0.0
    %1462 = vmatpush1.msra.mxu0 0.0
    %1463 = vmatprep.subr.mxu0 0.0
    %1464 = vmatpush1.msra.mxu0 0.0
    %1465 = vmatprep.subr.mxu0 0.0
    %1466 = vmatpush1.msra.mxu0 0.0
    %1467 = vmatprep.subr.mxu0 0.0
    %1468 = vmatpush1.msra.mxu0 0.0
    %1469 = vmatprep.mubr.f32.mxu0 0.0
    %1470 = vmatmul.mubr.f32.gmra.mrb[0].mxu0 %v1387
    %v1471 = vpop.f32.mrb[0].mxu0
    %v1472 = vadd.f32 0.0, %v1471
    %v1473 = vpop.f32.mrb[0].mxu0
    %1474 = vmatprep.mubr.f32.mxu0 0.0
    %1475 = vmatmul.mubr.f32.gmra.mrb[0].mxu0 %v1388
    %v1476 = vpop.f32.mrb[0].mxu0
    %v1477 = vadd.f32 0.0, %v1476
    %v1478 = vpop.f32.mrb[0].mxu0
    %1479 = vdwg.mxu0
    %v1480 = vadd.f32 %v1241, %v1472
    %v1481 = vadd.f32 %v1242, %v1477
    %v1482 = vld [vmem:[%s22] sm:$0x1]
    %v1484 = vlaneseq
    %v1485 = vshrl.u32 %v1484, 7
    %v1486 = vsub.s32 0, %v1485
    %v1487 = vrot.slane %v1482, %v1486
    %v1489 = vadd.f32 %v1480, %v1487
    %v1490 = vadd.f32 %v1481, %v1487
    %s1491 = scalar_lea.vmem %s11, 1
    %v1492 = vld [vmem:[%s1491] sm:$0x1]
    %s1493 = scalar_lea.vmem %s12, 1
    %v1494 = vld [vmem:[%s1493] sm:$0x1]
    %v1495 = vsel %vm198, %v1489, 0.0
    %1496 = vadd.xlane.f32.xlu0 %v1495
    %v1497 = vpop.xlane.xlu0 %1496
    %v1498 = vsel %vm202, %v1490, 0.0
    %1499 = vadd.xlane.f32.xlu0 %v1498
    %v1500 = vpop.xlane.xlu0 %1499
    %v1501 = vmul.f32 %v1497, %v206
    %v1502 = vmul.f32 %v1500, %v206
    %v1503 = vsub.f32 %v1489, %v1501
    %v1504 = vsub.f32 %v1490, %v1502
    %v1505 = vmul.f32 %v1503, %v1503
    %v1506 = vmul.f32 %v1504, %v1504
    %v1507 = vsel %vm198, %v1505, 0.0
    %1508 = vadd.xlane.f32.xlu0 %v1507
    %v1509 = vpop.xlane.xlu0 %1508
    %v1510 = vsel %vm202, %v1506, 0.0
    %1511 = vadd.xlane.f32.xlu0 %v1510
    %v1512 = vpop.xlane.xlu0 %1511
    %v1513 = vmul.f32 %v1509, %v206
    %v1514 = vmul.f32 %v1512, %v206
    %v1515 = vadd.f32 %v1513, 1e-05
    %v1516 = vadd.f32 %v1514, 1e-05
    %v1517 = vrsqrt.pop %v1515
    %v1518 = vrsqrt.pop %v1516
    %v1519 = vmul.f32 %v1503, %v1517
    %v1520 = vmul.f32 %v1504, %v1518
    %v1522 = vlaneseq
    %v1523 = vshrl.u32 %v1522, 7
    %v1524 = vsub.s32 0, %v1523
    %v1525 = vrot.slane %v1492, %v1524
    %v1527 = vmul.f32 %v1519, %v1525
    %v1528 = vmul.f32 %v1520, %v1525
    %v1530 = vlaneseq
    %v1531 = vshrl.u32 %v1530, 7
    %v1532 = vsub.s32 0, %v1531
    %v1533 = vrot.slane %v1494, %v1532
    %v1535 = vadd.f32 %v1527, %v1533
    %v1536 = vadd.f32 %v1528, %v1533
    %v1538 = vsel %vm340, %v1536, 0
    %1540 = vmatprep.subr.mxu0 0.0
    %1541 = vmatpush1.msra.mxu0 %v1535
    %1542 = vmatprep.subr.mxu0 0.0
    %1543 = vmatpush1.msra.mxu0 %v1538
    %1544 = vmatprep.subr.mxu0 0.0
    %1545 = vmatpush1.msra.mxu0 0.0
    %1546 = vmatprep.subr.mxu0 0.0
    %1547 = vmatpush1.msra.mxu0 0.0
    %1548 = vmatprep.subr.mxu0 0.0
    %1549 = vmatpush1.msra.mxu0 0.0
    %1550 = vmatprep.subr.mxu0 0.0
    %1551 = vmatpush1.msra.mxu0 0.0
    %1552 = vmatprep.subr.mxu0 0.0
    %1553 = vmatpush1.msra.mxu0 0.0
    %1554 = vmatprep.subr.mxu0 0.0
    %1555 = vmatpush1.msra.mxu0 0.0
    %1556 = vmatprep.subr.mxu0 0.0
    %1557 = vmatpush1.msra.mxu0 0.0
    %1558 = vmatprep.subr.mxu0 0.0
    %1559 = vmatpush1.msra.mxu0 0.0
    %1560 = vmatprep.subr.mxu0 0.0
    %1561 = vmatpush1.msra.mxu0 0.0
    %1562 = vmatprep.subr.mxu0 0.0
    %1563 = vmatpush1.msra.mxu0 0.0
    %1564 = vmatprep.subr.mxu0 0.0
    %1565 = vmatpush1.msra.mxu0 0.0
    %1566 = vmatprep.subr.mxu0 0.0
    %1567 = vmatpush1.msra.mxu0 0.0
    %1568 = vmatprep.subr.mxu0 0.0
    %1569 = vmatpush1.msra.mxu0 0.0
    %1570 = vmatprep.subr.mxu0 0.0
    %1571 = vmatpush1.msra.mxu0 0.0
    %1572 = vmatprep.subr.mxu0 0.0
    %1573 = vmatpush1.msra.mxu0 0.0
    %1574 = vmatprep.subr.mxu0 0.0
    %1575 = vmatpush1.msra.mxu0 0.0
    %1576 = vmatprep.subr.mxu0 0.0
    %1577 = vmatpush1.msra.mxu0 0.0
    %1578 = vmatprep.subr.mxu0 0.0
    %1579 = vmatpush1.msra.mxu0 0.0
    %1580 = vmatprep.subr.mxu0 0.0
    %1581 = vmatpush1.msra.mxu0 0.0
    %1582 = vmatprep.subr.mxu0 0.0
    %1583 = vmatpush1.msra.mxu0 0.0
    %1584 = vmatprep.subr.mxu0 0.0
    %1585 = vmatpush1.msra.mxu0 0.0
    %1586 = vmatprep.subr.mxu0 0.0
    %1587 = vmatpush1.msra.mxu0 0.0
    %1588 = vmatprep.subr.mxu0 0.0
    %1589 = vmatpush1.msra.mxu0 0.0
    %1590 = vmatprep.subr.mxu0 0.0
    %1591 = vmatpush1.msra.mxu0 0.0
    %1592 = vmatprep.subr.mxu0 0.0
    %1593 = vmatpush1.msra.mxu0 0.0
    %1594 = vmatprep.subr.mxu0 0.0
    %1595 = vmatpush1.msra.mxu0 0.0
    %1596 = vmatprep.subr.mxu0 0.0
    %1597 = vmatpush1.msra.mxu0 0.0
    %1598 = vmatprep.subr.mxu0 0.0
    %1599 = vmatpush1.msra.mxu0 0.0
    %1600 = vmatprep.subr.mxu0 0.0
    %1601 = vmatpush1.msra.mxu0 0.0
    %1602 = vmatprep.subr.mxu0 0.0
    %1603 = vmatpush1.msra.mxu0 0.0
    %1604 = vmatprep.mubr.f32.mxu0 0.0
    %1605 = vmatmul.mubr.f32.gmra.mrb[0].mxu0 %v326
    %v1606 = vpop.f32.mrb[0].mxu0
    %v1607 = vadd.f32 0.0, %v1606
    %v1608 = vpop.f32.mrb[0].mxu0
    %1609 = vmatprep.mubr.f32.mxu0 0.0
    %1610 = vmatmul.mubr.f32.gmra.mrb[0].mxu0 %v329
    %v1611 = vpop.f32.mrb[0].mxu0
    %v1612 = vadd.f32 0.0, %v1611
    %v1613 = vpop.f32.mrb[0].mxu0
    %1614 = vmatprep.mubr.f32.mxu0 0.0
    %1615 = vmatmul.mubr.f32.gmra.mrb[0].mxu0 %v332
    %v1616 = vpop.f32.mrb[0].mxu0
    %v1617 = vadd.f32 0.0, %v1616
    %v1618 = vpop.f32.mrb[0].mxu0
    %1619 = vmatprep.mubr.f32.mxu0 0.0
    %1620 = vmatmul.mubr.f32.gmra.mrb[0].mxu0 %v335
    %v1621 = vpop.f32.mrb[0].mxu0
    %v1622 = vadd.f32 0.0, %v1621
    %v1623 = vpop.f32.mrb[0].mxu0
    %1624 = vmatprep.mubr.f32.mxu0 0.0
    %1625 = vmatmul.mubr.f32.gmra.mrb[0].mxu0 %v338
    %v1626 = vpop.f32.mrb[0].mxu0
    %v1627 = vadd.f32 0.0, %v1626
    %v1628 = vpop.f32.mrb[0].mxu0
    %1629 = vdwg.mxu0
    %v1631 = vsel %vm198, %v1607, 0
    %v1634 = vsel %vm198, %v1612, 0
    %v1637 = vsel %vm198, %v1617, 0
    %v1640 = vsel %vm198, %v1622, 0
    %v1643 = vsel %vm198, %v1627, 0
    %1645 = vmatprep.subr.mxu0 0.0
    %1646 = vmatpush1.msra.mxu0 %v250
    %1647 = vmatprep.subr.mxu0 0.0
    %1648 = vmatpush1.msra.mxu0 %v251
    %1649 = vmatprep.subr.mxu0 0.0
    %1650 = vmatpush1.msra.mxu0 %v252
    %1651 = vmatprep.subr.mxu0 0.0
    %1652 = vmatpush1.msra.mxu0 %v253
    %1653 = vmatprep.subr.mxu0 0.0
    %1654 = vmatpush1.msra.mxu0 0.0
    %1655 = vmatprep.subr.mxu0 0.0
    %1656 = vmatpush1.msra.mxu0 0.0
    %1657 = vmatprep.subr.mxu0 0.0
    %1658 = vmatpush1.msra.mxu0 0.0
    %1659 = vmatprep.subr.mxu0 0.0
    %1660 = vmatpush1.msra.mxu0 0.0
    %1661 = vmatprep.subr.mxu0 0.0
    %1662 = vmatpush1.msra.mxu0 0.0
    %1663 = vmatprep.subr.mxu0 0.0
    %1664 = vmatpush1.msra.mxu0 0.0
    %1665 = vmatprep.subr.mxu0 0.0
    %1666 = vmatpush1.msra.mxu0 0.0
    %1667 = vmatprep.subr.mxu0 0.0
    %1668 = vmatpush1.msra.mxu0 0.0
    %1669 = vmatprep.subr.mxu0 0.0
    %1670 = vmatpush1.msra.mxu0 0.0
    %1671 = vmatprep.subr.mxu0 0.0
    %1672 = vmatpush1.msra.mxu0 0.0
    %1673 = vmatprep.subr.mxu0 0.0
    %1674 = vmatpush1.msra.mxu0 0.0
    %1675 = vmatprep.subr.mxu0 0.0
    %1676 = vmatpush1.msra.mxu0 0.0
    %1677 = vmatprep.subr.mxu0 0.0
    %1678 = vmatpush1.msra.mxu0 0.0
    %1679 = vmatprep.subr.mxu0 0.0
    %1680 = vmatpush1.msra.mxu0 0.0
    %1681 = vmatprep.subr.mxu0 0.0
    %1682 = vmatpush1.msra.mxu0 0.0
    %1683 = vmatprep.subr.mxu0 0.0
    %1684 = vmatpush1.msra.mxu0 0.0
    %1685 = vmatprep.subr.mxu0 0.0
    %1686 = vmatpush1.msra.mxu0 0.0
    %1687 = vmatprep.subr.mxu0 0.0
    %1688 = vmatpush1.msra.mxu0 0.0
    %1689 = vmatprep.subr.mxu0 0.0
    %1690 = vmatpush1.msra.mxu0 0.0
    %1691 = vmatprep.subr.mxu0 0.0
    %1692 = vmatpush1.msra.mxu0 0.0
    %1693 = vmatprep.subr.mxu0 0.0
    %1694 = vmatpush1.msra.mxu0 0.0
    %1695 = vmatprep.subr.mxu0 0.0
    %1696 = vmatpush1.msra.mxu0 0.0
    %1697 = vmatprep.subr.mxu0 0.0
    %1698 = vmatpush1.msra.mxu0 0.0
    %1699 = vmatprep.subr.mxu0 0.0
    %1700 = vmatpush1.msra.mxu0 0.0
    %1701 = vmatprep.subr.mxu0 0.0
    %1702 = vmatpush1.msra.mxu0 0.0
    %1703 = vmatprep.subr.mxu0 0.0
    %1704 = vmatpush1.msra.mxu0 0.0
    %1705 = vmatprep.subr.mxu0 0.0
    %1706 = vmatpush1.msra.mxu0 0.0
    %1707 = vmatprep.subr.mxu0 0.0
    %1708 = vmatpush1.msra.mxu0 0.0
    %1709 = vmatprep.mubr.f32.mxu0 0.0
    %1710 = vmatmul.mubr.f32.gmra.mrb[0].mxu0 %v1631
    %v1711 = vpop.f32.mrb[0].mxu0
    %v1712 = vadd.f32 0.0, %v1711
    %v1713 = vpop.f32.mrb[0].mxu0
    %1714 = vmatprep.mubr.f32.mxu0 0.0
    %1715 = vmatmul.mubr.f32.gmra.mrb[0].mxu0 %v1634
    %v1716 = vpop.f32.mrb[0].mxu0
    %v1717 = vadd.f32 0.0, %v1716
    %v1718 = vpop.f32.mrb[0].mxu0
    %1719 = vmatprep.mubr.f32.mxu0 0.0
    %1720 = vmatmul.mubr.f32.gmra.mrb[0].mxu0 %v1637
    %v1721 = vpop.f32.mrb[0].mxu0
    %v1722 = vadd.f32 0.0, %v1721
    %v1723 = vpop.f32.mrb[0].mxu0
    %1724 = vmatprep.mubr.f32.mxu0 0.0
    %1725 = vmatmul.mubr.f32.gmra.mrb[0].mxu0 %v1640
    %v1726 = vpop.f32.mrb[0].mxu0
    %v1727 = vadd.f32 0.0, %v1726
    %v1728 = vpop.f32.mrb[0].mxu0
    %1729 = vmatprep.mubr.f32.mxu0 0.0
    %1730 = vmatmul.mubr.f32.gmra.mrb[0].mxu0 %v1643
    %v1731 = vpop.f32.mrb[0].mxu0
    %v1732 = vadd.f32 0.0, %v1731
    %v1733 = vpop.f32.mrb[0].mxu0
    %1734 = vdwg.mxu0
    %v1735 = vmul.f32 %v1712, %v270
    %v1736 = vmul.f32 %v1717, %v271
    %v1737 = vmul.f32 %v1722, %v272
    %v1738 = vmul.f32 %v1727, %v273
    %v1739 = vmul.f32 %v1732, %v274
    %s1740 = scalar_lea.vmem %s13, 128
    %v1741 = vld [vmem:[%s1740] sm:$0xff]
    %v1742 = vld [vmem:[%s1740 + $0x8] sm:$0xff]
    %v1743 = vld [vmem:[%s1740 + $0x10] sm:$0xff]
    %v1744 = vld [vmem:[%s1740 + $0x18] sm:$0xff]
    %v1745 = vld [vmem:[%s1740 + $0x20] sm:$0xff]
    %v1746 = vld [vmem:[%s1740 + $0x28] sm:$0xff]
    %v1747 = vld [vmem:[%s1740 + $0x30] sm:$0xff]
    %v1748 = vld [vmem:[%s1740 + $0x38] sm:$0xff]
    %v1749 = vld [vmem:[%s1740 + $0x40] sm:$0xff]
    %v1750 = vld [vmem:[%s1740 + $0x48] sm:$0xff]
    %v1751 = vld [vmem:[%s1740 + $0x50] sm:$0xff]
    %v1752 = vld [vmem:[%s1740 + $0x58] sm:$0xff]
    %v1753 = vld [vmem:[%s1740 + $0x60] sm:$0xff]
    %v1754 = vld [vmem:[%s1740 + $0x68] sm:$0xff]
    %v1755 = vld [vmem:[%s1740 + $0x70] sm:$0xff]
    %v1756 = vld [vmem:[%s1740 + $0x78] sm:$0xff]
    %s1757 = scalar_lea.vmem %s14, 40
    %v1758 = vld [vmem:[%s1757] sm:$0xff]
    %v1759 = vld [vmem:[%s1757 + $0x8] sm:$0xff]
    %v1760 = vld [vmem:[%s1757 + $0x10] sm:$0xff]
    %v1761 = vld [vmem:[%s1757 + $0x18] sm:$0xff]
    %v1762 = vld [vmem:[%s1757 + $0x20] sm:$0xff]
    %1763 = vmatprep.subr.mxu0 0.0
    %1764 = vmatpush1.msra.mxu0 %v1741
    %1765 = vmatprep.subr.mxu0 0.0
    %1766 = vmatpush1.msra.mxu0 %v1742
    %1767 = vmatprep.subr.mxu0 0.0
    %1768 = vmatpush1.msra.mxu0 %v1743
    %1769 = vmatprep.subr.mxu0 0.0
    %1770 = vmatpush1.msra.mxu0 %v1744
    %1771 = vmatprep.subr.mxu0 0.0
    %1772 = vmatpush1.msra.mxu0 %v1745
    %1773 = vmatprep.subr.mxu0 0.0
    %1774 = vmatpush1.msra.mxu0 %v1746
    %1775 = vmatprep.subr.mxu0 0.0
    %1776 = vmatpush1.msra.mxu0 %v1747
    %1777 = vmatprep.subr.mxu0 0.0
    %1778 = vmatpush1.msra.mxu0 %v1748
    %1779 = vmatprep.subr.mxu0 0.0
    %1780 = vmatpush1.msra.mxu0 %v1749
    %1781 = vmatprep.subr.mxu0 0.0
    %1782 = vmatpush1.msra.mxu0 %v1750
    %1783 = vmatprep.subr.mxu0 0.0
    %1784 = vmatpush1.msra.mxu0 %v1751
    %1785 = vmatprep.subr.mxu0 0.0
    %1786 = vmatpush1.msra.mxu0 %v1752
    %1787 = vmatprep.subr.mxu0 0.0
    %1788 = vmatpush1.msra.mxu0 %v1753
    %1789 = vmatprep.subr.mxu0 0.0
    %1790 = vmatpush1.msra.mxu0 %v1754
    %1791 = vmatprep.subr.mxu0 0.0
    %1792 = vmatpush1.msra.mxu0 %v1755
    %1793 = vmatprep.subr.mxu0 0.0
    %1794 = vmatpush1.msra.mxu0 %v1756
    %1795 = vmatprep.subr.mxu0 0.0
    %1796 = vmatpush1.msra.mxu0 0.0
    %1797 = vmatprep.subr.mxu0 0.0
    %1798 = vmatpush1.msra.mxu0 0.0
    %1799 = vmatprep.subr.mxu0 0.0
    %1800 = vmatpush1.msra.mxu0 0.0
    %1801 = vmatprep.subr.mxu0 0.0
    %1802 = vmatpush1.msra.mxu0 0.0
    %1803 = vmatprep.subr.mxu0 0.0
    %1804 = vmatpush1.msra.mxu0 0.0
    %1805 = vmatprep.subr.mxu0 0.0
    %1806 = vmatpush1.msra.mxu0 0.0
    %1807 = vmatprep.subr.mxu0 0.0
    %1808 = vmatpush1.msra.mxu0 0.0
    %1809 = vmatprep.subr.mxu0 0.0
    %1810 = vmatpush1.msra.mxu0 0.0
    %1811 = vmatprep.subr.mxu0 0.0
    %1812 = vmatpush1.msra.mxu0 0.0
    %1813 = vmatprep.subr.mxu0 0.0
    %1814 = vmatpush1.msra.mxu0 0.0
    %1815 = vmatprep.subr.mxu0 0.0
    %1816 = vmatpush1.msra.mxu0 0.0
    %1817 = vmatprep.subr.mxu0 0.0
    %1818 = vmatpush1.msra.mxu0 0.0
    %1819 = vmatprep.subr.mxu0 0.0
    %1820 = vmatpush1.msra.mxu0 0.0
    %1821 = vmatprep.subr.mxu0 0.0
    %1822 = vmatpush1.msra.mxu0 0.0
    %1823 = vmatprep.subr.mxu0 0.0
    %1824 = vmatpush1.msra.mxu0 0.0
    %1825 = vmatprep.subr.mxu0 0.0
    %1826 = vmatpush1.msra.mxu0 0.0
    %1827 = vmatprep.mubr.f32.mxu0 0.0
    %1828 = vmatmul.mubr.f32.gmra.mrb[0].mxu0 %v1735
    %v1829 = vpop.f32.mrb[0].mxu0
    %v1830 = vadd.f32 %v1758, %v1829
    %v1831 = vpop.f32.mrb[0].mxu0
    %1832 = vmatprep.mubr.f32.mxu0 0.0
    %1833 = vmatmul.mubr.f32.gmra.mrb[0].mxu0 %v1736
    %v1834 = vpop.f32.mrb[0].mxu0
    %v1835 = vadd.f32 %v1759, %v1834
    %v1836 = vpop.f32.mrb[0].mxu0
    %1837 = vmatprep.mubr.f32.mxu0 0.0
    %1838 = vmatmul.mubr.f32.gmra.mrb[0].mxu0 %v1737
    %v1839 = vpop.f32.mrb[0].mxu0
    %v1840 = vadd.f32 %v1760, %v1839
    %v1841 = vpop.f32.mrb[0].mxu0
    %1842 = vmatprep.mubr.f32.mxu0 0.0
    %1843 = vmatmul.mubr.f32.gmra.mrb[0].mxu0 %v1738
    %v1844 = vpop.f32.mrb[0].mxu0
    %v1845 = vadd.f32 %v1761, %v1844
    %v1846 = vpop.f32.mrb[0].mxu0
    %1847 = vmatprep.mubr.f32.mxu0 0.0
    %1848 = vmatmul.mubr.f32.gmra.mrb[0].mxu0 %v1739
    %v1849 = vpop.f32.mrb[0].mxu0
    %v1850 = vadd.f32 %v1762, %v1849
    %v1851 = vpop.f32.mrb[0].mxu0
    %1852 = vdwg.mxu0
    %1858 = vrot.lane.b32.xlu0 %v1830, 120
    %v1859 = vpop.permute.xlu0 %1858
    %1860 = vrot.lane.b32.xlu0 %v1835, 120
    %v1861 = vpop.permute.xlu0 %1860
    %1862 = vrot.lane.b32.xlu0 %v1840, 120
    %v1863 = vpop.permute.xlu0 %1862
    %1864 = vrot.lane.b32.xlu0 %v1845, 120
    %v1865 = vpop.permute.xlu0 %1864
    %1866 = vrot.lane.b32.xlu0 %v1850, 120
    %v1867 = vpop.permute.xlu0 %1866
    %v1868 = vsel %vm670, %v1830, 0
    %v1870 = vsel %vm670, %v1835, 0
    %v1872 = vsel %vm670, %v1840, 0
    %v1874 = vsel %vm670, %v1845, 0
    %v1876 = vsel %vm670, %v1850, 0
    %v1878 = vsel %vm670, %v1859, 0
    %v1880 = vsel %vm670, %v1861, 0
    %v1882 = vsel %vm670, %v1863, 0
    %v1884 = vsel %vm670, %v1865, 0
    %v1886 = vsel %vm670, %v1867, 0
    %1888 = vmatprep.subr.mxu0 0.0
    %1889 = vmatpush1.xpose.msra.mxu0 %v1878
    %1890 = vmatprep.subr.mxu0 0.0
    %1891 = vmatpush1.xpose.msra.mxu0 %v1880
    %1892 = vmatprep.subr.mxu0 0.0
    %1893 = vmatpush1.xpose.msra.mxu0 %v1882
    %1894 = vmatprep.subr.mxu0 0.0
    %1895 = vmatpush1.xpose.msra.mxu0 %v1884
    %1896 = vmatprep.subr.mxu0 0.0
    %1897 = vmatpush1.xpose.msra.mxu0 %v1886
    %1898 = vmatprep.subr.mxu0 0.0
    %1899 = vmatpush1.xpose.msra.mxu0 0.0
    %1900 = vmatprep.subr.mxu0 0.0
    %1901 = vmatpush1.xpose.msra.mxu0 0.0
    %1902 = vmatprep.subr.mxu0 0.0
    %1903 = vmatpush1.xpose.msra.mxu0 0.0
    %1904 = vmatprep.subr.mxu0 0.0
    %1905 = vmatpush1.xpose.msra.mxu0 0.0
    %1906 = vmatprep.subr.mxu0 0.0
    %1907 = vmatpush1.xpose.msra.mxu0 0.0
    %1908 = vmatprep.subr.mxu0 0.0
    %1909 = vmatpush1.xpose.msra.mxu0 0.0
    %1910 = vmatprep.subr.mxu0 0.0
    %1911 = vmatpush1.xpose.msra.mxu0 0.0
    %1912 = vmatprep.subr.mxu0 0.0
    %1913 = vmatpush1.xpose.msra.mxu0 0.0
    %1914 = vmatprep.subr.mxu0 0.0
    %1915 = vmatpush1.xpose.msra.mxu0 0.0
    %1916 = vmatprep.subr.mxu0 0.0
    %1917 = vmatpush1.xpose.msra.mxu0 0.0
    %1918 = vmatprep.subr.mxu0 0.0
    %1919 = vmatpush1.xpose.msra.mxu0 0.0
    %1920 = vmatprep.subr.mxu0 0.0
    %1921 = vmatpush1.xpose.msra.mxu0 0.0
    %1922 = vmatprep.subr.mxu0 0.0
    %1923 = vmatpush1.xpose.msra.mxu0 0.0
    %1924 = vmatprep.subr.mxu0 0.0
    %1925 = vmatpush1.xpose.msra.mxu0 0.0
    %1926 = vmatprep.subr.mxu0 0.0
    %1927 = vmatpush1.xpose.msra.mxu0 0.0
    %1928 = vmatprep.subr.mxu0 0.0
    %1929 = vmatpush1.xpose.msra.mxu0 0.0
    %1930 = vmatprep.subr.mxu0 0.0
    %1931 = vmatpush1.xpose.msra.mxu0 0.0
    %1932 = vmatprep.subr.mxu0 0.0
    %1933 = vmatpush1.xpose.msra.mxu0 0.0
    %1934 = vmatprep.subr.mxu0 0.0
    %1935 = vmatpush1.xpose.msra.mxu0 0.0
    %1936 = vmatprep.subr.mxu0 0.0
    %1937 = vmatpush1.xpose.msra.mxu0 0.0
    %1938 = vmatprep.subr.mxu0 0.0
    %1939 = vmatpush1.xpose.msra.mxu0 0.0
    %1940 = vmatprep.subr.mxu0 0.0
    %1941 = vmatpush1.xpose.msra.mxu0 0.0
    %1942 = vmatprep.subr.mxu0 0.0
    %1943 = vmatpush1.xpose.msra.mxu0 0.0
    %1944 = vmatprep.subr.mxu0 0.0
    %1945 = vmatpush1.xpose.msra.mxu0 0.0
    %1946 = vmatprep.subr.mxu0 0.0
    %1947 = vmatpush1.xpose.msra.mxu0 0.0
    %1948 = vmatprep.subr.mxu0 0.0
    %1949 = vmatpush1.xpose.msra.mxu0 0.0
    %1950 = vmatprep.subr.mxu0 0.0
    %1951 = vmatpush1.xpose.msra.mxu0 0.0
    %1952 = vmatprep.mubr.f32.mxu0 0.0
    %1953 = vmatmul.mubr.f32.gmra.mrb[0].mxu0 %v1868
    %v1954 = vpop.f32.mrb[0].mxu0
    %v1955 = vadd.f32 0.0, %v1954
    %v1956 = vpop.f32.mrb[0].mxu0
    %1957 = vmatprep.mubr.f32.mxu0 0.0
    %1958 = vmatmul.mubr.f32.gmra.mrb[0].mxu0 %v1870
    %v1959 = vpop.f32.mrb[0].mxu0
    %v1960 = vadd.f32 0.0, %v1959
    %v1961 = vpop.f32.mrb[0].mxu0
    %1962 = vmatprep.mubr.f32.mxu0 0.0
    %1963 = vmatmul.mubr.f32.gmra.mrb[0].mxu0 %v1872
    %v1964 = vpop.f32.mrb[0].mxu0
    %v1965 = vadd.f32 0.0, %v1964
    %v1966 = vpop.f32.mrb[0].mxu0
    %1967 = vmatprep.mubr.f32.mxu0 0.0
    %1968 = vmatmul.mubr.f32.gmra.mrb[0].mxu0 %v1874
    %v1969 = vpop.f32.mrb[0].mxu0
    %v1970 = vadd.f32 0.0, %v1969
    %v1971 = vpop.f32.mrb[0].mxu0
    %1972 = vmatprep.mubr.f32.mxu0 0.0
    %1973 = vmatmul.mubr.f32.gmra.mrb[0].mxu0 %v1876
    %v1974 = vpop.f32.mrb[0].mxu0
    %v1975 = vadd.f32 0.0, %v1974
    %v1976 = vpop.f32.mrb[0].mxu0
    %1977 = vdwg.mxu0
    %v1978 = vmul.f32 %v1955, 0.35355338
    %v1979 = vmul.f32 %v1960, 0.35355338
    %v1980 = vmul.f32 %v1965, 0.35355338
    %v1981 = vmul.f32 %v1970, 0.35355338
    %v1982 = vmul.f32 %v1975, 0.35355338
    %v1983 = vadd.f32 %v1978, %v275
    %v1984 = vadd.f32 %v1979, %v276
    %v1985 = vadd.f32 %v1980, %v277
    %v1986 = vadd.f32 %v1981, %v278
    %v1987 = vadd.f32 %v1982, %v279
    %v1988 = vsel %vm791, %v1983, -inf
    %1989 = vmax.xlane.f32.xlu0 %v1988
    %v1990 = vpop.xlane.xlu0 %1989
    %v1991 = vsel %vm791, %v1984, -inf
    %1992 = vmax.xlane.f32.xlu0 %v1991
    %v1993 = vpop.xlane.xlu0 %1992
    %v1994 = vsel %vm791, %v1985, -inf
    %1995 = vmax.xlane.f32.xlu0 %v1994
    %v1996 = vpop.xlane.xlu0 %1995
    %v1997 = vsel %vm791, %v1986, -inf
    %1998 = vmax.xlane.f32.xlu0 %v1997
    %v1999 = vpop.xlane.xlu0 %1998
    %v2000 = vsel %vm791, %v1987, -inf
    %2001 = vmax.xlane.f32.xlu0 %v2000
    %v2002 = vpop.xlane.xlu0 %2001
    %v2003 = vsub.f32 %v1983, %v1990
    %v2004 = vsub.f32 %v1984, %v1993
    %v2005 = vsub.f32 %v1985, %v1996
    %v2006 = vsub.f32 %v1986, %v1999
    %v2007 = vsub.f32 %v1987, %v2002
    %v2008 = vmul.f32 %v2003, 1.442695
    %v2009 = vpow.pop %v2008
    %v2010 = vmul.f32 %v2004, 1.442695
    %v2011 = vpow.pop %v2010
    %v2012 = vmul.f32 %v2005, 1.442695
    %v2013 = vpow.pop %v2012
    %v2014 = vmul.f32 %v2006, 1.442695
    %v2015 = vpow.pop %v2014
    %v2016 = vmul.f32 %v2007, 1.442695
    %v2017 = vpow.pop %v2016
    %v2018 = vsel %vm791, %v2009, 0.0
    %2019 = vadd.xlane.f32.xlu0 %v2018
    %v2020 = vpop.xlane.xlu0 %2019
    %v2021 = vsel %vm791, %v2011, 0.0
    %2022 = vadd.xlane.f32.xlu0 %v2021
    %v2023 = vpop.xlane.xlu0 %2022
    %v2024 = vsel %vm791, %v2013, 0.0
    %2025 = vadd.xlane.f32.xlu0 %v2024
    %v2026 = vpop.xlane.xlu0 %2025
    %v2027 = vsel %vm791, %v2015, 0.0
    %2028 = vadd.xlane.f32.xlu0 %v2027
    %v2029 = vpop.xlane.xlu0 %2028
    %v2030 = vsel %vm791, %v2017, 0.0
    %2031 = vadd.xlane.f32.xlu0 %v2030
    %v2032 = vpop.xlane.xlu0 %2031
    %v2033 = vrcp.pop %v2020
    %v2034 = vrcp.pop %v2023
    %v2035 = vrcp.pop %v2026
    %v2036 = vrcp.pop %v2029
    %v2037 = vrcp.pop %v2032
    %v2038 = vmul.f32 %v2009, %v2033
    %v2039 = vmul.f32 %v2011, %v2034
    %v2040 = vmul.f32 %v2013, %v2035
    %v2041 = vmul.f32 %v2015, %v2036
    %v2042 = vmul.f32 %v2017, %v2037
    %2043 = vrot.lane.b32.xlu0 %v1830, 112
    %v2044 = vpop.permute.xlu0 %2043
    %2045 = vrot.lane.b32.xlu0 %v1835, 112
    %v2046 = vpop.permute.xlu0 %2045
    %2047 = vrot.lane.b32.xlu0 %v1840, 112
    %v2048 = vpop.permute.xlu0 %2047
    %2049 = vrot.lane.b32.xlu0 %v1845, 112
    %v2050 = vpop.permute.xlu0 %2049
    %2051 = vrot.lane.b32.xlu0 %v1850, 112
    %v2052 = vpop.permute.xlu0 %2051
    %v2059 = vsel %vm791, %v2038, 0
    %v2062 = vsel %vm791, %v2039, 0
    %v2065 = vsel %vm791, %v2040, 0
    %v2068 = vsel %vm791, %v2041, 0
    %v2071 = vsel %vm791, %v2042, 0
    %2073 = vmatprep.subr.mxu0 0.0
    %2074 = vmatpush1.msra.mxu0 %v2044
    %2075 = vmatprep.subr.mxu0 0.0
    %2076 = vmatpush1.msra.mxu0 %v2046
    %2077 = vmatprep.subr.mxu0 0.0
    %2078 = vmatpush1.msra.mxu0 %v2048
    %2079 = vmatprep.subr.mxu0 0.0
    %2080 = vmatpush1.msra.mxu0 %v2050
    %2081 = vmatprep.subr.mxu0 0.0
    %2082 = vmatpush1.msra.mxu0 %v2052
    %2083 = vmatprep.subr.mxu0 0.0
    %2084 = vmatpush1.msra.mxu0 0.0
    %2085 = vmatprep.subr.mxu0 0.0
    %2086 = vmatpush1.msra.mxu0 0.0
    %2087 = vmatprep.subr.mxu0 0.0
    %2088 = vmatpush1.msra.mxu0 0.0
    %2089 = vmatprep.subr.mxu0 0.0
    %2090 = vmatpush1.msra.mxu0 0.0
    %2091 = vmatprep.subr.mxu0 0.0
    %2092 = vmatpush1.msra.mxu0 0.0
    %2093 = vmatprep.subr.mxu0 0.0
    %2094 = vmatpush1.msra.mxu0 0.0
    %2095 = vmatprep.subr.mxu0 0.0
    %2096 = vmatpush1.msra.mxu0 0.0
    %2097 = vmatprep.subr.mxu0 0.0
    %2098 = vmatpush1.msra.mxu0 0.0
    %2099 = vmatprep.subr.mxu0 0.0
    %2100 = vmatpush1.msra.mxu0 0.0
    %2101 = vmatprep.subr.mxu0 0.0
    %2102 = vmatpush1.msra.mxu0 0.0
    %2103 = vmatprep.subr.mxu0 0.0
    %2104 = vmatpush1.msra.mxu0 0.0
    %2105 = vmatprep.subr.mxu0 0.0
    %2106 = vmatpush1.msra.mxu0 0.0
    %2107 = vmatprep.subr.mxu0 0.0
    %2108 = vmatpush1.msra.mxu0 0.0
    %2109 = vmatprep.subr.mxu0 0.0
    %2110 = vmatpush1.msra.mxu0 0.0
    %2111 = vmatprep.subr.mxu0 0.0
    %2112 = vmatpush1.msra.mxu0 0.0
    %2113 = vmatprep.subr.mxu0 0.0
    %2114 = vmatpush1.msra.mxu0 0.0
    %2115 = vmatprep.subr.mxu0 0.0
    %2116 = vmatpush1.msra.mxu0 0.0
    %2117 = vmatprep.subr.mxu0 0.0
    %2118 = vmatpush1.msra.mxu0 0.0
    %2119 = vmatprep.subr.mxu0 0.0
    %2120 = vmatpush1.msra.mxu0 0.0
    %2121 = vmatprep.subr.mxu0 0.0
    %2122 = vmatpush1.msra.mxu0 0.0
    %2123 = vmatprep.subr.mxu0 0.0
    %2124 = vmatpush1.msra.mxu0 0.0
    %2125 = vmatprep.subr.mxu0 0.0
    %2126 = vmatpush1.msra.mxu0 0.0
    %2127 = vmatprep.subr.mxu0 0.0
    %2128 = vmatpush1.msra.mxu0 0.0
    %2129 = vmatprep.subr.mxu0 0.0
    %2130 = vmatpush1.msra.mxu0 0.0
    %2131 = vmatprep.subr.mxu0 0.0
    %2132 = vmatpush1.msra.mxu0 0.0
    %2133 = vmatprep.subr.mxu0 0.0
    %2134 = vmatpush1.msra.mxu0 0.0
    %2135 = vmatprep.subr.mxu0 0.0
    %2136 = vmatpush1.msra.mxu0 0.0
    %2137 = vmatprep.mubr.f32.mxu0 0.0
    %2138 = vmatmul.mubr.f32.gmra.mrb[0].mxu0 %v2059
    %v2139 = vpop.f32.mrb[0].mxu0
    %v2140 = vadd.f32 0.0, %v2139
    %v2141 = vpop.f32.mrb[0].mxu0
    %2142 = vmatprep.mubr.f32.mxu0 0.0
    %2143 = vmatmul.mubr.f32.gmra.mrb[0].mxu0 %v2062
    %v2144 = vpop.f32.mrb[0].mxu0
    %v2145 = vadd.f32 0.0, %v2144
    %v2146 = vpop.f32.mrb[0].mxu0
    %2147 = vmatprep.mubr.f32.mxu0 0.0
    %2148 = vmatmul.mubr.f32.gmra.mrb[0].mxu0 %v2065
    %v2149 = vpop.f32.mrb[0].mxu0
    %v2150 = vadd.f32 0.0, %v2149
    %v2151 = vpop.f32.mrb[0].mxu0
    %2152 = vmatprep.mubr.f32.mxu0 0.0
    %2153 = vmatmul.mubr.f32.gmra.mrb[0].mxu0 %v2068
    %v2154 = vpop.f32.mrb[0].mxu0
    %v2155 = vadd.f32 0.0, %v2154
    %v2156 = vpop.f32.mrb[0].mxu0
    %2157 = vmatprep.mubr.f32.mxu0 0.0
    %2158 = vmatmul.mubr.f32.gmra.mrb[0].mxu0 %v2071
    %v2159 = vpop.f32.mrb[0].mxu0
    %v2160 = vadd.f32 0.0, %v2159
    %v2161 = vpop.f32.mrb[0].mxu0
    %2162 = vdwg.mxu0
    %s2163 = scalar_lea.vmem %s15, 8
    %v2164 = vld [vmem:[%s2163] sm:$0xff]
    %v2166 = vsel %vm670, %v2140, 0
    %v2169 = vsel %vm670, %v2145, 0
    %v2172 = vsel %vm670, %v2150, 0
    %v2175 = vsel %vm670, %v2155, 0
    %v2178 = vsel %vm670, %v2160, 0
    %2180 = vmatprep.subr.mxu0 0.0
    %2181 = vmatpush1.msra.mxu0 %v2164
    %2182 = vmatprep.subr.mxu0 0.0
    %2183 = vmatpush1.msra.mxu0 0.0
    %2184 = vmatprep.subr.mxu0 0.0
    %2185 = vmatpush1.msra.mxu0 0.0
    %2186 = vmatprep.subr.mxu0 0.0
    %2187 = vmatpush1.msra.mxu0 0.0
    %2188 = vmatprep.subr.mxu0 0.0
    %2189 = vmatpush1.msra.mxu0 0.0
    %2190 = vmatprep.subr.mxu0 0.0
    %2191 = vmatpush1.msra.mxu0 0.0
    %2192 = vmatprep.subr.mxu0 0.0
    %2193 = vmatpush1.msra.mxu0 0.0
    %2194 = vmatprep.subr.mxu0 0.0
    %2195 = vmatpush1.msra.mxu0 0.0
    %2196 = vmatprep.subr.mxu0 0.0
    %2197 = vmatpush1.msra.mxu0 0.0
    %2198 = vmatprep.subr.mxu0 0.0
    %2199 = vmatpush1.msra.mxu0 0.0
    %2200 = vmatprep.subr.mxu0 0.0
    %2201 = vmatpush1.msra.mxu0 0.0
    %2202 = vmatprep.subr.mxu0 0.0
    %2203 = vmatpush1.msra.mxu0 0.0
    %2204 = vmatprep.subr.mxu0 0.0
    %2205 = vmatpush1.msra.mxu0 0.0
    %2206 = vmatprep.subr.mxu0 0.0
    %2207 = vmatpush1.msra.mxu0 0.0
    %2208 = vmatprep.subr.mxu0 0.0
    %2209 = vmatpush1.msra.mxu0 0.0
    %2210 = vmatprep.subr.mxu0 0.0
    %2211 = vmatpush1.msra.mxu0 0.0
    %2212 = vmatprep.subr.mxu0 0.0
    %2213 = vmatpush1.msra.mxu0 0.0
    %2214 = vmatprep.subr.mxu0 0.0
    %2215 = vmatpush1.msra.mxu0 0.0
    %2216 = vmatprep.subr.mxu0 0.0
    %2217 = vmatpush1.msra.mxu0 0.0
    %2218 = vmatprep.subr.mxu0 0.0
    %2219 = vmatpush1.msra.mxu0 0.0
    %2220 = vmatprep.subr.mxu0 0.0
    %2221 = vmatpush1.msra.mxu0 0.0
    %2222 = vmatprep.subr.mxu0 0.0
    %2223 = vmatpush1.msra.mxu0 0.0
    %2224 = vmatprep.subr.mxu0 0.0
    %2225 = vmatpush1.msra.mxu0 0.0
    %2226 = vmatprep.subr.mxu0 0.0
    %2227 = vmatpush1.msra.mxu0 0.0
    %2228 = vmatprep.subr.mxu0 0.0
    %2229 = vmatpush1.msra.mxu0 0.0
    %2230 = vmatprep.subr.mxu0 0.0
    %2231 = vmatpush1.msra.mxu0 0.0
    %2232 = vmatprep.subr.mxu0 0.0
    %2233 = vmatpush1.msra.mxu0 0.0
    %2234 = vmatprep.subr.mxu0 0.0
    %2235 = vmatpush1.msra.mxu0 0.0
    %2236 = vmatprep.subr.mxu0 0.0
    %2237 = vmatpush1.msra.mxu0 0.0
    %2238 = vmatprep.subr.mxu0 0.0
    %2239 = vmatpush1.msra.mxu0 0.0
    %2240 = vmatprep.subr.mxu0 0.0
    %2241 = vmatpush1.msra.mxu0 0.0
    %2242 = vmatprep.subr.mxu0 0.0
    %2243 = vmatpush1.msra.mxu0 0.0
    %2244 = vmatprep.mubr.f32.mxu0 0.0
    %2245 = vmatmul.mubr.f32.gmra.mrb[0].mxu0 %v2166
    %v2246 = vpop.f32.mrb[0].mxu0
    %v2247 = vadd.f32 0.0, %v2246
    %v2248 = vpop.f32.mrb[0].mxu0
    %2249 = vmatprep.mubr.f32.mxu0 0.0
    %2250 = vmatmul.mubr.f32.gmra.mrb[0].mxu0 %v2169
    %v2251 = vpop.f32.mrb[0].mxu0
    %v2252 = vadd.f32 0.0, %v2251
    %v2253 = vpop.f32.mrb[0].mxu0
    %2254 = vmatprep.mubr.f32.mxu0 0.0
    %2255 = vmatmul.mubr.f32.gmra.mrb[0].mxu0 %v2172
    %v2256 = vpop.f32.mrb[0].mxu0
    %v2257 = vadd.f32 0.0, %v2256
    %v2258 = vpop.f32.mrb[0].mxu0
    %2259 = vmatprep.mubr.f32.mxu0 0.0
    %2260 = vmatmul.mubr.f32.gmra.mrb[0].mxu0 %v2175
    %v2261 = vpop.f32.mrb[0].mxu0
    %v2262 = vadd.f32 0.0, %v2261
    %v2263 = vpop.f32.mrb[0].mxu0
    %2264 = vmatprep.mubr.f32.mxu0 0.0
    %2265 = vmatmul.mubr.f32.gmra.mrb[0].mxu0 %v2178
    %v2266 = vpop.f32.mrb[0].mxu0
    %v2267 = vadd.f32 0.0, %v2266
    %v2268 = vpop.f32.mrb[0].mxu0
    %2269 = vdwg.mxu0
    %v2270 = vmul.f32 %v2247, %v270
    %v2271 = vmul.f32 %v2252, %v271
    %v2272 = vmul.f32 %v2257, %v272
    %v2273 = vmul.f32 %v2262, %v273
    %v2274 = vmul.f32 %v2267, %v274
    %2275 = vmatprep.subr.mxu0 0.0
    %2276 = vmatpush1.msra.mxu0 %v2270
    %2277 = vmatprep.subr.mxu0 0.0
    %2278 = vmatpush1.msra.mxu0 %v2271
    %2279 = vmatprep.subr.mxu0 0.0
    %2280 = vmatpush1.msra.mxu0 %v2272
    %2281 = vmatprep.subr.mxu0 0.0
    %2282 = vmatpush1.msra.mxu0 %v2273
    %2283 = vmatprep.subr.mxu0 0.0
    %2284 = vmatpush1.msra.mxu0 %v2274
    %2285 = vmatprep.subr.mxu0 0.0
    %2286 = vmatpush1.msra.mxu0 0.0
    %2287 = vmatprep.subr.mxu0 0.0
    %2288 = vmatpush1.msra.mxu0 0.0
    %2289 = vmatprep.subr.mxu0 0.0
    %2290 = vmatpush1.msra.mxu0 0.0
    %2291 = vmatprep.subr.mxu0 0.0
    %2292 = vmatpush1.msra.mxu0 0.0
    %2293 = vmatprep.subr.mxu0 0.0
    %2294 = vmatpush1.msra.mxu0 0.0
    %2295 = vmatprep.subr.mxu0 0.0
    %2296 = vmatpush1.msra.mxu0 0.0
    %2297 = vmatprep.subr.mxu0 0.0
    %2298 = vmatpush1.msra.mxu0 0.0
    %2299 = vmatprep.subr.mxu0 0.0
    %2300 = vmatpush1.msra.mxu0 0.0
    %2301 = vmatprep.subr.mxu0 0.0
    %2302 = vmatpush1.msra.mxu0 0.0
    %2303 = vmatprep.subr.mxu0 0.0
    %2304 = vmatpush1.msra.mxu0 0.0
    %2305 = vmatprep.subr.mxu0 0.0
    %2306 = vmatpush1.msra.mxu0 0.0
    %2307 = vmatprep.subr.mxu0 0.0
    %2308 = vmatpush1.msra.mxu0 0.0
    %2309 = vmatprep.subr.mxu0 0.0
    %2310 = vmatpush1.msra.mxu0 0.0
    %2311 = vmatprep.subr.mxu0 0.0
    %2312 = vmatpush1.msra.mxu0 0.0
    %2313 = vmatprep.subr.mxu0 0.0
    %2314 = vmatpush1.msra.mxu0 0.0
    %2315 = vmatprep.subr.mxu0 0.0
    %2316 = vmatpush1.msra.mxu0 0.0
    %2317 = vmatprep.subr.mxu0 0.0
    %2318 = vmatpush1.msra.mxu0 0.0
    %2319 = vmatprep.subr.mxu0 0.0
    %2320 = vmatpush1.msra.mxu0 0.0
    %2321 = vmatprep.subr.mxu0 0.0
    %2322 = vmatpush1.msra.mxu0 0.0
    %2323 = vmatprep.subr.mxu0 0.0
    %2324 = vmatpush1.msra.mxu0 0.0
    %2325 = vmatprep.subr.mxu0 0.0
    %2326 = vmatpush1.msra.mxu0 0.0
    %2327 = vmatprep.subr.mxu0 0.0
    %2328 = vmatpush1.msra.mxu0 0.0
    %2329 = vmatprep.subr.mxu0 0.0
    %2330 = vmatpush1.msra.mxu0 0.0
    %2331 = vmatprep.subr.mxu0 0.0
    %2332 = vmatpush1.msra.mxu0 0.0
    %2333 = vmatprep.subr.mxu0 0.0
    %2334 = vmatpush1.msra.mxu0 0.0
    %2335 = vmatprep.subr.mxu0 0.0
    %2336 = vmatpush1.msra.mxu0 0.0
    %2337 = vmatprep.subr.mxu0 0.0
    %2338 = vmatpush1.msra.mxu0 0.0
    %2339 = vmatprep.mubr.f32.mxu0 0.0
    %2340 = vmatmul.mubr.f32.gmra.mrb[0].mxu0 %v1079
    %v2341 = vpop.f32.mrb[0].mxu0
    %v2342 = vadd.f32 0.0, %v2341
    %v2343 = vpop.f32.mrb[0].mxu0
    %2344 = vmatprep.mubr.f32.mxu0 0.0
    %2345 = vmatmul.mubr.f32.gmra.mrb[0].mxu0 %v1082
    %v2346 = vpop.f32.mrb[0].mxu0
    %v2347 = vadd.f32 0.0, %v2346
    %v2348 = vpop.f32.mrb[0].mxu0
    %2349 = vdwg.mxu0
    %s2350 = scalar_lea.vmem %s16, 1
    %v2351 = vld [vmem:[%s2350] sm:$0x1]
    %v2353 = vlaneseq
    %v2354 = vshrl.u32 %v2353, 7
    %v2355 = vsub.s32 0, %v2354
    %v2356 = vrot.slane %v2351, %v2355
    %2358 = vmatprep.subr.mxu0 0.0
    %2359 = vmatpush1.msra.mxu0 %v254
    %2360 = vmatprep.subr.mxu0 0.0
    %2361 = vmatpush1.msra.mxu0 %v255
    %2362 = vmatprep.subr.mxu0 0.0
    %2363 = vmatpush1.msra.mxu0 %v256
    %2364 = vmatprep.subr.mxu0 0.0
    %2365 = vmatpush1.msra.mxu0 %v257
    %2366 = vmatprep.subr.mxu0 0.0
    %2367 = vmatpush1.msra.mxu0 %v258
    %2368 = vmatprep.subr.mxu0 0.0
    %2369 = vmatpush1.msra.mxu0 %v259
    %2370 = vmatprep.subr.mxu0 0.0
    %2371 = vmatpush1.msra.mxu0 %v260
    %2372 = vmatprep.subr.mxu0 0.0
    %2373 = vmatpush1.msra.mxu0 %v261
    %2374 = vmatprep.subr.mxu0 0.0
    %2375 = vmatpush1.msra.mxu0 %v262
    %2376 = vmatprep.subr.mxu0 0.0
    %2377 = vmatpush1.msra.mxu0 %v263
    %2378 = vmatprep.subr.mxu0 0.0
    %2379 = vmatpush1.msra.mxu0 %v264
    %2380 = vmatprep.subr.mxu0 0.0
    %2381 = vmatpush1.msra.mxu0 %v265
    %2382 = vmatprep.subr.mxu0 0.0
    %2383 = vmatpush1.msra.mxu0 %v266
    %2384 = vmatprep.subr.mxu0 0.0
    %2385 = vmatpush1.msra.mxu0 %v267
    %2386 = vmatprep.subr.mxu0 0.0
    %2387 = vmatpush1.msra.mxu0 %v268
    %2388 = vmatprep.subr.mxu0 0.0
    %2389 = vmatpush1.msra.mxu0 %v269
    %2390 = vmatprep.subr.mxu0 0.0
    %2391 = vmatpush1.msra.mxu0 0.0
    %2392 = vmatprep.subr.mxu0 0.0
    %2393 = vmatpush1.msra.mxu0 0.0
    %2394 = vmatprep.subr.mxu0 0.0
    %2395 = vmatpush1.msra.mxu0 0.0
    %2396 = vmatprep.subr.mxu0 0.0
    %2397 = vmatpush1.msra.mxu0 0.0
    %2398 = vmatprep.subr.mxu0 0.0
    %2399 = vmatpush1.msra.mxu0 0.0
    %2400 = vmatprep.subr.mxu0 0.0
    %2401 = vmatpush1.msra.mxu0 0.0
    %2402 = vmatprep.subr.mxu0 0.0
    %2403 = vmatpush1.msra.mxu0 0.0
    %2404 = vmatprep.subr.mxu0 0.0
    %2405 = vmatpush1.msra.mxu0 0.0
    %2406 = vmatprep.subr.mxu0 0.0
    %2407 = vmatpush1.msra.mxu0 0.0
    %2408 = vmatprep.subr.mxu0 0.0
    %2409 = vmatpush1.msra.mxu0 0.0
    %2410 = vmatprep.subr.mxu0 0.0
    %2411 = vmatpush1.msra.mxu0 0.0
    %2412 = vmatprep.subr.mxu0 0.0
    %2413 = vmatpush1.msra.mxu0 0.0
    %2414 = vmatprep.subr.mxu0 0.0
    %2415 = vmatpush1.msra.mxu0 0.0
    %2416 = vmatprep.subr.mxu0 0.0
    %2417 = vmatpush1.msra.mxu0 0.0
    %2418 = vmatprep.subr.mxu0 0.0
    %2419 = vmatpush1.msra.mxu0 0.0
    %2420 = vmatprep.subr.mxu0 0.0
    %2421 = vmatpush1.msra.mxu0 0.0
    %2422 = vmatprep.mubr.f32.mxu0 0.0
    %2423 = vmatmul.mubr.f32.gmra.mrb[0].mxu0 %v2342
    %v2424 = vpop.f32.mrb[0].mxu0
    %v2425 = vadd.f32 %v2356, %v2424
    %v2426 = vpop.f32.mrb[0].mxu0
    %2427 = vmatprep.mubr.f32.mxu0 0.0
    %2428 = vmatmul.mubr.f32.gmra.mrb[0].mxu0 %v2347
    %v2429 = vpop.f32.mrb[0].mxu0
    %v2430 = vadd.f32 %v2356, %v2429
    %v2431 = vpop.f32.mrb[0].mxu0
    %2432 = vdwg.mxu0
    %v2433 = vadd.f32 %v1489, %v2425
    %v2434 = vadd.f32 %v1490, %v2430
    %s2435 = scalar_lea.vmem %s17, 1
    %v2436 = vld [vmem:[%s2435] sm:$0x1]
    %s2437 = scalar_lea.vmem %s18, 1
    %v2438 = vld [vmem:[%s2437] sm:$0x1]
    %v2439 = vsel %vm198, %v2433, 0.0
    %2440 = vadd.xlane.f32.xlu0 %v2439
    %v2441 = vpop.xlane.xlu0 %2440
    %v2442 = vsel %vm202, %v2434, 0.0
    %2443 = vadd.xlane.f32.xlu0 %v2442
    %v2444 = vpop.xlane.xlu0 %2443
    %v2445 = vmul.f32 %v2441, %v206
    %v2446 = vmul.f32 %v2444, %v206
    %v2447 = vsub.f32 %v2433, %v2445
    %v2448 = vsub.f32 %v2434, %v2446
    %v2449 = vmul.f32 %v2447, %v2447
    %v2450 = vmul.f32 %v2448, %v2448
    %v2451 = vsel %vm198, %v2449, 0.0
    %2452 = vadd.xlane.f32.xlu0 %v2451
    %v2453 = vpop.xlane.xlu0 %2452
    %v2454 = vsel %vm202, %v2450, 0.0
    %2455 = vadd.xlane.f32.xlu0 %v2454
    %v2456 = vpop.xlane.xlu0 %2455
    %v2457 = vmul.f32 %v2453, %v206
    %v2458 = vmul.f32 %v2456, %v206
    %v2459 = vadd.f32 %v2457, 1e-05
    %v2460 = vadd.f32 %v2458, 1e-05
    %v2461 = vrsqrt.pop %v2459
    %v2462 = vrsqrt.pop %v2460
    %v2463 = vmul.f32 %v2447, %v2461
    %v2464 = vmul.f32 %v2448, %v2462
    %v2466 = vlaneseq
    %v2467 = vshrl.u32 %v2466, 7
    %v2468 = vsub.s32 0, %v2467
    %v2469 = vrot.slane %v2436, %v2468
    %v2471 = vmul.f32 %v2463, %v2469
    %v2472 = vmul.f32 %v2464, %v2469
    %v2474 = vlaneseq
    %v2475 = vshrl.u32 %v2474, 7
    %v2476 = vsub.s32 0, %v2475
    %v2477 = vrot.slane %v2438, %v2476
    %v2479 = vadd.f32 %v2471, %v2477
    %v2480 = vadd.f32 %v2472, %v2477
    %s2481 = scalar_lea.vmem %s19, 32
    %v2482 = vld [vmem:[%s2481] sm:$0xff]
    %v2483 = vld [vmem:[%s2481 + $0x8] sm:$0xff]
    %v2484 = vld [vmem:[%s2481 + $0x10] sm:$0xff]
    %v2485 = vld [vmem:[%s2481 + $0x18] sm:$0xff]
    %s2486 = scalar_lea.vmem %s20, 1
    %v2487 = vld [vmem:[%s2486] sm:$0x1]
    %v2489 = vlaneseq
    %v2490 = vshrl.u32 %v2489, 7
    %v2491 = vsub.s32 0, %v2490
    %v2492 = vrot.slane %v2487, %v2491
    %v2495 = vsel %vm198, %v2479, 0
    %v2498 = vsel %vm198, %v2480, 0
    %2500 = vmatprep.subr.mxu0 0.0
    %2501 = vmatpush1.msra.mxu0 %v2482
    %2502 = vmatprep.subr.mxu0 0.0
    %2503 = vmatpush1.msra.mxu0 %v2483
    %2504 = vmatprep.subr.mxu0 0.0
    %2505 = vmatpush1.msra.mxu0 %v2484
    %2506 = vmatprep.subr.mxu0 0.0
    %2507 = vmatpush1.msra.mxu0 %v2485
    %2508 = vmatprep.subr.mxu0 0.0
    %2509 = vmatpush1.msra.mxu0 0.0
    %2510 = vmatprep.subr.mxu0 0.0
    %2511 = vmatpush1.msra.mxu0 0.0
    %2512 = vmatprep.subr.mxu0 0.0
    %2513 = vmatpush1.msra.mxu0 0.0
    %2514 = vmatprep.subr.mxu0 0.0
    %2515 = vmatpush1.msra.mxu0 0.0
    %2516 = vmatprep.subr.mxu0 0.0
    %2517 = vmatpush1.msra.mxu0 0.0
    %2518 = vmatprep.subr.mxu0 0.0
    %2519 = vmatpush1.msra.mxu0 0.0
    %2520 = vmatprep.subr.mxu0 0.0
    %2521 = vmatpush1.msra.mxu0 0.0
    %2522 = vmatprep.subr.mxu0 0.0
    %2523 = vmatpush1.msra.mxu0 0.0
    %2524 = vmatprep.subr.mxu0 0.0
    %2525 = vmatpush1.msra.mxu0 0.0
    %2526 = vmatprep.subr.mxu0 0.0
    %2527 = vmatpush1.msra.mxu0 0.0
    %2528 = vmatprep.subr.mxu0 0.0
    %2529 = vmatpush1.msra.mxu0 0.0
    %2530 = vmatprep.subr.mxu0 0.0
    %2531 = vmatpush1.msra.mxu0 0.0
    %2532 = vmatprep.subr.mxu0 0.0
    %2533 = vmatpush1.msra.mxu0 0.0
    %2534 = vmatprep.subr.mxu0 0.0
    %2535 = vmatpush1.msra.mxu0 0.0
    %2536 = vmatprep.subr.mxu0 0.0
    %2537 = vmatpush1.msra.mxu0 0.0
    %2538 = vmatprep.subr.mxu0 0.0
    %2539 = vmatpush1.msra.mxu0 0.0
    %2540 = vmatprep.subr.mxu0 0.0
    %2541 = vmatpush1.msra.mxu0 0.0
    %2542 = vmatprep.subr.mxu0 0.0
    %2543 = vmatpush1.msra.mxu0 0.0
    %2544 = vmatprep.subr.mxu0 0.0
    %2545 = vmatpush1.msra.mxu0 0.0
    %2546 = vmatprep.subr.mxu0 0.0
    %2547 = vmatpush1.msra.mxu0 0.0
    %2548 = vmatprep.subr.mxu0 0.0
    %2549 = vmatpush1.msra.mxu0 0.0
    %2550 = vmatprep.subr.mxu0 0.0
    %2551 = vmatpush1.msra.mxu0 0.0
    %2552 = vmatprep.subr.mxu0 0.0
    %2553 = vmatpush1.msra.mxu0 0.0
    %2554 = vmatprep.subr.mxu0 0.0
    %2555 = vmatpush1.msra.mxu0 0.0
    %2556 = vmatprep.subr.mxu0 0.0
    %2557 = vmatpush1.msra.mxu0 0.0
    %2558 = vmatprep.subr.mxu0 0.0
    %2559 = vmatpush1.msra.mxu0 0.0
    %2560 = vmatprep.subr.mxu0 0.0
    %2561 = vmatpush1.msra.mxu0 0.0
    %2562 = vmatprep.subr.mxu0 0.0
    %2563 = vmatpush1.msra.mxu0 0.0
    %2564 = vmatprep.mubr.f32.mxu0 0.0
    %2565 = vmatmul.mubr.f32.gmra.mrb[0].mxu0 %v2495
    %v2566 = vpop.f32.mrb[0].mxu0
    %v2567 = vadd.f32 %v2492, %v2566
    %v2568 = vpop.f32.mrb[0].mxu0
    %2569 = vmatprep.mubr.f32.mxu0 0.0
    %2570 = vmatmul.mubr.f32.gmra.mrb[0].mxu0 %v2498
    %v2571 = vpop.f32.mrb[0].mxu0
    %v2572 = vadd.f32 %v2492, %v2571
    %v2573 = vpop.f32.mrb[0].mxu0
    %2574 = vdwg.mxu0
    %v2575 = vmul.f32 %v2567, 0.851
    %v2576 = vmul.f32 %v2572, 0.851
    %v2577 = vtanh.pop %v2575
    %v2578 = vtanh.pop %v2576
    %v2579 = vadd.f32 %v2577, 1.0
    %v2580 = vadd.f32 %v2578, 1.0
    %v2581 = vmul.f32 %v2579, 0.5
    %v2582 = vmul.f32 %v2580, 0.5
    %v2583 = vmul.f32 %v2567, %v2581
    %v2584 = vmul.f32 %v2572, %v2582
    %s2585 = scalar_lea.vmem %s21, 128
    %v2586 = vld [vmem:[%s2585] sm:$0xff]
    %v2587 = vld [vmem:[%s2585 + $0x8] sm:$0xff]
    %v2588 = vld [vmem:[%s2585 + $0x10] sm:$0xff]
    %v2589 = vld [vmem:[%s2585 + $0x18] sm:$0xff]
    %v2590 = vld [vmem:[%s2585 + $0x20] sm:$0xff]
    %v2591 = vld [vmem:[%s2585 + $0x28] sm:$0xff]
    %v2592 = vld [vmem:[%s2585 + $0x30] sm:$0xff]
    %v2593 = vld [vmem:[%s2585 + $0x38] sm:$0xff]
    %v2594 = vld [vmem:[%s2585 + $0x40] sm:$0xff]
    %v2595 = vld [vmem:[%s2585 + $0x48] sm:$0xff]
    %v2596 = vld [vmem:[%s2585 + $0x50] sm:$0xff]
    %v2597 = vld [vmem:[%s2585 + $0x58] sm:$0xff]
    %v2598 = vld [vmem:[%s2585 + $0x60] sm:$0xff]
    %v2599 = vld [vmem:[%s2585 + $0x68] sm:$0xff]
    %v2600 = vld [vmem:[%s2585 + $0x70] sm:$0xff]
    %v2601 = vld [vmem:[%s2585 + $0x78] sm:$0xff]
    %2602 = vmatprep.subr.mxu0 0.0
    %2603 = vmatpush1.msra.mxu0 %v2586
    %2604 = vmatprep.subr.mxu0 0.0
    %2605 = vmatpush1.msra.mxu0 %v2587
    %2606 = vmatprep.subr.mxu0 0.0
    %2607 = vmatpush1.msra.mxu0 %v2588
    %2608 = vmatprep.subr.mxu0 0.0
    %2609 = vmatpush1.msra.mxu0 %v2589
    %2610 = vmatprep.subr.mxu0 0.0
    %2611 = vmatpush1.msra.mxu0 %v2590
    %2612 = vmatprep.subr.mxu0 0.0
    %2613 = vmatpush1.msra.mxu0 %v2591
    %2614 = vmatprep.subr.mxu0 0.0
    %2615 = vmatpush1.msra.mxu0 %v2592
    %2616 = vmatprep.subr.mxu0 0.0
    %2617 = vmatpush1.msra.mxu0 %v2593
    %2618 = vmatprep.subr.mxu0 0.0
    %2619 = vmatpush1.msra.mxu0 %v2594
    %2620 = vmatprep.subr.mxu0 0.0
    %2621 = vmatpush1.msra.mxu0 %v2595
    %2622 = vmatprep.subr.mxu0 0.0
    %2623 = vmatpush1.msra.mxu0 %v2596
    %2624 = vmatprep.subr.mxu0 0.0
    %2625 = vmatpush1.msra.mxu0 %v2597
    %2626 = vmatprep.subr.mxu0 0.0
    %2627 = vmatpush1.msra.mxu0 %v2598
    %2628 = vmatprep.subr.mxu0 0.0
    %2629 = vmatpush1.msra.mxu0 %v2599
    %2630 = vmatprep.subr.mxu0 0.0
    %2631 = vmatpush1.msra.mxu0 %v2600
    %2632 = vmatprep.subr.mxu0 0.0
    %2633 = vmatpush1.msra.mxu0 %v2601
    %2634 = vmatprep.subr.mxu0 0.0
    %2635 = vmatpush1.msra.mxu0 0.0
    %2636 = vmatprep.subr.mxu0 0.0
    %2637 = vmatpush1.msra.mxu0 0.0
    %2638 = vmatprep.subr.mxu0 0.0
    %2639 = vmatpush1.msra.mxu0 0.0
    %2640 = vmatprep.subr.mxu0 0.0
    %2641 = vmatpush1.msra.mxu0 0.0
    %2642 = vmatprep.subr.mxu0 0.0
    %2643 = vmatpush1.msra.mxu0 0.0
    %2644 = vmatprep.subr.mxu0 0.0
    %2645 = vmatpush1.msra.mxu0 0.0
    %2646 = vmatprep.subr.mxu0 0.0
    %2647 = vmatpush1.msra.mxu0 0.0
    %2648 = vmatprep.subr.mxu0 0.0
    %2649 = vmatpush1.msra.mxu0 0.0
    %2650 = vmatprep.subr.mxu0 0.0
    %2651 = vmatpush1.msra.mxu0 0.0
    %2652 = vmatprep.subr.mxu0 0.0
    %2653 = vmatpush1.msra.mxu0 0.0
    %2654 = vmatprep.subr.mxu0 0.0
    %2655 = vmatpush1.msra.mxu0 0.0
    %2656 = vmatprep.subr.mxu0 0.0
    %2657 = vmatpush1.msra.mxu0 0.0
    %2658 = vmatprep.subr.mxu0 0.0
    %2659 = vmatpush1.msra.mxu0 0.0
    %2660 = vmatprep.subr.mxu0 0.0
    %2661 = vmatpush1.msra.mxu0 0.0
    %2662 = vmatprep.subr.mxu0 0.0
    %2663 = vmatpush1.msra.mxu0 0.0
    %2664 = vmatprep.subr.mxu0 0.0
    %2665 = vmatpush1.msra.mxu0 0.0
    %2666 = vmatprep.mubr.f32.mxu0 0.0
    %2667 = vmatmul.mubr.f32.gmra.mrb[0].mxu0 %v2583
    %v2668 = vpop.f32.mrb[0].mxu0
    %v2669 = vadd.f32 0.0, %v2668
    %v2670 = vpop.f32.mrb[0].mxu0
    %2671 = vmatprep.mubr.f32.mxu0 0.0
    %2672 = vmatmul.mubr.f32.gmra.mrb[0].mxu0 %v2584
    %v2673 = vpop.f32.mrb[0].mxu0
    %v2674 = vpop.f32.mrb[0].mxu0
    %2675 = vdwg.mxu0
    %v2676 = vadd.f32 %v2433, %v2669
    %s2677 = scalar_lea.vmem %s22, 1
    %v2678 = vld [vmem:[%s2677] sm:$0x1]
    %v2680 = vlaneseq
    %v2681 = vshrl.u32 %v2680, 7
    %v2682 = vsub.s32 0, %v2681
    %v2683 = vrot.slane %v2678, %v2682
    %v2685 = vadd.f32 %v2676, %v2683
    %v2686 = vld [vmem:[%s23] sm:$0x1]
    %v2687 = vld [vmem:[%s24] sm:$0x1]
    %v2688 = vsel %vm202, %v2685, 0.0
    %2689 = vadd.xlane.f32.xlu0 %v2688
    %v2690 = vpop.xlane.xlu0 %2689
    %v2691 = vmul.f32 %v2690, %v206
    %v2692 = vsub.f32 %v2685, %v2691
    %v2693 = vmul.f32 %v2692, %v2692
    %v2694 = vsel %vm202, %v2693, 0.0
    %2695 = vadd.xlane.f32.xlu0 %v2694
    %v2696 = vpop.xlane.xlu0 %2695
    %v2697 = vmul.f32 %v2696, %v206
    %v2698 = vadd.f32 %v2697, 1e-05
    %v2699 = vrsqrt.pop %v2698
    %v2700 = vmul.f32 %v2692, %v2699
    %v2702 = vlaneseq
    %v2703 = vshrl.u32 %v2702, 7
    %v2704 = vsub.s32 0, %v2703
    %v2705 = vrot.slane %v2686, %v2704
    %v2707 = vmul.f32 %v2700, %v2705
    %v2709 = vlaneseq
    %v2710 = vshrl.u32 %v2709, 7
    %v2711 = vsub.s32 0, %v2710
    %v2712 = vrot.slane %v2687, %v2711
    %v2714 = vadd.f32 %v2707, %v2712
    %v2715 = vld [vmem:[%s25] sm:$0xff]
    %v2716 = vld [vmem:[%s25 + $0x8] sm:$0xff]
    %v2717 = vld [vmem:[%s25 + $0x10] sm:$0xff]
    %v2718 = vld [vmem:[%s25 + $0x18] sm:$0xff]
    %v2720 = vsel %vm198, %v2714, 0
    %2722 = vmatprep.subr.mxu0 0.0
    %2723 = vmatpush1.msra.mxu0 %v2715
    %2724 = vmatprep.subr.mxu0 0.0
    %2725 = vmatpush1.msra.mxu0 %v2716
    %2726 = vmatprep.subr.mxu0 0.0
    %2727 = vmatpush1.msra.mxu0 %v2717
    %2728 = vmatprep.subr.mxu0 0.0
    %2729 = vmatpush1.msra.mxu0 %v2718
    %2730 = vmatprep.subr.mxu0 0.0
    %2731 = vmatpush1.msra.mxu0 0.0
    %2732 = vmatprep.subr.mxu0 0.0
    %2733 = vmatpush1.msra.mxu0 0.0
    %2734 = vmatprep.subr.mxu0 0.0
    %2735 = vmatpush1.msra.mxu0 0.0
    %2736 = vmatprep.subr.mxu0 0.0
    %2737 = vmatpush1.msra.mxu0 0.0
    %2738 = vmatprep.subr.mxu0 0.0
    %2739 = vmatpush1.msra.mxu0 0.0
    %2740 = vmatprep.subr.mxu0 0.0
    %2741 = vmatpush1.msra.mxu0 0.0
    %2742 = vmatprep.subr.mxu0 0.0
    %2743 = vmatpush1.msra.mxu0 0.0
    %2744 = vmatprep.subr.mxu0 0.0
    %2745 = vmatpush1.msra.mxu0 0.0
    %2746 = vmatprep.subr.mxu0 0.0
    %2747 = vmatpush1.msra.mxu0 0.0
    %2748 = vmatprep.subr.mxu0 0.0
    %2749 = vmatpush1.msra.mxu0 0.0
    %2750 = vmatprep.subr.mxu0 0.0
    %2751 = vmatpush1.msra.mxu0 0.0
    %2752 = vmatprep.subr.mxu0 0.0
    %2753 = vmatpush1.msra.mxu0 0.0
    %2754 = vmatprep.subr.mxu0 0.0
    %2755 = vmatpush1.msra.mxu0 0.0
    %2756 = vmatprep.subr.mxu0 0.0
    %2757 = vmatpush1.msra.mxu0 0.0
    %2758 = vmatprep.subr.mxu0 0.0
    %2759 = vmatpush1.msra.mxu0 0.0
    %2760 = vmatprep.subr.mxu0 0.0
    %2761 = vmatpush1.msra.mxu0 0.0
    %2762 = vmatprep.subr.mxu0 0.0
    %2763 = vmatpush1.msra.mxu0 0.0
    %2764 = vmatprep.subr.mxu0 0.0
    %2765 = vmatpush1.msra.mxu0 0.0
    %2766 = vmatprep.subr.mxu0 0.0
    %2767 = vmatpush1.msra.mxu0 0.0
    %2768 = vmatprep.subr.mxu0 0.0
    %2769 = vmatpush1.msra.mxu0 0.0
    %2770 = vmatprep.subr.mxu0 0.0
    %2771 = vmatpush1.msra.mxu0 0.0
    %2772 = vmatprep.subr.mxu0 0.0
    %2773 = vmatpush1.msra.mxu0 0.0
    %2774 = vmatprep.subr.mxu0 0.0
    %2775 = vmatpush1.msra.mxu0 0.0
    %2776 = vmatprep.subr.mxu0 0.0
    %2777 = vmatpush1.msra.mxu0 0.0
    %2778 = vmatprep.subr.mxu0 0.0
    %2779 = vmatpush1.msra.mxu0 0.0
    %2780 = vmatprep.subr.mxu0 0.0
    %2781 = vmatpush1.msra.mxu0 0.0
    %2782 = vmatprep.subr.mxu0 0.0
    %2783 = vmatpush1.msra.mxu0 0.0
    %2784 = vmatprep.subr.mxu0 0.0
    %2785 = vmatpush1.msra.mxu0 0.0
    %2786 = vmatprep.mubr.f32.mxu0 0.0
    %2787 = vmatmul.mubr.f32.gmra.mrb[0].mxu0 %v2720
    %v2788 = vpop.f32.mrb[0].mxu0
    %v2789 = vadd.f32 0.0, %v2788
    %v2790 = vpop.f32.mrb[0].mxu0
    %2791 = vdwg.mxu0
    %vm2792 = vcmask 123904
    %2793 = vst.msk [vmem:[#allocation2] sm:$0x3] %vm2792, %v2789
    // Predicated region
    $region106: #{visual_transformer_forward.1} parent=1 // pred_check
      _
    $region107: #{visual_transformer_forward.1} parent=1 // pred_check_branch
      %2795 = sbr.rel (0) target = $region109
    $region108: #{visual_transformer_forward.1} parent=1 // pred_region
      %s2797 = ssub.s32 32, 32
      %2798 = vsyncadd [#allocation3], %s2797
      %s2800 = sshll.u32 [#allocation2], 4
      %s2801 = int_to_ptr.vmem [resolvable:$true] %s2800
      %2803 = dma.vmem_to_hbm [thread:$0]  %s2801, 32, %s26, [#allocation3]
    $region109: #{visual_transformer_forward.1} parent=1 // pred_fallthru
      _
    // Predicated region
    $region110: #{visual_transformer_forward.1} parent=1 // pred_check
      _
    $region111: #{visual_transformer_forward.1} parent=1 // pred_check_branch
      %2805 = sbr.rel (0) target = $region113
    $region112: #{visual_transformer_forward.1} parent=1 // pred_region
      %2806 = dma.done [#allocation3], 32
    $region113: #{visual_transformer_forward.1} parent=1 // pred_fallthru
      _
    %2807 = vsyncpa [#allocation3], 1

</llo_original>
